<compile_context>
chip_gen: v7x
topology: tpu7x:2x2x1
jax: 0.10.0
libtpu: 0.0.40
codegen_flags: <defaults>
</compile_context>

<pallas_src>
import functools
import math

import jax
import jax.numpy as jnp
from jax.experimental import pallas as pl
from jax.experimental.pallas import tpu as pltpu


# ----------------------------- in-kernel helpers -----------------------------

def _layer_norm(x, g, b, eps=1e-5):
    u = jnp.mean(x, axis=-1, keepdims=True)
    d = x - u
    s = jnp.mean(d * d, axis=-1, keepdims=True)
    # rsqrt rides the EUP slot instead of the VALU divide path.
    return d * jax.lax.rsqrt(s + eps) * g + b


def _gelu(x):
    return 0.5 * x * (1.0 + jnp.tanh(math.sqrt(2.0 / math.pi)
                                     * (x + 0.044715 * x ** 3)))


# ----------------------------- tiling / params helpers ------------------------

def _pick_row_tile(n, cap=256):
    # full array if small; otherwise fixed 256-row tiles + ragged (dropped) tail.
    return n if n <= cap else cap


def _pick_vocab_tile(v, cap=512):
    return v if v <= cap else cap


def _pick_kv_tile(s):
    if s <= 512:
        return s
    for t in (512, 256, 128):
        if s % t == 0:
            return t
    # TODO(synk): a ragged KV tail would need explicit masking of OOB keys in PV.
    return s


def _pick_hidden_tile(h4):
    if h4 <= 2048:
        return h4
    for t in (2048, 1024, 512, 256, 128):
        if h4 % t == 0:
            return t
    return h4


def _chip_vmem_bytes():
    # Real per-core VMEM: 128 MiB on v5e/v6e, 64 MiB on v7x.  Conservative
    # fallback if the trace-time query is unavailable.
    try:
        info = pltpu.get_tpu_info()
        for name in ("vmem_capacity_bytes", "vmem_size_bytes", "vmem_bytes"):
            v = getattr(info, name, None)
            if v:
                return int(v)
    except Exception:
        pass
    return 64 << 20


def _mk_params(sem, need_bytes):
    vmem = None
    if need_bytes > (12 << 20):      # default scoped limit covers small working sets
        cap = _chip_vmem_bytes()
        vmem = int(min(need_bytes + (8 << 20), (cap * 3) // 4))
    return pltpu.CompilerParams(dimension_semantics=sem, vmem_limit_bytes=vmem)


# --------------------------- q/k/v projection kernel ---------------------------
# Row-folded over B*S so the projection matmuls see full M tiles (not M=S).
# Outputs head-major (H, B*S, dh): the head relayout is paid once here.

def qkv_kernel(h_ref, wq_ref, wk_ref, wv_ref, bq_ref, bk_ref, bv_ref,
               q_ref, k_ref, v_ref, *, n_head):
    x = h_ref[...]                                        # (tm, D) bf16
    tm, D = x.shape
    dh = D // n_head

    def proj(w_ref, b_ref, scale):
        y = jnp.dot(x, w_ref[...], preferred_element_type=jnp.float32) + b_ref[...]
        if scale != 1.0:                                   # fold 1/sqrt(dh) into q
            y = y * scale
        return jnp.transpose(y.reshape(tm, n_head, dh), (1, 0, 2))

    q_ref[...] = proj(wq_ref, bq_ref, 1.0 / math.sqrt(dh)).astype(q_ref.dtype)
    k_ref[...] = proj(wk_ref, bk_ref, 1.0).astype(k_ref.dtype)
    v_ref[...] = proj(wv_ref, bv_ref, 1.0).astype(v_ref.dtype)


def run_qkv(h_flat, p, n_head):
    """h_flat: (B*S, D) bf16 -> q, k, v each (H, B*S, dh) bf16 (q pre-scaled)."""
    N, D = h_flat.shape
    dh = D // n_head
    tm = _pick_row_tile(N)
    wspec = lambda shape: pl.BlockSpec(shape, lambda i: (0,) * len(shape),
                                       pipeline_mode=pl.Buffered(1))
    oshape = jax.ShapeDtypeStruct((n_head, N, dh), jnp.bfloat16)
    ospec = pl.BlockSpec((n_head, tm, dh), lambda i: (0, i, 0))
    need = 3 * D * D * 2 + 3 * D * 4 + 2 * tm * D * 2 + 6 * tm * D * 2
    return pl.pallas_call(
        functools.partial(qkv_kernel, n_head=n_head),
        out_shape=[oshape, oshape, oshape],
        grid_spec=pltpu.PrefetchScalarGridSpec(
            num_scalar_prefetch=0,
            grid=(pl.cdiv(N, tm),),
            in_specs=[
                pl.BlockSpec((tm, D), lambda i: (i, 0)),          # h row tile
                wspec((D, D)), wspec((D, D)), wspec((D, D)),      # wq, wk, wv
                wspec((1, D)), wspec((1, D)), wspec((1, D)),      # bq, bk, bv
            ],
            out_specs=[ospec, ospec, ospec],
        ),
        compiler_params=_mk_params(("parallel",), need),
    )(h_flat, p["wq"], p["wk"], p["wv"], p["bq"], p["bk"], p["bv"])


# --------------- flash attention + c_proj + residual + ln_1 kernel --------------

def attn_kernel(q_ref, k_ref, v_ref, sm_ref, x_ref, pw_ref, pb_ref, g1_ref, b1_ref,
                n_ref, m_sc, l_sc, acc_sc):
    kv = pl.program_id(1)
    H, _, S, dh = q_ref.shape
    tkv = k_ref.shape[2]
    D = H * dh

    @pl.when(kv == 0)
    def _():
        m_sc[...] = jnp.full_like(m_sc, -1e30)
        l_sc[...] = jnp.zeros_like(l_sc)
        acc_sc[...] = jnp.zeros_like(acc_sc)

    qh = q_ref[:, 0]                                      # (H, S, dh) bf16
    kh = k_ref[:, 0]                                      # (H, tkv, dh)
    vh = v_ref[:, 0]

    s = jnp.einsum('hqd,hkd->hqk', qh, kh,
                   preferred_element_type=jnp.float32)    # (H, S, tkv) f32

    # causal mask (global key index) combined with the per-batch key mask.
    row = jax.lax.broadcasted_iota(jnp.int32, (S, tkv), 0)
    col = jax.lax.broadcasted_iota(jnp.int32, (S, tkv), 1) + kv * tkv
    mask = (col <= row) & (sm_ref[0] > 0.5)               # (S,tkv) & (1,tkv)
    s = jnp.where(mask[None], s, -1e9)

    m_prev = m_sc[...]
    m_new = jnp.maximum(m_prev, jnp.max(s, axis=-1, keepdims=True))
    alpha = jnp.exp(m_prev - m_new)
    p = jnp.exp(s - m_new)
    l_sc[...] = alpha * l_sc[...] + jnp.sum(p, axis=-1, keepdims=True)
    acc_sc[...] = alpha * acc_sc[...] + jnp.einsum(
        'hqk,hkd->hqd', p.astype(jnp.bfloat16), vh,
        preferred_element_type=jnp.float32)
    m_sc[...] = m_new

    @pl.when(kv == pl.num_programs(1) - 1)
    def _():
        o = acc_sc[...] * pl.reciprocal(l_sc[...], approx=True)     # (H,S,dh)
        a = jnp.transpose(o, (1, 0, 2)).reshape(S, D).astype(jnp.bfloat16)
        # fused attention output projection + residual + ln_1 (no HBM round trip)
        h1 = jnp.dot(a, pw_ref[...], preferred_element_type=jnp.float32) + pb_ref[...]
        resid = x_ref[0].astype(jnp.float32) + h1
        n_ref[0] = _layer_norm(resid, g1_ref[...], b1_ref[...]).astype(n_ref.dtype)


def run_attn(qh, kh, vh, sm3, x, p):
    """qh/kh/vh: (H,B,S,dh) bf16 (q pre-scaled), sm3: (B,1,S) f32, x: (B,S,D) bf16
       -> n = ln_1(x + c_proj(attn))  (B,S,D) bf16."""
    H, B, S, dh = qh.shape
    D = H * dh
    tkv = _pick_kv_tile(S)
    nkv = S // tkv
    cspec = lambda shape: pl.BlockSpec(shape, lambda b, kv: (0,) * len(shape),
                                       pipeline_mode=pl.Buffered(1))
    need = (D * D * 2 + 4 * D * 4
            + 2 * S * D * 2                       # q (per-batch)
            + 4 * tkv * D * 2                     # k, v tiles
            + 4 * S * D * 2                       # x residual + n output
            + S * D * 4 + 2 * H * S * 4           # acc + m/l scratch
            + H * S * tkv * 4)                    # score tile intermediate
    return pl.pallas_call(
        attn_kernel,
        out_shape=jax.ShapeDtypeStruct((B, S, D), jnp.bfloat16),
        grid_spec=pltpu.PrefetchScalarGridSpec(
            num_scalar_prefetch=0,
            grid=(B, nkv),
            in_specs=[
                pl.BlockSpec((H, 1, S, dh), lambda b, kv: (0, b, 0, 0)),    # q
                pl.BlockSpec((H, 1, tkv, dh), lambda b, kv: (0, b, kv, 0)),  # k
                pl.BlockSpec((H, 1, tkv, dh), lambda b, kv: (0, b, kv, 0)),  # v
                pl.BlockSpec((1, 1, tkv), lambda b, kv: (b, 0, kv)),         # seq mask
                pl.BlockSpec((1, S, D), lambda b, kv: (b, 0, 0)),            # residual x
                cspec((D, D)),                                               # c_proj w
                cspec((1, D)),                                               # c_proj b
                cspec((1, D)), cspec((1, D)),                                # ln_1 g, b
            ],
            out_specs=pl.BlockSpec((1, S, D), lambda b, kv: (b, 0, 0)),
            scratch_shapes=[pltpu.VMEM((H, S, 1), jnp.float32),
                            pltpu.VMEM((H, S, 1), jnp.float32),
                            pltpu.VMEM((H, S, dh), jnp.float32)],
        ),
        compiler_params=_mk_params(("parallel", "arbitrary"), need),
    )(qh, kh, vh, sm3, x, p["proj_w"], p["proj_b"], p["ln1_g"], p["ln1_b"])


# -------------------------- MLP (+ residual + ln_2) kernel ---------------------
# Row-folded over B*S; the 4*D hidden dim is tiled with a (tm,D) f32 accumulator.

def mlp_kernel(n_ref, fw_ref, fb_ref, p2w_ref, p2b_ref, g2_ref, b2_ref,
               out_ref, acc_sc):
    c = pl.program_id(1)

    @pl.when(c == 0)
    def _():
        acc_sc[...] = jnp.zeros_like(acc_sc)

    hfc = jnp.dot(n_ref[...], fw_ref[...],
                  preferred_element_type=jnp.float32) + fb_ref[...]
    hfc = _gelu(hfc)                                        # f32 (tm, th) chunk
    acc_sc[...] += jnp.dot(hfc.astype(jnp.bfloat16), p2w_ref[...],
                           preferred_element_type=jnp.float32)

    @pl.when(c == pl.num_programs(1) - 1)
    def _():
        m = acc_sc[...] + p2b_ref[...]
        nf = n_ref[...].astype(jnp.float32)
        out_ref[...] = _layer_norm(nf + m, g2_ref[...], b2_ref[...]).astype(out_ref.dtype)


def run_mlp(n_flat, p):
    """n_flat: (B*S, D) bf16 (ln_1 output) -> block output ln_2(n + mlp(n)) bf16."""
    N, D = n_flat.shape
    H4 = p["fc_w"].shape[1]
    tm = _pick_row_tile(N)
    th = _pick_hidden_tile(H4)
    cspec = lambda shape: pl.BlockSpec(shape, lambda i, c: (0,) * len(shape),
                                       pipeline_mode=pl.Buffered(1))
    need = (2 * tm * D * 2
            + 2 * (D * th + th * D) * 2 + 2 * th * 4        # streamed weight chunks
            + tm * th * 4                                   # hfc intermediate
            + tm * D * 4                                    # accumulator
            + 2 * tm * D * 2 + 3 * D * 4)
    return pl.pallas_call(
        mlp_kernel,
        out_shape=jax.ShapeDtypeStruct((N, D), jnp.bfloat16),
        grid_spec=pltpu.PrefetchScalarGridSpec(
            num_scalar_prefetch=0,
            grid=(pl.cdiv(N, tm), H4 // th),
            in_specs=[
                pl.BlockSpec((tm, D), lambda i, c: (i, 0)),   # n (resident across c)
                pl.BlockSpec((D, th), lambda i, c: (0, c)),   # c_fc w chunk
                pl.BlockSpec((1, th), lambda i, c: (0, c)),   # c_fc b chunk
                pl.BlockSpec((th, D), lambda i, c: (c, 0)),   # mlp c_proj w chunk
                cspec((1, D)),                                # mlp c_proj b
                cspec((1, D)), cspec((1, D)),                 # ln_2 g, b
            ],
            out_specs=pl.BlockSpec((tm, D), lambda i, c: (i, 0)),
            scratch_shapes=[pltpu.VMEM((tm, D), jnp.float32)],
        ),
        compiler_params=_mk_params(("parallel", "arbitrary"), need),
    )(n_flat, p["fc_w"], p["fc_b"], p["proj2_w"], p["proj2_b"], p["ln2_g"], p["ln2_b"])


# ------------------------------ LM head kernel --------------------------------
# Vocab-outer / rows-inner grid: each (tv,D) embedding tile is fetched once and
# stays resident across the row sweep; only the small h tiles re-stream.

def lm_head_kernel(h_ref, w_ref, out_ref):
    out_ref[...] = jax.lax.dot_general(
        h_ref[...], w_ref[...], (((1,), (1,)), ((), ())),
        preferred_element_type=jnp.float32).astype(out_ref.dtype)


def run_lm_head(h_flat, embed_bf):
    """h_flat: (B*S, D) bf16, embed_bf: (V, D) bf16 -> logits (B*S, V) bf16."""
    N, D = h_flat.shape
    V = embed_bf.shape[0]
    tm = _pick_row_tile(N)
    tv = _pick_vocab_tile(V)
    need = 2 * tm * D * 2 + 2 * tv * D * 2 + 2 * tm * tv * 2
    return pl.pallas_call(
        lm_head_kernel,
        out_shape=jax.ShapeDtypeStruct((N, V), jnp.bfloat16),
        grid_spec=pltpu.PrefetchScalarGridSpec(
            num_scalar_prefetch=0,
            grid=(pl.cdiv(V, tv), pl.cdiv(N, tm)),            # vocab outer, rows inner
            in_specs=[pl.BlockSpec((tm, D), lambda j, i: (i, 0)),
                      pl.BlockSpec((tv, D), lambda j, i: (j, 0))],
            out_specs=pl.BlockSpec((tm, tv), lambda j, i: (i, j)),
        ),
        compiler_params=_mk_params(("parallel", "parallel"), need),
    )(h_flat, embed_bf)


# ------------------------------- full model -----------------------------------

def _prep_layer(p):
    """Split fused qkv weights into aligned (D,D) slabs; matmul weights bf16,
    biases / LayerNorm params stay f32."""
    D = p["proj_w"].shape[0]
    bf = lambda w: w.astype(jnp.bfloat16)
    return dict(
        wq=bf(p["attn_w"][:, :D]), wk=bf(p["attn_w"][:, D:2 * D]),
        wv=bf(p["attn_w"][:, 2 * D:]),
        bq=p["attn_b"][:, :D], bk=p["attn_b"][:, D:2 * D], bv=p["attn_b"][:, 2 * D:],
        proj_w=bf(p["proj_w"]), proj_b=p["proj_b"],
        ln1_g=p["ln1_g"], ln1_b=p["ln1_b"],
        fc_w=bf(p["fc_w"]), fc_b=p["fc_b"],
        proj2_w=bf(p["proj2_w"]), proj2_b=p["proj2_b"],
        ln2_g=p["ln2_g"], ln2_b=p["ln2_b"],
    )


def lm_model_forward(x_idx, seq_mask, embed_w, layers, n_head):
    """LMModel.forward (return_probs=False, return_acts=False, dropouts=0)."""
    B, S, K = x_idx.shape
    D = embed_w.shape[1]
    dh = D // n_head
    N = B * S
    # TODO(synk): arbitrary-index embedding gather+sum has no clean tiled Pallas form; kept in XLA.
    h = jnp.take(embed_w, x_idx, axis=0).sum(axis=2).astype(jnp.bfloat16)  # (B,S,D)
    sm3 = seq_mask.reshape(B, 1, S).astype(jnp.float32)
    prepped = [_prep_layer(p) for p in layers]
    for p in prepped:
        q, k, v = run_qkv(h.reshape(N, D), p, n_head)          # (H, N, dh) bf16 each
        qh = q.reshape(n_head, B, S, dh)                        # free reshapes
        kh = k.reshape(n_head, B, S, dh)
        vh = v.reshape(n_head, B, S, dh)
        n = run_attn(qh, kh, vh, sm3, h, p)                     # (B, S, D) bf16
        h = run_mlp(n.reshape(N, D), p).reshape(B, S, D)        # (B, S, D) bf16
    logits = run_lm_head(h.reshape(N, D), embed_w.astype(jnp.bfloat16))
    return logits.reshape(B, S, -1)                             # (B, S, V) bf16


# ------------------------------ pure-JAX reference ----------------------------

def ref_block(x, sm, p, n_head):
    B, S, D = x.shape
    dh = D // n_head
    qkv = x @ p["attn_w"] + p["attn_b"][0]
    q, k, v = jnp.split(qkv, 3, axis=-1)
    sh = lambda t: t.reshape(B, S, n_head, dh).transpose(0, 2, 1, 3)
    q, k, v = sh(q), sh(k), sh(v)
    w = jnp.einsum("bhqd,bhkd->bhqk", q, k) / math.sqrt(dh)
    causal = jnp.tril(jnp.ones((S, S), jnp.float32))
    mask = causal[None, None] * sm[:, None, None, :]
    w = w * mask + (-1e9) * (1.0 - mask)
    w = jax.nn.softmax(w, axis=-1)
    a = jnp.einsum("bhqk,bhkd->bhqd", w, v)
    a = a.transpose(0, 2, 1, 3).reshape(B, S, D)
    a = a @ p["proj_w"] + p["proj_b"][0]
    n = _layer_norm(x + a, p["ln1_g"][0], p["ln1_b"][0])
    hfc = _gelu(n @ p["fc_w"] + p["fc_b"][0])
    m = hfc @ p["proj2_w"] + p["proj2_b"][0]
    return _layer_norm(n + m, p["ln2_g"][0], p["ln2_b"][0])


def ref_forward(x_idx, seq_mask, embed_w, layers, n_head):
    with jax.default_matmul_precision("highest"):
        h = jnp.take(embed_w, x_idx, axis=0).sum(axis=2)
        for p in layers:
            h = ref_block(h, seq_mask.astype(jnp.float32), p, n_head)
        return h @ embed_w.T


# ----------------------------------- main --------------------------------------

if __name__ == "__main__":
    # cfg: hSize=32, nH=4, nL=2, afn='gelu', all dropouts 0 (inference)
    B, S, K = 2, 8, 2
    D, H, L, V = 32, 4, 2, 512

    key = jax.random.PRNGKey(0)
    key, ek = jax.random.split(key)
    embed_w = 0.02 * jax.random.normal(ek, (V, D), jnp.float32)

    layers = []
    for _ in range(L):
        key, k1, k2, k3, k4 = jax.random.split(key, 5)
        layers.append(dict(
            attn_w=0.02 * jax.random.normal(k1, (D, 3 * D), jnp.float32),
            attn_b=jnp.zeros((1, 3 * D), jnp.float32),
            proj_w=0.02 * jax.random.normal(k2, (D, D), jnp.float32),
            proj_b=jnp.zeros((1, D), jnp.float32),
            ln1_g=jnp.ones((1, D), jnp.float32),
            ln1_b=jnp.zeros((1, D), jnp.float32),
            fc_w=0.02 * jax.random.normal(k3, (D, 4 * D), jnp.float32),
            fc_b=jnp.zeros((1, 4 * D), jnp.float32),
            proj2_w=0.02 * jax.random.normal(k4, (4 * D, D), jnp.float32),
            proj2_b=jnp.zeros((1, D), jnp.float32),
            ln2_g=jnp.ones((1, D), jnp.float32),
            ln2_b=jnp.zeros((1, D), jnp.float32),
        ))

    key, xk = jax.random.split(key)
    x_idx = jax.random.randint(xk, (B, S, K), 0, V, dtype=jnp.int32)
    seq_mask = jnp.ones((B, S), jnp.float32)

    fwd = jax.jit(functools.partial(lm_model_forward, n_head=H))
    logits = jax.block_until_ready(fwd(x_idx, seq_mask, embed_w, layers))
    assert logits.shape == (B, S, V), logits.shape

    ref = jax.block_until_ready(ref_forward(x_idx, seq_mask, embed_w, layers, H))
    # bf16 weights/activations/logits (f32 accumulation) -> looser tolerance than f32.
    logits_f32 = logits.astype(jnp.float32)
    assert jnp.allclose(logits_f32, ref, atol=2e-2, rtol=2e-2), \
        float(jnp.max(jnp.abs(logits_f32 - ref)))

    print("KERNEL_OK")
</pallas_src>

<mosaic_0001>
module attributes {stable_mosaic.version = 11 : i64} {
  func.func @qkv_kernel(%arg0: i32, %arg1: memref<16x32xbf16, #tpu.memory_space<vmem>>, %arg2: memref<32x32xbf16, #tpu.memory_space<vmem>>, %arg3: memref<32x32xbf16, #tpu.memory_space<vmem>>, %arg4: memref<32x32xbf16, #tpu.memory_space<vmem>>, %arg5: memref<1x32xf32, #tpu.memory_space<vmem>>, %arg6: memref<1x32xf32, #tpu.memory_space<vmem>>, %arg7: memref<1x32xf32, #tpu.memory_space<vmem>>, %arg8: memref<4x16x8xbf16, #tpu.memory_space<vmem>>, %arg9: memref<4x16x8xbf16, #tpu.memory_space<vmem>>, %arg10: memref<4x16x8xbf16, #tpu.memory_space<vmem>>) attributes {dimension_semantics = [#tpu.dimension_semantics<parallel>], iteration_bounds = array<i64: 1>, scalar_prefetch = 0 : i64, scratch_operands = 0 : i64, tpu.core_type = #tpu.core_type<tc>, window_params = [{transform_indices = @transform_0, window_bounds = array<i64: 16, 32>}, {pipeline_mode = #tpu.pipeline_mode<synchronous>, transform_indices = @transform_1, window_bounds = array<i64: 32, 32>}, {pipeline_mode = #tpu.pipeline_mode<synchronous>, transform_indices = @transform_2, window_bounds = array<i64: 32, 32>}, {pipeline_mode = #tpu.pipeline_mode<synchronous>, transform_indices = @transform_3, window_bounds = array<i64: 32, 32>}, {pipeline_mode = #tpu.pipeline_mode<synchronous>, transform_indices = @transform_4, window_bounds = array<i64: 1, 32>}, {pipeline_mode = #tpu.pipeline_mode<synchronous>, transform_indices = @transform_5, window_bounds = array<i64: 1, 32>}, {pipeline_mode = #tpu.pipeline_mode<synchronous>, transform_indices = @transform_6, window_bounds = array<i64: 1, 32>}, {transform_indices = @transform_7, window_bounds = array<i64: 4, 16, 8>}, {transform_indices = @transform_8, window_bounds = array<i64: 4, 16, 8>}, {transform_indices = @transform_9, window_bounds = array<i64: 4, 16, 8>}]} {
    %c0 = arith.constant 0 : index
    %c0_0 = arith.constant 0 : index
    %0 = vector.load %arg1[%c0, %c0_0] : memref<16x32xbf16, #tpu.memory_space<vmem>>, vector<16x32xbf16>
    %c0_1 = arith.constant 0 : index
    %c0_2 = arith.constant 0 : index
    %1 = vector.load %arg2[%c0_1, %c0_2] : memref<32x32xbf16, #tpu.memory_space<vmem>>, vector<32x32xbf16>
    %cst = arith.constant dense<0.000000e+00> : vector<16x32xf32>
    %2 = tpu.matmul %0, %1, %cst {dimension_numbers = #tpu.dot_dimension_numbers<[1], [0], [0], [1], [0, 0, 1, 1], [], []>} : vector<16x32xbf16>, vector<32x32xbf16>, vector<16x32xf32> -> vector<16x32xf32>
    %c0_3 = arith.constant 0 : index
    %c0_4 = arith.constant 0 : index
    %3 = vector.load %arg5[%c0_3, %c0_4] : memref<1x32xf32, #tpu.memory_space<vmem>>, vector<1x32xf32>
    %4 = vector.broadcast %3 : vector<1x32xf32> to vector<16x32xf32>
    %5 = arith.addf %2, %4 : vector<16x32xf32>
    %cst_5 = arith.constant 0.353553385 : f32
    %6 = vector.broadcast %cst_5 : f32 to vector<16x32xf32>
    %7 = arith.mulf %5, %6 : vector<16x32xf32>
    %8 = vector.shape_cast %7 : vector<16x32xf32> to vector<16x4x8xf32>
    %9 = tpu.transpose %8, [1, 0, 2] : vector<16x4x8xf32> -> vector<4x16x8xf32>
    %10 = arith.truncf %9 : vector<4x16x8xf32> to vector<4x16x8xbf16>
    %c0_6 = arith.constant 0 : index
    %c0_7 = arith.constant 0 : index
    %c0_8 = arith.constant 0 : index
    %11 = vector.load %arg8[%c0_6, %c0_7, %c0_8] : memref<4x16x8xbf16, #tpu.memory_space<vmem>>, vector<4x16x8xbf16>
    tpu.vector_store %arg8[%c0_6, %c0_7, %c0_8], %10 {strides = array<i32>} : memref<4x16x8xbf16, #tpu.memory_space<vmem>>, vector<4x16x8xbf16>,
    %c0_9 = arith.constant 0 : index
    %c0_10 = arith.constant 0 : index
    %12 = vector.load %arg3[%c0_9, %c0_10] : memref<32x32xbf16, #tpu.memory_space<vmem>>, vector<32x32xbf16>
    %cst_11 = arith.constant dense<0.000000e+00> : vector<16x32xf32>
    %13 = tpu.matmul %0, %12, %cst_11 {dimension_numbers = #tpu.dot_dimension_numbers<[1], [0], [0], [1], [0, 0, 1, 1], [], []>} : vector<16x32xbf16>, vector<32x32xbf16>, vector<16x32xf32> -> vector<16x32xf32>
    %c0_12 = arith.constant 0 : index
    %c0_13 = arith.constant 0 : index
    %14 = vector.load %arg6[%c0_12, %c0_13] : memref<1x32xf32, #tpu.memory_space<vmem>>, vector<1x32xf32>
    %15 = vector.broadcast %14 : vector<1x32xf32> to vector<16x32xf32>
    %16 = arith.addf %13, %15 : vector<16x32xf32>
    %17 = vector.shape_cast %16 : vector<16x32xf32> to vector<16x4x8xf32>
    %18 = tpu.transpose %17, [1, 0, 2] : vector<16x4x8xf32> -> vector<4x16x8xf32>
    %19 = arith.truncf %18 : vector<4x16x8xf32> to vector<4x16x8xbf16>
    %c0_14 = arith.constant 0 : index
    %c0_15 = arith.constant 0 : index
    %c0_16 = arith.constant 0 : index
    %20 = vector.load %arg9[%c0_14, %c0_15, %c0_16] : memref<4x16x8xbf16, #tpu.memory_space<vmem>>, vector<4x16x8xbf16>
    tpu.vector_store %arg9[%c0_14, %c0_15, %c0_16], %19 {strides = array<i32>} : memref<4x16x8xbf16, #tpu.memory_space<vmem>>, vector<4x16x8xbf16>,
    %c0_17 = arith.constant 0 : index
    %c0_18 = arith.constant 0 : index
    %21 = vector.load %arg4[%c0_17, %c0_18] : memref<32x32xbf16, #tpu.memory_space<vmem>>, vector<32x32xbf16>
    %cst_19 = arith.constant dense<0.000000e+00> : vector<16x32xf32>
    %22 = tpu.matmul %0, %21, %cst_19 {dimension_numbers = #tpu.dot_dimension_numbers<[1], [0], [0], [1], [0, 0, 1, 1], [], []>} : vector<16x32xbf16>, vector<32x32xbf16>, vector<16x32xf32> -> vector<16x32xf32>
    %c0_20 = arith.constant 0 : index
    %c0_21 = arith.constant 0 : index
    %23 = vector.load %arg7[%c0_20, %c0_21] : memref<1x32xf32, #tpu.memory_space<vmem>>, vector<1x32xf32>
    %24 = vector.broadcast %23 : vector<1x32xf32> to vector<16x32xf32>
    %25 = arith.addf %22, %24 : vector<16x32xf32>
    %26 = vector.shape_cast %25 : vector<16x32xf32> to vector<16x4x8xf32>
    %27 = tpu.transpose %26, [1, 0, 2] : vector<16x4x8xf32> -> vector<4x16x8xf32>
    %28 = arith.truncf %27 : vector<4x16x8xf32> to vector<4x16x8xbf16>
    %c0_22 = arith.constant 0 : index
    %c0_23 = arith.constant 0 : index
    %c0_24 = arith.constant 0 : index
    %29 = vector.load %arg10[%c0_22, %c0_23, %c0_24] : memref<4x16x8xbf16, #tpu.memory_space<vmem>>, vector<4x16x8xbf16>
    tpu.vector_store %arg10[%c0_22, %c0_23, %c0_24], %28 {strides = array<i32>} : memref<4x16x8xbf16, #tpu.memory_space<vmem>>, vector<4x16x8xbf16>,
    return
  }
  func.func @transform_0(%arg0: i32) -> (i32, i32) {
    %c0_i32 = arith.constant 0 : i32
    %c0_i32_0 = arith.constant 0 : i32
    return %arg0, %c0_i32 : i32, i32
  }
  func.func @transform_1(%arg0: i32) -> (i32, i32) {
    %c0_i32 = arith.constant 0 : i32
    %c0_i32_0 = arith.constant 0 : i32
    %c0_i32_1 = arith.constant 0 : i32
    return %c0_i32, %c0_i32_0 : i32, i32
  }
  func.func @transform_2(%arg0: i32) -> (i32, i32) {
    %c0_i32 = arith.constant 0 : i32
    %c0_i32_0 = arith.constant 0 : i32
    %c0_i32_1 = arith.constant 0 : i32
    return %c0_i32, %c0_i32_0 : i32, i32
  }
  func.func @transform_3(%arg0: i32) -> (i32, i32) {
    %c0_i32 = arith.constant 0 : i32
    %c0_i32_0 = arith.constant 0 : i32
    %c0_i32_1 = arith.constant 0 : i32
    return %c0_i32, %c0_i32_0 : i32, i32
  }
  func.func @transform_4(%arg0: i32) -> (i32, i32) {
    %c0_i32 = arith.constant 0 : i32
    %c0_i32_0 = arith.constant 0 : i32
    %c0_i32_1 = arith.constant 0 : i32
    return %c0_i32, %c0_i32_0 : i32, i32
  }
  func.func @transform_5(%arg0: i32) -> (i32, i32) {
    %c0_i32 = arith.constant 0 : i32
    %c0_i32_0 = arith.constant 0 : i32
    %c0_i32_1 = arith.constant 0 : i32
    return %c0_i32, %c0_i32_0 : i32, i32
  }
  func.func @transform_6(%arg0: i32) -> (i32, i32) {
    %c0_i32 = arith.constant 0 : i32
    %c0_i32_0 = arith.constant 0 : i32
    %c0_i32_1 = arith.constant 0 : i32
    return %c0_i32, %c0_i32_0 : i32, i32
  }
  func.func @transform_7(%arg0: i32) -> (i32, i32, i32) {
    %c0_i32 = arith.constant 0 : i32
    %c0_i32_0 = arith.constant 0 : i32
    %c0_i32_1 = arith.constant 0 : i32
    return %c0_i32, %arg0, %c0_i32_0 : i32, i32, i32
  }
  func.func @transform_8(%arg0: i32) -> (i32, i32, i32) {
    %c0_i32 = arith.constant 0 : i32
    %c0_i32_0 = arith.constant 0 : i32
    %c0_i32_1 = arith.constant 0 : i32
    return %c0_i32, %arg0, %c0_i32_0 : i32, i32, i32
  }
  func.func @transform_9(%arg0: i32) -> (i32, i32, i32) {
    %c0_i32 = arith.constant 0 : i32
    %c0_i32_0 = arith.constant 0 : i32
    %c0_i32_1 = arith.constant 0 : i32
    return %c0_i32, %arg0, %c0_i32_0 : i32, i32, i32
  }
}

module attributes {stable_mosaic.version = 11 : i64} {
  func.func @mlp_kernel(%arg0: i32, %arg1: i32, %arg2: memref<16x32xbf16, #tpu.memory_space<vmem>>, %arg3: memref<32x128xbf16, #tpu.memory_space<vmem>>, %arg4: memref<1x128xf32, #tpu.memory_space<vmem>>, %arg5: memref<128x32xbf16, #tpu.memory_space<vmem>>, %arg6: memref<1x32xf32, #tpu.memory_space<vmem>>, %arg7: memref<1x32xf32, #tpu.memory_space<vmem>>, %arg8: memref<1x32xf32, #tpu.memory_space<vmem>>, %arg9: memref<16x32xbf16, #tpu.memory_space<vmem>>, %arg10: memref<16x32xf32, #tpu.memory_space<vmem>>) attributes {dimension_semantics = [#tpu.dimension_semantics<parallel>, #tpu.dimension_semantics<arbitrary>], iteration_bounds = array<i64: 1, 1>, scalar_prefetch = 0 : i64, scratch_operands = 1 : i64, tpu.core_type = #tpu.core_type<tc>, window_params = [{transform_indices = @transform_0, window_bounds = array<i64: 16, 32>}, {transform_indices = @transform_1, window_bounds = array<i64: 32, 128>}, {transform_indices = @transform_2, window_bounds = array<i64: 1, 128>}, {transform_indices = @transform_3, window_bounds = array<i64: 128, 32>}, {pipeline_mode = #tpu.pipeline_mode<synchronous>, transform_indices = @transform_4, window_bounds = array<i64: 1, 32>}, {pipeline_mode = #tpu.pipeline_mode<synchronous>, transform_indices = @transform_5, window_bounds = array<i64: 1, 32>}, {pipeline_mode = #tpu.pipeline_mode<synchronous>, transform_indices = @transform_6, window_bounds = array<i64: 1, 32>}, {transform_indices = @transform_7, window_bounds = array<i64: 16, 32>}]} {
    %c0_i32 = arith.constant 0 : i32
    %0 = arith.cmpi eq, %arg1, %c0_i32 : i32
    %1 = arith.extui %0 : i1 to i32
    %c0_i32_0 = arith.constant 0 : i32
    %2 = arith.cmpi ne, %1, %c0_i32_0 : i32
    scf.if %2 {
      %cst_19 = arith.constant 0.000000e+00 : f32
      %31 = vector.broadcast %cst_19 : f32 to vector<16x32xf32>
      %c0_20 = arith.constant 0 : index
      %c0_21 = arith.constant 0 : index
      %32 = vector.load %arg10[%c0_20, %c0_21] : memref<16x32xf32, #tpu.memory_space<vmem>>, vector<16x32xf32>
      tpu.vector_store %arg10[%c0_20, %c0_21], %31 {strides = array<i32>} : memref<16x32xf32, #tpu.memory_space<vmem>>, vector<16x32xf32>,
    } else {
    }
    %c0 = arith.constant 0 : index
    %c0_1 = arith.constant 0 : index
    %3 = vector.load %arg2[%c0, %c0_1] : memref<16x32xbf16, #tpu.memory_space<vmem>>, vector<16x32xbf16>
    %c0_2 = arith.constant 0 : index
    %c0_3 = arith.constant 0 : index
    %4 = vector.load %arg3[%c0_2, %c0_3] : memref<32x128xbf16, #tpu.memory_space<vmem>>, vector<32x128xbf16>
    %cst = arith.constant dense<0.000000e+00> : vector<16x128xf32>
    %5 = tpu.matmul %3, %4, %cst {dimension_numbers = #tpu.dot_dimension_numbers<[1], [0], [0], [1], [0, 0, 1, 1], [], []>} : vector<16x32xbf16>, vector<32x128xbf16>, vector<16x128xf32> -> vector<16x128xf32>
    %c0_4 = arith.constant 0 : index
    %c0_5 = arith.constant 0 : index
    %6 = vector.load %arg4[%c0_4, %c0_5] : memref<1x128xf32, #tpu.memory_space<vmem>>, vector<1x128xf32>
    %7 = vector.broadcast %6 : vector<1x128xf32> to vector<16x128xf32>
    %8 = arith.addf %5, %7 : vector<16x128xf32>
    %cst_6 = arith.constant 5.000000e-01 : f32
    %9 = vector.broadcast %cst_6 : f32 to vector<16x128xf32>
    %10 = arith.mulf %9, %8 : vector<16x128xf32>
    %11 = arith.mulf %8, %8 : vector<16x128xf32>
    %12 = arith.mulf %8, %11 : vector<16x128xf32>
    %cst_7 = arith.constant 4.471500e-02 : f32
    %13 = vector.broadcast %cst_7 : f32 to vector<16x128xf32>
    %14 = arith.mulf %13, %12 : vector<16x128xf32>
    %15 = arith.addf %8, %14 : vector<16x128xf32>
    %cst_8 = arith.constant 0.797884583 : f32
    %16 = vector.broadcast %cst_8 : f32 to vector<16x128xf32>
    %17 = arith.mulf %16, %15 : vector<16x128xf32>
    %18 = math.tanh %17 : vector<16x128xf32>
    %cst_9 = arith.constant 1.000000e+00 : f32
    %19 = vector.broadcast %cst_9 : f32 to vector<16x128xf32>
    %20 = arith.addf %19, %18 : vector<16x128xf32>
    %21 = arith.mulf %10, %20 : vector<16x128xf32>
    %c0_10 = arith.constant 0 : index
    %c0_11 = arith.constant 0 : index
    %22 = vector.load %arg10[%c0_10, %c0_11] : memref<16x32xf32, #tpu.memory_space<vmem>>, vector<16x32xf32>
    %23 = arith.truncf %21 : vector<16x128xf32> to vector<16x128xbf16>
    %c0_12 = arith.constant 0 : index
    %c0_13 = arith.constant 0 : index
    %24 = vector.load %arg5[%c0_12, %c0_13] : memref<128x32xbf16, #tpu.memory_space<vmem>>, vector<128x32xbf16>
    %cst_14 = arith.constant dense<0.000000e+00> : vector<16x32xf32>
    %25 = tpu.matmul %23, %24, %cst_14 {dimension_numbers = #tpu.dot_dimension_numbers<[1], [0], [0], [1], [0, 0, 1, 1], [], []>} : vector<16x128xbf16>, vector<128x32xbf16>, vector<16x32xf32> -> vector<16x32xf32>
    %26 = arith.addf %22, %25 : vector<16x32xf32>
    %c0_15 = arith.constant 0 : index
    %c0_16 = arith.constant 0 : index
    %27 = vector.load %arg10[%c0_15, %c0_16] : memref<16x32xf32, #tpu.memory_space<vmem>>, vector<16x32xf32>
    tpu.vector_store %arg10[%c0_15, %c0_16], %26 {strides = array<i32>} : memref<16x32xf32, #tpu.memory_space<vmem>>, vector<16x32xf32>,
    %c0_i32_17 = arith.constant 0 : i32
    %28 = arith.cmpi eq, %arg1, %c0_i32_17 : i32
    %29 = arith.extui %28 : i1 to i32
    %c0_i32_18 = arith.constant 0 : i32
    %30 = arith.cmpi ne, %29, %c0_i32_18 : i32
    scf.if %30 {
      %c0_19 = arith.constant 0 : index
      %c0_20 = arith.constant 0 : index
      %31 = vector.load %arg10[%c0_19, %c0_20] : memref<16x32xf32, #tpu.memory_space<vmem>>, vector<16x32xf32>
      %c0_21 = arith.constant 0 : index
      %c0_22 = arith.constant 0 : index
      %32 = vector.load %arg6[%c0_21, %c0_22] : memref<1x32xf32, #tpu.memory_space<vmem>>, vector<1x32xf32>
      %33 = vector.broadcast %32 : vector<1x32xf32> to vector<16x32xf32>
      %34 = arith.addf %31, %33 : vector<16x32xf32>
      %c0_23 = arith.constant 0 : index
      %c0_24 = arith.constant 0 : index
      %35 = vector.load %arg2[%c0_23, %c0_24] : memref<16x32xbf16, #tpu.memory_space<vmem>>, vector<16x32xbf16>
      %36 = arith.extf %35 : vector<16x32xbf16> to vector<16x32xf32>
      %37 = arith.addf %36, %34 : vector<16x32xf32>
      %c0_25 = arith.constant 0 : index
      %c0_26 = arith.constant 0 : index
      %38 = vector.load %arg7[%c0_25, %c0_26] : memref<1x32xf32, #tpu.memory_space<vmem>>, vector<1x32xf32>
      %c0_27 = arith.constant 0 : index
      %c0_28 = arith.constant 0 : index
      %39 = vector.load %arg8[%c0_27, %c0_28] : memref<1x32xf32, #tpu.memory_space<vmem>>, vector<1x32xf32>
      %cst_29 = arith.constant dense<0.000000e+00> : vector<16xf32>
      %40 = vector.multi_reduction <add>, %37, %cst_29 [1] : vector<16x32xf32> to vector<16xf32>
      %41 = vector.shape_cast %40 : vector<16xf32> to vector<16x1xf32>
      %cst_30 = arith.constant 3.200000e+01 : f32
      %42 = vector.broadcast %cst_30 : f32 to vector<16x1xf32>
      %43 = arith.divf %41, %42 : vector<16x1xf32>
      %44 = vector.broadcast %43 : vector<16x1xf32> to vector<16x32xf32>
      %45 = arith.subf %37, %44 : vector<16x32xf32>
      %46 = arith.mulf %45, %45 : vector<16x32xf32>
      %cst_31 = arith.constant dense<0.000000e+00> : vector<16xf32>
      %47 = vector.multi_reduction <add>, %46, %cst_31 [1] : vector<16x32xf32> to vector<16xf32>
      %48 = vector.shape_cast %47 : vector<16xf32> to vector<16x1xf32>
      %cst_32 = arith.constant 3.200000e+01 : f32
      %49 = vector.broadcast %cst_32 : f32 to vector<16x1xf32>
      %50 = arith.divf %48, %49 : vector<16x1xf32>
      %cst_33 = arith.constant 9.99999974E-6 : f32
      %51 = vector.broadcast %cst_33 : f32 to vector<16x1xf32>
      %52 = arith.addf %50, %51 : vector<16x1xf32>
      %53 = math.rsqrt %52 : vector<16x1xf32>
      %54 = vector.broadcast %53 : vector<16x1xf32> to vector<16x32xf32>
      %55 = arith.mulf %45, %54 : vector<16x32xf32>
      %56 = vector.broadcast %38 : vector<1x32xf32> to vector<16x32xf32>
      %57 = arith.mulf %55, %56 : vector<16x32xf32>
      %58 = vector.broadcast %39 : vector<1x32xf32> to vector<16x32xf32>
      %59 = arith.addf %57, %58 : vector<16x32xf32>
      %60 = arith.truncf %59 : vector<16x32xf32> to vector<16x32xbf16>
      %c0_34 = arith.constant 0 : index
      %c0_35 = arith.constant 0 : index
      %61 = vector.load %arg9[%c0_34, %c0_35] : memref<16x32xbf16, #tpu.memory_space<vmem>>, vector<16x32xbf16>
      tpu.vector_store %arg9[%c0_34, %c0_35], %60 {strides = array<i32>} : memref<16x32xbf16, #tpu.memory_space<vmem>>, vector<16x32xbf16>,
    } else {
    }
    return
  }
  func.func @transform_0(%arg0: i32, %arg1: i32) -> (i32, i32) {
    %c0_i32 = arith.constant 0 : i32
    %c0_i32_0 = arith.constant 0 : i32
    return %arg0, %c0_i32 : i32, i32
  }
  func.func @transform_1(%arg0: i32, %arg1: i32) -> (i32, i32) {
    %c0_i32 = arith.constant 0 : i32
    %c0_i32_0 = arith.constant 0 : i32
    return %c0_i32, %arg1 : i32, i32
  }
  func.func @transform_2(%arg0: i32, %arg1: i32) -> (i32, i32) {
    %c0_i32 = arith.constant 0 : i32
    %c0_i32_0 = arith.constant 0 : i32
    return %c0_i32, %arg1 : i32, i32
  }
  func.func @transform_3(%arg0: i32, %arg1: i32) -> (i32, i32) {
    %c0_i32 = arith.constant 0 : i32
    %c0_i32_0 = arith.constant 0 : i32
    return %arg1, %c0_i32 : i32, i32
  }
  func.func @transform_4(%arg0: i32, %arg1: i32) -> (i32, i32) {
    %c0_i32 = arith.constant 0 : i32
    %c0_i32_0 = arith.constant 0 : i32
    %c0_i32_1 = arith.constant 0 : i32
    return %c0_i32, %c0_i32_0 : i32, i32
  }
  func.func @transform_5(%arg0: i32, %arg1: i32) -> (i32, i32) {
    %c0_i32 = arith.constant 0 : i32
    %c0_i32_0 = arith.constant 0 : i32
    %c0_i32_1 = arith.constant 0 : i32
    return %c0_i32, %c0_i32_0 : i32, i32
  }
  func.func @transform_6(%arg0: i32, %arg1: i32) -> (i32, i32) {
    %c0_i32 = arith.constant 0 : i32
    %c0_i32_0 = arith.constant 0 : i32
    %c0_i32_1 = arith.constant 0 : i32
    return %c0_i32, %c0_i32_0 : i32, i32
  }
  func.func @transform_7(%arg0: i32, %arg1: i32) -> (i32, i32) {
    %c0_i32 = arith.constant 0 : i32
    %c0_i32_0 = arith.constant 0 : i32
    return %arg0, %c0_i32 : i32, i32
  }
}

module attributes {stable_mosaic.version = 11 : i64} {
  func.func @attn_kernel(%arg0: i32, %arg1: i32, %arg2: memref<4x1x8x8xbf16, #tpu.memory_space<vmem>>, %arg3: memref<4x1x8x8xbf16, #tpu.memory_space<vmem>>, %arg4: memref<4x1x8x8xbf16, #tpu.memory_space<vmem>>, %arg5: memref<1x1x8xf32, #tpu.memory_space<vmem>>, %arg6: memref<1x8x32xbf16, #tpu.memory_space<vmem>>, %arg7: memref<32x32xbf16, #tpu.memory_space<vmem>>, %arg8: memref<1x32xf32, #tpu.memory_space<vmem>>, %arg9: memref<1x32xf32, #tpu.memory_space<vmem>>, %arg10: memref<1x32xf32, #tpu.memory_space<vmem>>, %arg11: memref<1x8x32xbf16, #tpu.memory_space<vmem>>, %arg12: memref<4x8x1xf32, #tpu.memory_space<vmem>>, %arg13: memref<4x8x1xf32, #tpu.memory_space<vmem>>, %arg14: memref<4x8x8xf32, #tpu.memory_space<vmem>>) attributes {dimension_semantics = [#tpu.dimension_semantics<parallel>, #tpu.dimension_semantics<arbitrary>], iteration_bounds = array<i64: 2, 1>, scalar_prefetch = 0 : i64, scratch_operands = 3 : i64, tpu.core_type = #tpu.core_type<tc>, window_params = [{transform_indices = @transform_0, window_bounds = array<i64: 4, 1, 8, 8>}, {transform_indices = @transform_1, window_bounds = array<i64: 4, 1, 8, 8>}, {transform_indices = @transform_2, window_bounds = array<i64: 4, 1, 8, 8>}, {transform_indices = @transform_3, window_bounds = array<i64: 1, 1, 8>}, {transform_indices = @transform_4, window_bounds = array<i64: 1, 8, 32>}, {pipeline_mode = #tpu.pipeline_mode<synchronous>, transform_indices = @transform_5, window_bounds = array<i64: 32, 32>}, {pipeline_mode = #tpu.pipeline_mode<synchronous>, transform_indices = @transform_6, window_bounds = array<i64: 1, 32>}, {pipeline_mode = #tpu.pipeline_mode<synchronous>, transform_indices = @transform_7, window_bounds = array<i64: 1, 32>}, {pipeline_mode = #tpu.pipeline_mode<synchronous>, transform_indices = @transform_8, window_bounds = array<i64: 1, 32>}, {transform_indices = @transform_9, window_bounds = array<i64: 1, 8, 32>}]} {
    %c0_i32 = arith.constant 0 : i32
    %0 = arith.cmpi eq, %arg1, %c0_i32 : i32
    %1 = arith.extui %0 : i1 to i32
    %c0_i32_0 = arith.constant 0 : i32
    %2 = arith.cmpi ne, %1, %c0_i32_0 : i32
    scf.if %2 {
      %cst_40 = arith.constant -1.000000e+30 : f32
      %53 = vector.broadcast %cst_40 : f32 to vector<4x8x1xf32>
      %c0_41 = arith.constant 0 : index
      %c0_42 = arith.constant 0 : index
      %c0_43 = arith.constant 0 : index
      %54 = vector.load %arg12[%c0_41, %c0_42, %c0_43] : memref<4x8x1xf32, #tpu.memory_space<vmem>>, vector<4x8x1xf32>
      tpu.vector_store %arg12[%c0_41, %c0_42, %c0_43], %53 {strides = array<i32>} : memref<4x8x1xf32, #tpu.memory_space<vmem>>, vector<4x8x1xf32>,
      %cst_44 = arith.constant 0.000000e+00 : f32
      %55 = vector.broadcast %cst_44 : f32 to vector<4x8x1xf32>
      %c0_45 = arith.constant 0 : index
      %c0_46 = arith.constant 0 : index
      %c0_47 = arith.constant 0 : index
      %56 = vector.load %arg13[%c0_45, %c0_46, %c0_47] : memref<4x8x1xf32, #tpu.memory_space<vmem>>, vector<4x8x1xf32>
      tpu.vector_store %arg13[%c0_45, %c0_46, %c0_47], %55 {strides = array<i32>} : memref<4x8x1xf32, #tpu.memory_space<vmem>>, vector<4x8x1xf32>,
      %cst_48 = arith.constant 0.000000e+00 : f32
      %57 = vector.broadcast %cst_48 : f32 to vector<4x8x8xf32>
      %c0_49 = arith.constant 0 : index
      %c0_50 = arith.constant 0 : index
      %c0_51 = arith.constant 0 : index
      %58 = vector.load %arg14[%c0_49, %c0_50, %c0_51] : memref<4x8x8xf32, #tpu.memory_space<vmem>>, vector<4x8x8xf32>
      tpu.vector_store %arg14[%c0_49, %c0_50, %c0_51], %57 {strides = array<i32>} : memref<4x8x8xf32, #tpu.memory_space<vmem>>, vector<4x8x8xf32>,
    } else {
    }
    %c0 = arith.constant 0 : index
    %c0_1 = arith.constant 0 : index
    %c0_2 = arith.constant 0 : index
    %c0_3 = arith.constant 0 : index
    %3 = vector.load %arg2[%c0, %c0_1, %c0_2, %c0_3] : memref<4x1x8x8xbf16, #tpu.memory_space<vmem>>, vector<4x1x8x8xbf16>
    %4 = vector.shape_cast %3 : vector<4x1x8x8xbf16> to vector<4x8x8xbf16>
    %c0_4 = arith.constant 0 : index
    %c0_5 = arith.constant 0 : index
    %c0_6 = arith.constant 0 : index
    %c0_7 = arith.constant 0 : index
    %5 = vector.load %arg3[%c0_4, %c0_5, %c0_6, %c0_7] : memref<4x1x8x8xbf16, #tpu.memory_space<vmem>>, vector<4x1x8x8xbf16>
    %6 = vector.shape_cast %5 : vector<4x1x8x8xbf16> to vector<4x8x8xbf16>
    %c0_8 = arith.constant 0 : index
    %c0_9 = arith.constant 0 : index
    %c0_10 = arith.constant 0 : index
    %c0_11 = arith.constant 0 : index
    %7 = vector.load %arg4[%c0_8, %c0_9, %c0_10, %c0_11] : memref<4x1x8x8xbf16, #tpu.memory_space<vmem>>, vector<4x1x8x8xbf16>
    %8 = vector.shape_cast %7 : vector<4x1x8x8xbf16> to vector<4x8x8xbf16>
    "tpu.trace_start"() <{level = 10 : i32, message = "hqd,hkd->hqk"}> : () -> ()
    %cst = arith.constant dense<0.000000e+00> : vector<4x8x8xf32>
    %9 = tpu.matmul %4, %6, %cst {dimension_numbers = #tpu.dot_dimension_numbers<[2], [2], [1], [1], [0, 0, 0, 1, 1, 1], [0], [0]>} : vector<4x8x8xbf16>, vector<4x8x8xbf16>, vector<4x8x8xf32> -> vector<4x8x8xf32>
    "tpu.trace_stop"() : () -> ()
    %10 = tpu.iota {dimensions = array<i32: 0>} : vector<8x8xi32>
    %11 = tpu.iota {dimensions = array<i32: 1>} : vector<8x8xi32>
    %c8_i32 = arith.constant 8 : i32
    %12 = arith.muli %arg1, %c8_i32 : i32
    %13 = vector.broadcast %12 : i32 to vector<8x8xi32>
    %14 = arith.addi %11, %13 : vector<8x8xi32>
    %15 = arith.cmpi sle, %14, %10 : vector<8x8xi32>
    %c0_12 = arith.constant 0 : index
    %c0_13 = arith.constant 0 : index
    %c0_14 = arith.constant 0 : index
    %16 = vector.load %arg5[%c0_12, %c0_13, %c0_14] : memref<1x1x8xf32, #tpu.memory_space<vmem>>, vector<1x1x8xf32>
    %17 = vector.shape_cast %16 : vector<1x1x8xf32> to vector<1x8xf32>
    %cst_15 = arith.constant 5.000000e-01 : f32
    %18 = vector.broadcast %cst_15 : f32 to vector<1x8xf32>
    %19 = arith.cmpf ogt, %17, %18 : vector<1x8xf32>
    %20 = vector.broadcast %19 : vector<1x8xi1> to vector<8x8xi1>
    %21 = arith.andi %15, %20 : vector<8x8xi1>
    %22 = vector.shape_cast %21 : vector<8x8xi1> to vector<1x8x8xi1>
    %cst_16 = arith.constant -1.000000e+09 : f32
    %23 = vector.shape_cast %22 : vector<1x8x8xi1> to vector<1x8x8xi1>
    %24 = vector.broadcast %23 : vector<1x8x8xi1> to vector<4x8x8xi1>
    %25 = vector.broadcast %cst_16 : f32 to vector<4x8x8xf32>
    %26 = arith.select %24, %9, %25 : vector<4x8x8xi1>, vector<4x8x8xf32>
    %c0_17 = arith.constant 0 : index
    %c0_18 = arith.constant 0 : index
    %c0_19 = arith.constant 0 : index
    %27 = vector.load %arg12[%c0_17, %c0_18, %c0_19] : memref<4x8x1xf32, #tpu.memory_space<vmem>>, vector<4x8x1xf32>
    %cst_20 = arith.constant dense<0xFF800000> : vector<4x8xf32>
    %28 = vector.multi_reduction <maximumf>, %26, %cst_20 [2] : vector<4x8x8xf32> to vector<4x8xf32>
    %29 = vector.shape_cast %28 : vector<4x8xf32> to vector<4x8x1xf32>
    %30 = arith.maximumf %27, %29 : vector<4x8x1xf32>
    %31 = arith.subf %27, %30 : vector<4x8x1xf32>
    %32 = math.exp %31 : vector<4x8x1xf32>
    %33 = vector.broadcast %30 : vector<4x8x1xf32> to vector<4x8x8xf32>
    %34 = arith.subf %26, %33 : vector<4x8x8xf32>
    %35 = math.exp %34 : vector<4x8x8xf32>
    %c0_21 = arith.constant 0 : index
    %c0_22 = arith.constant 0 : index
    %c0_23 = arith.constant 0 : index
    %36 = vector.load %arg13[%c0_21, %c0_22, %c0_23] : memref<4x8x1xf32, #tpu.memory_space<vmem>>, vector<4x8x1xf32>
    %37 = arith.mulf %32, %36 : vector<4x8x1xf32>
    %cst_24 = arith.constant dense<0.000000e+00> : vector<4x8xf32>
    %38 = vector.multi_reduction <add>, %35, %cst_24 [2] : vector<4x8x8xf32> to vector<4x8xf32>
    %39 = vector.shape_cast %38 : vector<4x8xf32> to vector<4x8x1xf32>
    %40 = arith.addf %37, %39 : vector<4x8x1xf32>
    %c0_25 = arith.constant 0 : index
    %c0_26 = arith.constant 0 : index
    %c0_27 = arith.constant 0 : index
    %41 = vector.load %arg13[%c0_25, %c0_26, %c0_27] : memref<4x8x1xf32, #tpu.memory_space<vmem>>, vector<4x8x1xf32>
    tpu.vector_store %arg13[%c0_25, %c0_26, %c0_27], %40 {strides = array<i32>} : memref<4x8x1xf32, #tpu.memory_space<vmem>>, vector<4x8x1xf32>,
    %c0_28 = arith.constant 0 : index
    %c0_29 = arith.constant 0 : index
    %c0_30 = arith.constant 0 : index
    %42 = vector.load %arg14[%c0_28, %c0_29, %c0_30] : memref<4x8x8xf32, #tpu.memory_space<vmem>>, vector<4x8x8xf32>
    %43 = vector.broadcast %32 : vector<4x8x1xf32> to vector<4x8x8xf32>
    %44 = arith.mulf %43, %42 : vector<4x8x8xf32>
    %45 = arith.truncf %35 : vector<4x8x8xf32> to vector<4x8x8xbf16>
    "tpu.trace_start"() <{level = 10 : i32, message = "hqk,hkd->hqd"}> : () -> ()
    %cst_31 = arith.constant dense<0.000000e+00> : vector<4x8x8xf32>
    %46 = tpu.matmul %45, %8, %cst_31 {dimension_numbers = #tpu.dot_dimension_numbers<[2], [1], [1], [2], [0, 0, 0, 1, 1, 2], [0], [0]>} : vector<4x8x8xbf16>, vector<4x8x8xbf16>, vector<4x8x8xf32> -> vector<4x8x8xf32>
    "tpu.trace_stop"() : () -> ()
    %47 = arith.addf %44, %46 : vector<4x8x8xf32>
    %c0_32 = arith.constant 0 : index
    %c0_33 = arith.constant 0 : index
    %c0_34 = arith.constant 0 : index
    %48 = vector.load %arg14[%c0_32, %c0_33, %c0_34] : memref<4x8x8xf32, #tpu.memory_space<vmem>>, vector<4x8x8xf32>
    tpu.vector_store %arg14[%c0_32, %c0_33, %c0_34], %47 {strides = array<i32>} : memref<4x8x8xf32, #tpu.memory_space<vmem>>, vector<4x8x8xf32>,
    %c0_35 = arith.constant 0 : index
    %c0_36 = arith.constant 0 : index
    %c0_37 = arith.constant 0 : index
    %49 = vector.load %arg12[%c0_35, %c0_36, %c0_37] : memref<4x8x1xf32, #tpu.memory_space<vmem>>, vector<4x8x1xf32>
    tpu.vector_store %arg12[%c0_35, %c0_36, %c0_37], %30 {strides = array<i32>} : memref<4x8x1xf32, #tpu.memory_space<vmem>>, vector<4x8x1xf32>,
    %c0_i32_38 = arith.constant 0 : i32
    %50 = arith.cmpi eq, %arg1, %c0_i32_38 : i32
    %51 = arith.extui %50 : i1 to i32
    %c0_i32_39 = arith.constant 0 : i32
    %52 = arith.cmpi ne, %51, %c0_i32_39 : i32
    scf.if %52 {
      %c0_40 = arith.constant 0 : index
      %c0_41 = arith.constant 0 : index
      %c0_42 = arith.constant 0 : index
      %53 = vector.load %arg14[%c0_40, %c0_41, %c0_42] : memref<4x8x8xf32, #tpu.memory_space<vmem>>, vector<4x8x8xf32>
      %c0_43 = arith.constant 0 : index
      %c0_44 = arith.constant 0 : index
      %c0_45 = arith.constant 0 : index
      %54 = vector.load %arg13[%c0_43, %c0_44, %c0_45] : memref<4x8x1xf32, #tpu.memory_space<vmem>>, vector<4x8x1xf32>
      %55 = tpu.reciprocal %54 {approx = true} : vector<4x8x1xf32> -> vector<4x8x1xf32>
      %56 = vector.broadcast %55 : vector<4x8x1xf32> to vector<4x8x8xf32>
      %57 = arith.mulf %53, %56 : vector<4x8x8xf32>
      %58 = tpu.transpose %57, [1, 0, 2] : vector<4x8x8xf32> -> vector<8x4x8xf32>
      %59 = vector.shape_cast %58 : vector<8x4x8xf32> to vector<8x32xf32>
      %60 = arith.truncf %59 : vector<8x32xf32> to vector<8x32xbf16>
      %c0_46 = arith.constant 0 : index
      %c0_47 = arith.constant 0 : index
      %61 = vector.load %arg7[%c0_46, %c0_47] : memref<32x32xbf16, #tpu.memory_space<vmem>>, vector<32x32xbf16>
      %cst_48 = arith.constant dense<0.000000e+00> : vector<8x32xf32>
      %62 = tpu.matmul %60, %61, %cst_48 {dimension_numbers = #tpu.dot_dimension_numbers<[1], [0], [0], [1], [0, 0, 1, 1], [], []>} : vector<8x32xbf16>, vector<32x32xbf16>, vector<8x32xf32> -> vector<8x32xf32>
      %c0_49 = arith.constant 0 : index
      %c0_50 = arith.constant 0 : index
      %63 = vector.load %arg8[%c0_49, %c0_50] : memref<1x32xf32, #tpu.memory_space<vmem>>, vector<1x32xf32>
      %64 = vector.broadcast %63 : vector<1x32xf32> to vector<8x32xf32>
      %65 = arith.addf %62, %64 : vector<8x32xf32>
      %c0_51 = arith.constant 0 : index
      %c0_52 = arith.constant 0 : index
      %c0_53 = arith.constant 0 : index
      %66 = vector.load %arg6[%c0_51, %c0_52, %c0_53] : memref<1x8x32xbf16, #tpu.memory_space<vmem>>, vector<1x8x32xbf16>
      %67 = vector.shape_cast %66 : vector<1x8x32xbf16> to vector<8x32xbf16>
      %68 = arith.extf %67 : vector<8x32xbf16> to vector<8x32xf32>
      %69 = arith.addf %68, %65 : vector<8x32xf32>
      %c0_54 = arith.constant 0 : index
      %c0_55 = arith.constant 0 : index
      %70 = vector.load %arg9[%c0_54, %c0_55] : memref<1x32xf32, #tpu.memory_space<vmem>>, vector<1x32xf32>
      %c0_56 = arith.constant 0 : index
      %c0_57 = arith.constant 0 : index
      %71 = vector.load %arg10[%c0_56, %c0_57] : memref<1x32xf32, #tpu.memory_space<vmem>>, vector<1x32xf32>
      %cst_58 = arith.constant dense<0.000000e+00> : vector<8xf32>
      %72 = vector.multi_reduction <add>, %69, %cst_58 [1] : vector<8x32xf32> to vector<8xf32>
      %73 = vector.shape_cast %72 : vector<8xf32> to vector<8x1xf32>
      %cst_59 = arith.constant 3.200000e+01 : f32
      %74 = vector.broadcast %cst_59 : f32 to vector<8x1xf32>
      %75 = arith.divf %73, %74 : vector<8x1xf32>
      %76 = vector.broadcast %75 : vector<8x1xf32> to vector<8x32xf32>
      %77 = arith.subf %69, %76 : vector<8x32xf32>
      %78 = arith.mulf %77, %77 : vector<8x32xf32>
      %cst_60 = arith.constant dense<0.000000e+00> : vector<8xf32>
      %79 = vector.multi_reduction <add>, %78, %cst_60 [1] : vector<8x32xf32> to vector<8xf32>
      %80 = vector.shape_cast %79 : vector<8xf32> to vector<8x1xf32>
      %cst_61 = arith.constant 3.200000e+01 : f32
      %81 = vector.broadcast %cst_61 : f32 to vector<8x1xf32>
      %82 = arith.divf %80, %81 : vector<8x1xf32>
      %cst_62 = arith.constant 9.99999974E-6 : f32
      %83 = vector.broadcast %cst_62 : f32 to vector<8x1xf32>
      %84 = arith.addf %82, %83 : vector<8x1xf32>
      %85 = math.rsqrt %84 : vector<8x1xf32>
      %86 = vector.broadcast %85 : vector<8x1xf32> to vector<8x32xf32>
      %87 = arith.mulf %77, %86 : vector<8x32xf32>
      %88 = vector.broadcast %70 : vector<1x32xf32> to vector<8x32xf32>
      %89 = arith.mulf %87, %88 : vector<8x32xf32>
      %90 = vector.broadcast %71 : vector<1x32xf32> to vector<8x32xf32>
      %91 = arith.addf %89, %90 : vector<8x32xf32>
      %92 = arith.truncf %91 : vector<8x32xf32> to vector<8x32xbf16>
      %c0_63 = arith.constant 0 : index
      %c0_64 = arith.constant 0 : index
      %c0_65 = arith.constant 0 : index
      %93 = vector.load %arg11[%c0_63, %c0_64, %c0_65] : memref<1x8x32xbf16, #tpu.memory_space<vmem>>, vector<1x8x32xbf16>
      %94 = vector.shape_cast %93 : vector<1x8x32xbf16> to vector<8x32xbf16>
      %95 = vector.shape_cast %92 : vector<8x32xbf16> to vector<1x8x32xbf16>
      tpu.vector_store %arg11[%c0_63, %c0_64, %c0_65], %95 {strides = array<i32>} : memref<1x8x32xbf16, #tpu.memory_space<vmem>>, vector<1x8x32xbf16>,
    } else {
    }
    return
  }
  func.func @transform_0(%arg0: i32, %arg1: i32) -> (i32, i32, i32, i32) {
    %c0_i32 = arith.constant 0 : i32
    %c0_i32_0 = arith.constant 0 : i32
    %c0_i32_1 = arith.constant 0 : i32
    %c0_i32_2 = arith.constant 0 : i32
    return %c0_i32, %arg0, %c0_i32_0, %c0_i32_1 : i32, i32, i32, i32
  }
  func.func @transform_1(%arg0: i32, %arg1: i32) -> (i32, i32, i32, i32) {
    %c0_i32 = arith.constant 0 : i32
    %c0_i32_0 = arith.constant 0 : i32
    %c0_i32_1 = arith.constant 0 : i32
    return %c0_i32, %arg0, %arg1, %c0_i32_0 : i32, i32, i32, i32
  }
  func.func @transform_2(%arg0: i32, %arg1: i32) -> (i32, i32, i32, i32) {
    %c0_i32 = arith.constant 0 : i32
    %c0_i32_0 = arith.constant 0 : i32
    %c0_i32_1 = arith.constant 0 : i32
    return %c0_i32, %arg0, %arg1, %c0_i32_0 : i32, i32, i32, i32
  }
  func.func @transform_3(%arg0: i32, %arg1: i32) -> (i32, i32, i32) {
    %c0_i32 = arith.constant 0 : i32
    %c0_i32_0 = arith.constant 0 : i32
    return %arg0, %c0_i32, %arg1 : i32, i32, i32
  }
  func.func @transform_4(%arg0: i32, %arg1: i32) -> (i32, i32, i32) {
    %c0_i32 = arith.constant 0 : i32
    %c0_i32_0 = arith.constant 0 : i32
    %c0_i32_1 = arith.constant 0 : i32
    return %arg0, %c0_i32, %c0_i32_0 : i32, i32, i32
  }
  func.func @transform_5(%arg0: i32, %arg1: i32) -> (i32, i32) {
    %c0_i32 = arith.constant 0 : i32
    %c0_i32_0 = arith.constant 0 : i32
    %c0_i32_1 = arith.constant 0 : i32
    return %c0_i32, %c0_i32_0 : i32, i32
  }
  func.func @transform_6(%arg0: i32, %arg1: i32) -> (i32, i32) {
    %c0_i32 = arith.constant 0 : i32
    %c0_i32_0 = arith.constant 0 : i32
    %c0_i32_1 = arith.constant 0 : i32
    return %c0_i32, %c0_i32_0 : i32, i32
  }
  func.func @transform_7(%arg0: i32, %arg1: i32) -> (i32, i32) {
    %c0_i32 = arith.constant 0 : i32
    %c0_i32_0 = arith.constant 0 : i32
    %c0_i32_1 = arith.constant 0 : i32
    return %c0_i32, %c0_i32_0 : i32, i32
  }
  func.func @transform_8(%arg0: i32, %arg1: i32) -> (i32, i32) {
    %c0_i32 = arith.constant 0 : i32
    %c0_i32_0 = arith.constant 0 : i32
    %c0_i32_1 = arith.constant 0 : i32
    return %c0_i32, %c0_i32_0 : i32, i32
  }
  func.func @transform_9(%arg0: i32, %arg1: i32) -> (i32, i32, i32) {
    %c0_i32 = arith.constant 0 : i32
    %c0_i32_0 = arith.constant 0 : i32
    %c0_i32_1 = arith.constant 0 : i32
    return %arg0, %c0_i32, %c0_i32_0 : i32, i32, i32
  }
}

module attributes {stable_mosaic.version = 11 : i64} {
  func.func @lm_head_kernel(%arg0: i32, %arg1: i32, %arg2: memref<16x32xbf16, #tpu.memory_space<vmem>>, %arg3: memref<512x32xbf16, #tpu.memory_space<vmem>>, %arg4: memref<16x512xbf16, #tpu.memory_space<vmem>>) attributes {dimension_semantics = [#tpu.dimension_semantics<parallel>, #tpu.dimension_semantics<parallel>], iteration_bounds = array<i64: 1, 1>, scalar_prefetch = 0 : i64, scratch_operands = 0 : i64, tpu.core_type = #tpu.core_type<tc>, window_params = [{transform_indices = @transform_0, window_bounds = array<i64: 16, 32>}, {transform_indices = @transform_1, window_bounds = array<i64: 512, 32>}, {transform_indices = @transform_2, window_bounds = array<i64: 16, 512>}]} {
    %c0 = arith.constant 0 : index
    %c0_0 = arith.constant 0 : index
    %0 = vector.load %arg2[%c0, %c0_0] : memref<16x32xbf16, #tpu.memory_space<vmem>>, vector<16x32xbf16>
    %c0_1 = arith.constant 0 : index
    %c0_2 = arith.constant 0 : index
    %1 = vector.load %arg3[%c0_1, %c0_2] : memref<512x32xbf16, #tpu.memory_space<vmem>>, vector<512x32xbf16>
    %cst = arith.constant dense<0.000000e+00> : vector<16x512xf32>
    %2 = tpu.matmul %0, %1, %cst {dimension_numbers = #tpu.dot_dimension_numbers<[1], [1], [0], [0], [0, 0, 1, 0], [], []>} : vector<16x32xbf16>, vector<512x32xbf16>, vector<16x512xf32> -> vector<16x512xf32>
    %3 = arith.truncf %2 : vector<16x512xf32> to vector<16x512xbf16>
    %c0_3 = arith.constant 0 : index
    %c0_4 = arith.constant 0 : index
    %4 = vector.load %arg4[%c0_3, %c0_4] : memref<16x512xbf16, #tpu.memory_space<vmem>>, vector<16x512xbf16>
    tpu.vector_store %arg4[%c0_3, %c0_4], %3 {strides = array<i32>} : memref<16x512xbf16, #tpu.memory_space<vmem>>, vector<16x512xbf16>,
    return
  }
  func.func @transform_0(%arg0: i32, %arg1: i32) -> (i32, i32) {
    %c0_i32 = arith.constant 0 : i32
    %c0_i32_0 = arith.constant 0 : i32
    return %arg1, %c0_i32 : i32, i32
  }
  func.func @transform_1(%arg0: i32, %arg1: i32) -> (i32, i32) {
    %c0_i32 = arith.constant 0 : i32
    %c0_i32_0 = arith.constant 0 : i32
    return %arg0, %c0_i32 : i32, i32
  }
  func.func @transform_2(%arg0: i32, %arg1: i32) -> (i32, i32) {
    %c0_i32 = arith.constant 0 : i32
    return %arg1, %arg0 : i32, i32
  }
}

</mosaic_0001>

<llo_original>
// kernel: lm_model_forward.13
$region0: #{lm_model_forward.13}
  #allocation0 [shape = 'u32[]', space=smem, size = 0x4, offset = 0x4, fixed_abs, tag = 'smem constant byte address 0x4 - core index']
  #allocation1 [shape = 'u32[144,128]{1,0:T(1,128)}', space=vmem, size = 0x12000, scoped, tag = 'internal scratch']
  %s0 = inlined_call_operand.vmem [shape: bf16[16,32], index: 0, kind: input, shape index: {}]
  %s1 = inlined_call_operand.vmem [shape: bf16[512,32], index: 1, kind: input, shape index: {}]
  %s2 = inlined_call_operand.hbm [shape: bf16[16,512], index: 2, kind: output, shape index: {}]
  %s3 = sld [smem:[#allocation0]]
  $region18: #{lm_model_forward.13} parent=0
    _
  %s5 = ssub.s32 1, %s3
  %s6 = scalar_select 0, %s5, %s3
  $region1: #{lm_model_forward.13} parent=0
    #allocation2 [shape = 'u8[16384]{0}', space=vmem, size = 0x4000, scoped, tag = 'output window, operand 0, single buffered']
    #allocation3 [shape = 's32[1]{0}', space=sflag, size = 0x4, scoped, tag = 'scoped memory for lm_model_forward.13']
    %7 = vsyncpa [#allocation3], 0
    // Predicated region
    $region2: #{lm_model_forward.13} parent=1 // pred_check
      _
    $region3: #{lm_model_forward.13} parent=1 // pred_check_branch
      %9 = sbr.rel (0) target = $region5
    $region4: #{lm_model_forward.13} parent=1 // pred_region
      _
    $region5: #{lm_model_forward.13} parent=1 // pred_fallthru
      _
    // Predicated region
    $region6: #{lm_model_forward.13} parent=1 // pred_check
      _
    $region7: #{lm_model_forward.13} parent=1 // pred_check_branch
      %11 = sbr.rel (0) target = $region9
    $region8: #{lm_model_forward.13} parent=1 // pred_region
      _
    $region9: #{lm_model_forward.13} parent=1 // pred_fallthru
      _
    %v13 = vld [vmem:[%s0] sm:$0xf]
    %v14 = vld [vmem:[%s0 + $0x4] sm:$0xf]
    %v15 = vld [vmem:[%s1] sm:$0xf]
    %v16 = vld [vmem:[%s1 + $0x4] sm:$0xf]
    %v17 = vld [vmem:[%s1 + $0x8] sm:$0xf]
    %v18 = vld [vmem:[%s1 + $0xc] sm:$0xf]
    %v19 = vld [vmem:[%s1 + $0x10] sm:$0xf]
    %v20 = vld [vmem:[%s1 + $0x14] sm:$0xf]
    %v21 = vld [vmem:[%s1 + $0x18] sm:$0xf]
    %v22 = vld [vmem:[%s1 + $0x1c] sm:$0xf]
    %v23 = vld [vmem:[%s1 + $0x20] sm:$0xf]
    %v24 = vld [vmem:[%s1 + $0x24] sm:$0xf]
    %v25 = vld [vmem:[%s1 + $0x28] sm:$0xf]
    %v26 = vld [vmem:[%s1 + $0x2c] sm:$0xf]
    %v27 = vld [vmem:[%s1 + $0x30] sm:$0xf]
    %v28 = vld [vmem:[%s1 + $0x34] sm:$0xf]
    %v29 = vld [vmem:[%s1 + $0x38] sm:$0xf]
    %v30 = vld [vmem:[%s1 + $0x3c] sm:$0xf]
    %v31 = vld [vmem:[%s1 + $0x40] sm:$0xf]
    %v32 = vld [vmem:[%s1 + $0x44] sm:$0xf]
    %v33 = vld [vmem:[%s1 + $0x48] sm:$0xf]
    %v34 = vld [vmem:[%s1 + $0x4c] sm:$0xf]
    %v35 = vld [vmem:[%s1 + $0x50] sm:$0xf]
    %v36 = vld [vmem:[%s1 + $0x54] sm:$0xf]
    %v37 = vld [vmem:[%s1 + $0x58] sm:$0xf]
    %v38 = vld [vmem:[%s1 + $0x5c] sm:$0xf]
    %v39 = vld [vmem:[%s1 + $0x60] sm:$0xf]
    %v40 = vld [vmem:[%s1 + $0x64] sm:$0xf]
    %v41 = vld [vmem:[%s1 + $0x68] sm:$0xf]
    %v42 = vld [vmem:[%s1 + $0x6c] sm:$0xf]
    %v43 = vld [vmem:[%s1 + $0x70] sm:$0xf]
    %v44 = vld [vmem:[%s1 + $0x74] sm:$0xf]
    %v45 = vld [vmem:[%s1 + $0x78] sm:$0xf]
    %v46 = vld [vmem:[%s1 + $0x7c] sm:$0xf]
    %v47 = vld [vmem:[%s1 + $0x80] sm:$0xf]
    %v48 = vld [vmem:[%s1 + $0x84] sm:$0xf]
    %v49 = vld [vmem:[%s1 + $0x88] sm:$0xf]
    %v50 = vld [vmem:[%s1 + $0x8c] sm:$0xf]
    %v51 = vld [vmem:[%s1 + $0x90] sm:$0xf]
    %v52 = vld [vmem:[%s1 + $0x94] sm:$0xf]
    %v53 = vld [vmem:[%s1 + $0x98] sm:$0xf]
    %v54 = vld [vmem:[%s1 + $0x9c] sm:$0xf]
    %v55 = vld [vmem:[%s1 + $0xa0] sm:$0xf]
    %v56 = vld [vmem:[%s1 + $0xa4] sm:$0xf]
    %v57 = vld [vmem:[%s1 + $0xa8] sm:$0xf]
    %v58 = vld [vmem:[%s1 + $0xac] sm:$0xf]
    %v59 = vld [vmem:[%s1 + $0xb0] sm:$0xf]
    %v60 = vld [vmem:[%s1 + $0xb4] sm:$0xf]
    %v61 = vld [vmem:[%s1 + $0xb8] sm:$0xf]
    %v62 = vld [vmem:[%s1 + $0xbc] sm:$0xf]
    %v63 = vld [vmem:[%s1 + $0xc0] sm:$0xf]
    %v64 = vld [vmem:[%s1 + $0xc4] sm:$0xf]
    %v65 = vld [vmem:[%s1 + $0xc8] sm:$0xf]
    %v66 = vld [vmem:[%s1 + $0xcc] sm:$0xf]
    %v67 = vld [vmem:[%s1 + $0xd0] sm:$0xf]
    %v68 = vld [vmem:[%s1 + $0xd4] sm:$0xf]
    %v69 = vld [vmem:[%s1 + $0xd8] sm:$0xf]
    %v70 = vld [vmem:[%s1 + $0xdc] sm:$0xf]
    %v71 = vld [vmem:[%s1 + $0xe0] sm:$0xf]
    %v72 = vld [vmem:[%s1 + $0xe4] sm:$0xf]
    %v73 = vld [vmem:[%s1 + $0xe8] sm:$0xf]
    %v74 = vld [vmem:[%s1 + $0xec] sm:$0xf]
    %v75 = vld [vmem:[%s1 + $0xf0] sm:$0xf]
    %v76 = vld [vmem:[%s1 + $0xf4] sm:$0xf]
    %v77 = vld [vmem:[%s1 + $0xf8] sm:$0xf]
    %v78 = vld [vmem:[%s1 + $0xfc] sm:$0xf]
    %v81 = vunpack.c.l.b16 %v13
    %v82 = vunpack.c.l.b16 %v14
    %v83 = vpack.c.b16 %v82, %v81
    %v148 = vunpack.c.l.b16 %v15
    %v149 = vunpack.c.l.b16 %v16
    %v150 = vunpack.c.l.b16 %v17
    %v151 = vunpack.c.l.b16 %v18
    %v152 = vunpack.c.l.b16 %v19
    %v153 = vunpack.c.l.b16 %v20
    %v154 = vunpack.c.l.b16 %v21
    %v155 = vunpack.c.l.b16 %v22
    %v156 = vunpack.c.l.b16 %v23
    %v157 = vunpack.c.l.b16 %v24
    %v158 = vunpack.c.l.b16 %v25
    %v159 = vunpack.c.l.b16 %v26
    %v160 = vunpack.c.l.b16 %v27
    %v161 = vunpack.c.l.b16 %v28
    %v162 = vunpack.c.l.b16 %v29
    %v163 = vunpack.c.l.b16 %v30
    %v164 = vunpack.c.l.b16 %v31
    %v165 = vunpack.c.l.b16 %v32
    %v166 = vunpack.c.l.b16 %v33
    %v167 = vunpack.c.l.b16 %v34
    %v168 = vunpack.c.l.b16 %v35
    %v169 = vunpack.c.l.b16 %v36
    %v170 = vunpack.c.l.b16 %v37
    %v171 = vunpack.c.l.b16 %v38
    %v172 = vunpack.c.l.b16 %v39
    %v173 = vunpack.c.l.b16 %v40
    %v174 = vunpack.c.l.b16 %v41
    %v175 = vunpack.c.l.b16 %v42
    %v176 = vunpack.c.l.b16 %v43
    %v177 = vunpack.c.l.b16 %v44
    %v178 = vunpack.c.l.b16 %v45
    %v179 = vunpack.c.l.b16 %v46
    %v180 = vunpack.c.l.b16 %v47
    %v181 = vunpack.c.l.b16 %v48
    %v182 = vunpack.c.l.b16 %v49
    %v183 = vunpack.c.l.b16 %v50
    %v184 = vunpack.c.l.b16 %v51
    %v185 = vunpack.c.l.b16 %v52
    %v186 = vunpack.c.l.b16 %v53
    %v187 = vunpack.c.l.b16 %v54
    %v188 = vunpack.c.l.b16 %v55
    %v189 = vunpack.c.l.b16 %v56
    %v190 = vunpack.c.l.b16 %v57
    %v191 = vunpack.c.l.b16 %v58
    %v192 = vunpack.c.l.b16 %v59
    %v193 = vunpack.c.l.b16 %v60
    %v194 = vunpack.c.l.b16 %v61
    %v195 = vunpack.c.l.b16 %v62
    %v196 = vunpack.c.l.b16 %v63
    %v197 = vunpack.c.l.b16 %v64
    %v198 = vunpack.c.l.b16 %v65
    %v199 = vunpack.c.l.b16 %v66
    %v200 = vunpack.c.l.b16 %v67
    %v201 = vunpack.c.l.b16 %v68
    %v202 = vunpack.c.l.b16 %v69
    %v203 = vunpack.c.l.b16 %v70
    %v204 = vunpack.c.l.b16 %v71
    %v205 = vunpack.c.l.b16 %v72
    %v206 = vunpack.c.l.b16 %v73
    %v207 = vunpack.c.l.b16 %v74
    %v208 = vunpack.c.l.b16 %v75
    %v209 = vunpack.c.l.b16 %v76
    %v210 = vunpack.c.l.b16 %v77
    %v211 = vunpack.c.l.b16 %v78
    %v212 = vpack.c.b16 %v149, %v148
    %v213 = vpack.c.b16 %v151, %v150
    %v214 = vpack.c.b16 %v153, %v152
    %v215 = vpack.c.b16 %v155, %v154
    %v216 = vpack.c.b16 %v157, %v156
    %v217 = vpack.c.b16 %v159, %v158
    %v218 = vpack.c.b16 %v161, %v160
    %v219 = vpack.c.b16 %v163, %v162
    %v220 = vpack.c.b16 %v165, %v164
    %v221 = vpack.c.b16 %v167, %v166
    %v222 = vpack.c.b16 %v169, %v168
    %v223 = vpack.c.b16 %v171, %v170
    %v224 = vpack.c.b16 %v173, %v172
    %v225 = vpack.c.b16 %v175, %v174
    %v226 = vpack.c.b16 %v177, %v176
    %v227 = vpack.c.b16 %v179, %v178
    %v228 = vpack.c.b16 %v181, %v180
    %v229 = vpack.c.b16 %v183, %v182
    %v230 = vpack.c.b16 %v185, %v184
    %v231 = vpack.c.b16 %v187, %v186
    %v232 = vpack.c.b16 %v189, %v188
    %v233 = vpack.c.b16 %v191, %v190
    %v234 = vpack.c.b16 %v193, %v192
    %v235 = vpack.c.b16 %v195, %v194
    %v236 = vpack.c.b16 %v197, %v196
    %v237 = vpack.c.b16 %v199, %v198
    %v238 = vpack.c.b16 %v201, %v200
    %v239 = vpack.c.b16 %v203, %v202
    %v240 = vpack.c.b16 %v205, %v204
    %v241 = vpack.c.b16 %v207, %v206
    %v242 = vpack.c.b16 %v209, %v208
    %v243 = vpack.c.b16 %v211, %v210
    %vm244 = vcmask 261120
    %v246 = vsel %vm244, %v83, 0
    %v249 = vsel %vm244, %v212, 0
    %v252 = vsel %vm244, %v213, 0
    %v255 = vsel %vm244, %v214, 0
    %v258 = vsel %vm244, %v215, 0
    %v261 = vsel %vm244, %v216, 0
    %v264 = vsel %vm244, %v217, 0
    %v267 = vsel %vm244, %v218, 0
    %v270 = vsel %vm244, %v219, 0
    %v273 = vsel %vm244, %v220, 0
    %v276 = vsel %vm244, %v221, 0
    %v279 = vsel %vm244, %v222, 0
    %v282 = vsel %vm244, %v223, 0
    %v285 = vsel %vm244, %v224, 0
    %v288 = vsel %vm244, %v225, 0
    %v291 = vsel %vm244, %v226, 0
    %v294 = vsel %vm244, %v227, 0
    %v297 = vsel %vm244, %v228, 0
    %v300 = vsel %vm244, %v229, 0
    %v303 = vsel %vm244, %v230, 0
    %v306 = vsel %vm244, %v231, 0
    %v309 = vsel %vm244, %v232, 0
    %v312 = vsel %vm244, %v233, 0
    %v315 = vsel %vm244, %v234, 0
    %v318 = vsel %vm244, %v235, 0
    %v321 = vsel %vm244, %v236, 0
    %v324 = vsel %vm244, %v237, 0
    %v327 = vsel %vm244, %v238, 0
    %v330 = vsel %vm244, %v239, 0
    %v333 = vsel %vm244, %v240, 0
    %v336 = vsel %vm244, %v241, 0
    %v339 = vsel %vm244, %v242, 0
    %v342 = vsel %vm244, %v243, 0
    %344 = vmatprep.subr.bf16.mxu0 0
    %345 = vmatpush1.bf16.xpose.msra.mxu0 %v249
    %346 = vmatprep.subr.bf16.mxu0 0
    %347 = vmatpush1.bf16.xpose.msra.mxu0 %v252
    %348 = vmatprep.subr.bf16.mxu0 0
    %349 = vmatpush1.bf16.xpose.msra.mxu0 %v255
    %350 = vmatprep.subr.bf16.mxu0 0
    %351 = vmatpush1.bf16.xpose.msra.mxu0 %v258
    %352 = vmatprep.subr.bf16.mxu0 0
    %353 = vmatpush1.bf16.xpose.msra.mxu0 %v261
    %354 = vmatprep.subr.bf16.mxu0 0
    %355 = vmatpush1.bf16.xpose.msra.mxu0 %v264
    %356 = vmatprep.subr.bf16.mxu0 0
    %357 = vmatpush1.bf16.xpose.msra.mxu0 %v267
    %358 = vmatprep.subr.bf16.mxu0 0
    %359 = vmatpush1.bf16.xpose.msra.mxu0 %v270
    %360 = vmatprep.subr.bf16.mxu0 0
    %361 = vmatpush1.bf16.xpose.msra.mxu0 %v273
    %362 = vmatprep.subr.bf16.mxu0 0
    %363 = vmatpush1.bf16.xpose.msra.mxu0 %v276
    %364 = vmatprep.subr.bf16.mxu0 0
    %365 = vmatpush1.bf16.xpose.msra.mxu0 %v279
    %366 = vmatprep.subr.bf16.mxu0 0
    %367 = vmatpush1.bf16.xpose.msra.mxu0 %v282
    %368 = vmatprep.subr.bf16.mxu0 0
    %369 = vmatpush1.bf16.xpose.msra.mxu0 %v285
    %370 = vmatprep.subr.bf16.mxu0 0
    %371 = vmatpush1.bf16.xpose.msra.mxu0 %v288
    %372 = vmatprep.subr.bf16.mxu0 0
    %373 = vmatpush1.bf16.xpose.msra.mxu0 %v291
    %374 = vmatprep.subr.bf16.mxu0 0
    %375 = vmatpush1.bf16.xpose.msra.mxu0 %v294
    %376 = vmatprep.mubr.bf16.mxu0 0
    %377 = vmatmul.mubr.bf16.gmra.mrb[0].mxu0 %v246
    %v378 = vpop.f32.mrb[0].mxu0
    %v379 = vadd.f32 0.0, %v378
    %v380 = vpop.f32.mrb[0].mxu0
    %v381 = vadd.f32 0.0, %v380
    %v382 = vpop.f32.mrb[0].mxu0
    %v383 = vadd.f32 0.0, %v382
    %v384 = vpop.f32.mrb[0].mxu0
    %v385 = vadd.f32 0.0, %v384
    %386 = vdwg.mxu0
    %387 = vmatprep.subr.bf16.mxu0 0
    %388 = vmatpush1.bf16.xpose.msra.mxu0 %v297
    %389 = vmatprep.subr.bf16.mxu0 0
    %390 = vmatpush1.bf16.xpose.msra.mxu0 %v300
    %391 = vmatprep.subr.bf16.mxu0 0
    %392 = vmatpush1.bf16.xpose.msra.mxu0 %v303
    %393 = vmatprep.subr.bf16.mxu0 0
    %394 = vmatpush1.bf16.xpose.msra.mxu0 %v306
    %395 = vmatprep.subr.bf16.mxu0 0
    %396 = vmatpush1.bf16.xpose.msra.mxu0 %v309
    %397 = vmatprep.subr.bf16.mxu0 0
    %398 = vmatpush1.bf16.xpose.msra.mxu0 %v312
    %399 = vmatprep.subr.bf16.mxu0 0
    %400 = vmatpush1.bf16.xpose.msra.mxu0 %v315
    %401 = vmatprep.subr.bf16.mxu0 0
    %402 = vmatpush1.bf16.xpose.msra.mxu0 %v318
    %403 = vmatprep.subr.bf16.mxu0 0
    %404 = vmatpush1.bf16.xpose.msra.mxu0 %v321
    %405 = vmatprep.subr.bf16.mxu0 0
    %406 = vmatpush1.bf16.xpose.msra.mxu0 %v324
    %407 = vmatprep.subr.bf16.mxu0 0
    %408 = vmatpush1.bf16.xpose.msra.mxu0 %v327
    %409 = vmatprep.subr.bf16.mxu0 0
    %410 = vmatpush1.bf16.xpose.msra.mxu0 %v330
    %411 = vmatprep.subr.bf16.mxu0 0
    %412 = vmatpush1.bf16.xpose.msra.mxu0 %v333
    %413 = vmatprep.subr.bf16.mxu0 0
    %414 = vmatpush1.bf16.xpose.msra.mxu0 %v336
    %415 = vmatprep.subr.bf16.mxu0 0
    %416 = vmatpush1.bf16.xpose.msra.mxu0 %v339
    %417 = vmatprep.subr.bf16.mxu0 0
    %418 = vmatpush1.bf16.xpose.msra.mxu0 %v342
    %419 = vmatprep.mubr.bf16.mxu0 0
    %420 = vmatmul.mubr.bf16.gmra.mrb[0].mxu0 %v246
    %v421 = vpop.f32.mrb[0].mxu0
    %v422 = vadd.f32 0.0, %v421
    %v423 = vpop.f32.mrb[0].mxu0
    %v424 = vadd.f32 0.0, %v423
    %v425 = vpop.f32.mrb[0].mxu0
    %v426 = vadd.f32 0.0, %v425
    %v427 = vpop.f32.mrb[0].mxu0
    %v428 = vadd.f32 0.0, %v427
    %429 = vdwg.mxu0
    %v430 = vpack.c.bf16 %v383, %v379
    %v431 = vpack.c.bf16 %v385, %v381
    %v432 = vpack.c.bf16 %v426, %v422
    %v433 = vpack.c.bf16 %v428, %v424
    %v438 = vunpack.c.l.b16 %v430
    %v439 = vunpack.c.l.b16 %v431
    %v440 = vunpack.c.l.b16 %v432
    %v441 = vunpack.c.l.b16 %v433
    %v442 = vunpack.c.h.b16 %v430
    %v443 = vunpack.c.h.b16 %v431
    %v444 = vunpack.c.h.b16 %v432
    %v445 = vunpack.c.h.b16 %v433
    %v446 = vpack.c.b16 %v439, %v438
    %v447 = vpack.c.b16 %v441, %v440
    %v448 = vpack.c.b16 %v443, %v442
    %v449 = vpack.c.b16 %v445, %v444
    %454 = vst [vmem:[#allocation2] sm:$0xff] %v446
    %455 = vst [vmem:[#allocation2 + $0x8] sm:$0xff] %v447
    %456 = vst [vmem:[#allocation2 + $0x10] sm:$0xff] %v448
    %457 = vst [vmem:[#allocation2 + $0x18] sm:$0xff] %v449
    // Predicated region
    $region10: #{lm_model_forward.13} parent=1 // pred_check
      _
    $region11: #{lm_model_forward.13} parent=1 // pred_check_branch
      %459 = sbr.rel (0) target = $region13
    $region12: #{lm_model_forward.13} parent=1 // pred_region
      %s461 = ssub.s32 512, 512
      %462 = vsyncadd [#allocation3], %s461
      %s463 = sshll.u32 [#allocation2], 4
      %s464 = int_to_ptr.vmem [resolvable:$true] %s463
      %469 = dma.vmem_to_hbm [thread:$0]  %s464, 512, %s2, [#allocation3], 256, 256, 16
    $region13: #{lm_model_forward.13} parent=1 // pred_fallthru
      _
    // Predicated region
    $region14: #{lm_model_forward.13} parent=1 // pred_check
      _
    $region15: #{lm_model_forward.13} parent=1 // pred_check_branch
      %471 = sbr.rel (0) target = $region17
    $region16: #{lm_model_forward.13} parent=1 // pred_region
      %472 = dma.done [#allocation3], 512
    $region17: #{lm_model_forward.13} parent=1 // pred_fallthru
      _
    %473 = vsyncpa [#allocation3], 1

// kernel: lm_model_forward.9
$region0: #{lm_model_forward.9}
  #allocation0 [shape = 'u32[]', space=smem, size = 0x4, offset = 0x4, fixed_abs, tag = 'smem constant byte address 0x4 - core index']
  #allocation1 [shape = 'u32[144,128]{1,0:T(1,128)}', space=vmem, size = 0x12000, scoped, tag = 'internal scratch']
  #allocation2 [shape = 'f32[16,32]{1,0:T(8,128)}', space=vmem, size = 0x2000, scoped, tag = 'scratch operand']
  %s0 = inlined_call_operand.vmem [shape: bf16[16,32], index: 0, kind: input, shape index: {}]
  %s1 = inlined_call_operand.vmem [shape: bf16[32,128], index: 1, kind: input, shape index: {}]
  %s2 = inlined_call_operand.vmem [shape: f32[1,128], index: 2, kind: input, shape index: {}]
  %s3 = inlined_call_operand.vmem [shape: bf16[128,32], index: 3, kind: input, shape index: {}]
  %s4 = inlined_call_operand.vmem [shape: f32[1,32], index: 4, kind: input, shape index: {}]
  %s5 = inlined_call_operand.vmem [shape: f32[1,32], index: 5, kind: input, shape index: {}]
  %s6 = inlined_call_operand.vmem [shape: f32[1,32], index: 6, kind: input, shape index: {}]
  %s7 = inlined_call_operand.vmem [shape: bf16[16,32], index: 7, kind: output, shape index: {}]
  %s8 = sld [smem:[#allocation0]]
  $region46: #{lm_model_forward.9} parent=0
    _
  %s10 = ssub.s32 1, %s8
  %s11 = scalar_select 0, %s10, %s8
  // Predicated region
  $region2: #{lm_model_forward.9} parent=0 // pred_check
    _
  $region3: #{lm_model_forward.9} parent=0 // pred_check_branch
    %13 = sbr.rel (0) target = $region5
  $region4: #{lm_model_forward.9} parent=0 // pred_region
    _
  $region5: #{lm_model_forward.9} parent=0 // pred_fallthru
    _
  // Predicated region
  $region6: #{lm_model_forward.9} parent=0 // pred_check
    _
  $region7: #{lm_model_forward.9} parent=0 // pred_check_branch
    %15 = sbr.rel (0) target = $region9
  $region8: #{lm_model_forward.9} parent=0 // pred_region
    _
  $region9: #{lm_model_forward.9} parent=0 // pred_fallthru
    _
  // Predicated region
  $region10: #{lm_model_forward.9} parent=0 // pred_check
    _
  $region11: #{lm_model_forward.9} parent=0 // pred_check_branch
    %17 = sbr.rel (0) target = $region13
  $region12: #{lm_model_forward.9} parent=0 // pred_region
    _
  $region13: #{lm_model_forward.9} parent=0 // pred_fallthru
    _
  // Predicated region
  $region14: #{lm_model_forward.9} parent=0 // pred_check
    _
  $region15: #{lm_model_forward.9} parent=0 // pred_check_branch
    %19 = sbr.rel (0) target = $region17
  $region16: #{lm_model_forward.9} parent=0 // pred_region
    _
  $region17: #{lm_model_forward.9} parent=0 // pred_fallthru
    _
  // Predicated region
  $region18: #{lm_model_forward.9} parent=0 // pred_check
    _
  $region19: #{lm_model_forward.9} parent=0 // pred_check_branch
    %21 = sbr.rel (0) target = $region21
  $region20: #{lm_model_forward.9} parent=0 // pred_region
    _
  $region21: #{lm_model_forward.9} parent=0 // pred_fallthru
    _
  // Predicated region
  $region22: #{lm_model_forward.9} parent=0 // pred_check
    _
  $region23: #{lm_model_forward.9} parent=0 // pred_check_branch
    %23 = sbr.rel (0) target = $region25
  $region24: #{lm_model_forward.9} parent=0 // pred_region
    _
  $region25: #{lm_model_forward.9} parent=0 // pred_fallthru
    _
  // Predicated region
  $region26: #{lm_model_forward.9} parent=0 // pred_check
    _
  $region27: #{lm_model_forward.9} parent=0 // pred_check_branch
    %25 = sbr.rel (0) target = $region29
  $region28: #{lm_model_forward.9} parent=0 // pred_region
    _
  $region29: #{lm_model_forward.9} parent=0 // pred_fallthru
    _
  %p27 = scmp.eq.s32.totalorder 0, 0
  // Predicated region
  $region30: #{lm_model_forward.9} parent=0 // pred_check
    %p28 = pneg %p27
  $region31: #{lm_model_forward.9} parent=0 // pred_check_branch
    %30 = sbr.rel (%p28) target = $region33
  $region32: #{lm_model_forward.9} parent=0 // pred_region
    %vm31 = vcmask 261120
    %32 = vst.msk [vmem:[#allocation2] sm:$0xff] %vm31, 0.0
    %33 = vst.msk [vmem:[#allocation2 + $0x8] sm:$0xff] %vm31, 0.0
  $region33: #{lm_model_forward.9} parent=0 // pred_fallthru
    _
  %v34 = vld [vmem:[%s0] sm:$0xf]
  %v35 = vld [vmem:[%s0 + $0x4] sm:$0xf]
  %v36 = vld [vmem:[%s1] sm:$0xf]
  %v37 = vld [vmem:[%s1 + $0x4] sm:$0xf]
  %v38 = vld [vmem:[%s1 + $0x8] sm:$0xf]
  %v39 = vld [vmem:[%s1 + $0xc] sm:$0xf]
  %v40 = vld [vmem:[%s2] sm:$0x1]
  %v42 = vlaneseq
  %v43 = vshrl.u32 %v42, 7
  %v44 = vsub.s32 0, %v43
  %v45 = vrot.slane %v40, %v44
  %v49 = vunpack.c.l.b16 %v34
  %v50 = vunpack.c.l.b16 %v35
  %v51 = vpack.c.b16 %v50, %v49
  %v56 = vunpack.c.l.b16 %v36
  %v57 = vunpack.c.l.b16 %v37
  %v58 = vunpack.c.l.b16 %v38
  %v59 = vunpack.c.l.b16 %v39
  %v60 = vpack.c.b16 %v57, %v56
  %v61 = vpack.c.b16 %v59, %v58
  %vm64 = vcmask 261120
  %v66 = vsel %vm64, %v51, 0
  %68 = vmatprep.subr.bf16.mxu0 0
  %69 = vmatpush1.bf16.msra.mxu0 %v60
  %70 = vmatprep.subr.bf16.mxu0 0
  %71 = vmatpush1.bf16.msra.mxu0 %v61
  %72 = vmatprep.subr.bf16.mxu0 0
  %73 = vmatpush1.bf16.msra.mxu0 0
  %74 = vmatprep.subr.bf16.mxu0 0
  %75 = vmatpush1.bf16.msra.mxu0 0
  %76 = vmatprep.subr.bf16.mxu0 0
  %77 = vmatpush1.bf16.msra.mxu0 0
  %78 = vmatprep.subr.bf16.mxu0 0
  %79 = vmatpush1.bf16.msra.mxu0 0
  %80 = vmatprep.subr.bf16.mxu0 0
  %81 = vmatpush1.bf16.msra.mxu0 0
  %82 = vmatprep.subr.bf16.mxu0 0
  %83 = vmatpush1.bf16.msra.mxu0 0
  %84 = vmatprep.subr.bf16.mxu0 0
  %85 = vmatpush1.bf16.msra.mxu0 0
  %86 = vmatprep.subr.bf16.mxu0 0
  %87 = vmatpush1.bf16.msra.mxu0 0
  %88 = vmatprep.subr.bf16.mxu0 0
  %89 = vmatpush1.bf16.msra.mxu0 0
  %90 = vmatprep.subr.bf16.mxu0 0
  %91 = vmatpush1.bf16.msra.mxu0 0
  %92 = vmatprep.subr.bf16.mxu0 0
  %93 = vmatpush1.bf16.msra.mxu0 0
  %94 = vmatprep.subr.bf16.mxu0 0
  %95 = vmatpush1.bf16.msra.mxu0 0
  %96 = vmatprep.subr.bf16.mxu0 0
  %97 = vmatpush1.bf16.msra.mxu0 0
  %98 = vmatprep.subr.bf16.mxu0 0
  %99 = vmatpush1.bf16.msra.mxu0 0
  %100 = vmatprep.mubr.bf16.mxu0 0
  %101 = vmatmul.mubr.bf16.gmra.mrb[0].mxu0 %v66
  %v102 = vpop.f32.mrb[0].mxu0
  %v103 = vadd.f32 %v45, %v102
  %v104 = vpop.f32.mrb[0].mxu0
  %v105 = vpop.f32.mrb[0].mxu0
  %v106 = vadd.f32 %v45, %v105
  %v107 = vpop.f32.mrb[0].mxu0
  %108 = vdwg.mxu0
  %v109 = vmul.f32 %v103, 0.5
  %v110 = vmul.f32 %v106, 0.5
  %v111 = vmul.f32 %v103, %v103
  %v112 = vmul.f32 %v106, %v106
  %v113 = vmul.f32 %v103, %v111
  %v114 = vmul.f32 %v106, %v112
  %v115 = vmul.f32 %v113, 0.044715
  %v116 = vmul.f32 %v114, 0.044715
  %v117 = vadd.f32 %v103, %v115
  %v118 = vadd.f32 %v106, %v116
  %v119 = vmul.f32 %v117, 0.7978846
  %v120 = vmul.f32 %v118, 0.7978846
  %v121 = vtanh.pop %v119
  %v122 = vtanh.pop %v120
  %v123 = vadd.f32 %v121, 1.0
  %v124 = vadd.f32 %v122, 1.0
  %v125 = vmul.f32 %v109, %v123
  %v126 = vmul.f32 %v110, %v124
  %v127 = vld [vmem:[#allocation2] sm:$0xff]
  %v128 = vld [vmem:[#allocation2 + $0x8] sm:$0xff]
  %v129 = vpack.c.bf16 %v126, %v125
  %v130 = vld [vmem:[%s3] sm:$0xf]
  %v131 = vld [vmem:[%s3 + $0x4] sm:$0xf]
  %v132 = vld [vmem:[%s3 + $0x8] sm:$0xf]
  %v133 = vld [vmem:[%s3 + $0xc] sm:$0xf]
  %v134 = vld [vmem:[%s3 + $0x10] sm:$0xf]
  %v135 = vld [vmem:[%s3 + $0x14] sm:$0xf]
  %v136 = vld [vmem:[%s3 + $0x18] sm:$0xf]
  %v137 = vld [vmem:[%s3 + $0x1c] sm:$0xf]
  %v138 = vld [vmem:[%s3 + $0x20] sm:$0xf]
  %v139 = vld [vmem:[%s3 + $0x24] sm:$0xf]
  %v140 = vld [vmem:[%s3 + $0x28] sm:$0xf]
  %v141 = vld [vmem:[%s3 + $0x2c] sm:$0xf]
  %v142 = vld [vmem:[%s3 + $0x30] sm:$0xf]
  %v143 = vld [vmem:[%s3 + $0x34] sm:$0xf]
  %v144 = vld [vmem:[%s3 + $0x38] sm:$0xf]
  %v145 = vld [vmem:[%s3 + $0x3c] sm:$0xf]
  %v162 = vunpack.c.l.b16 %v130
  %v163 = vunpack.c.l.b16 %v131
  %v164 = vunpack.c.l.b16 %v132
  %v165 = vunpack.c.l.b16 %v133
  %v166 = vunpack.c.l.b16 %v134
  %v167 = vunpack.c.l.b16 %v135
  %v168 = vunpack.c.l.b16 %v136
  %v169 = vunpack.c.l.b16 %v137
  %v170 = vunpack.c.l.b16 %v138
  %v171 = vunpack.c.l.b16 %v139
  %v172 = vunpack.c.l.b16 %v140
  %v173 = vunpack.c.l.b16 %v141
  %v174 = vunpack.c.l.b16 %v142
  %v175 = vunpack.c.l.b16 %v143
  %v176 = vunpack.c.l.b16 %v144
  %v177 = vunpack.c.l.b16 %v145
  %v178 = vpack.c.b16 %v163, %v162
  %v179 = vpack.c.b16 %v165, %v164
  %v180 = vpack.c.b16 %v167, %v166
  %v181 = vpack.c.b16 %v169, %v168
  %v182 = vpack.c.b16 %v171, %v170
  %v183 = vpack.c.b16 %v173, %v172
  %v184 = vpack.c.b16 %v175, %v174
  %v185 = vpack.c.b16 %v177, %v176
  %194 = vmatprep.subr.bf16.mxu0 0
  %195 = vmatpush1.bf16.msra.mxu0 %v178
  %196 = vmatprep.subr.bf16.mxu0 0
  %197 = vmatpush1.bf16.msra.mxu0 %v179
  %198 = vmatprep.subr.bf16.mxu0 0
  %199 = vmatpush1.bf16.msra.mxu0 %v180
  %200 = vmatprep.subr.bf16.mxu0 0
  %201 = vmatpush1.bf16.msra.mxu0 %v181
  %202 = vmatprep.subr.bf16.mxu0 0
  %203 = vmatpush1.bf16.msra.mxu0 %v182
  %204 = vmatprep.subr.bf16.mxu0 0
  %205 = vmatpush1.bf16.msra.mxu0 %v183
  %206 = vmatprep.subr.bf16.mxu0 0
  %207 = vmatpush1.bf16.msra.mxu0 %v184
  %208 = vmatprep.subr.bf16.mxu0 0
  %209 = vmatpush1.bf16.msra.mxu0 %v185
  %210 = vmatprep.subr.bf16.mxu0 0
  %211 = vmatpush1.bf16.msra.mxu0 0
  %212 = vmatprep.subr.bf16.mxu0 0
  %213 = vmatpush1.bf16.msra.mxu0 0
  %214 = vmatprep.subr.bf16.mxu0 0
  %215 = vmatpush1.bf16.msra.mxu0 0
  %216 = vmatprep.subr.bf16.mxu0 0
  %217 = vmatpush1.bf16.msra.mxu0 0
  %218 = vmatprep.subr.bf16.mxu0 0
  %219 = vmatpush1.bf16.msra.mxu0 0
  %220 = vmatprep.subr.bf16.mxu0 0
  %221 = vmatpush1.bf16.msra.mxu0 0
  %222 = vmatprep.subr.bf16.mxu0 0
  %223 = vmatpush1.bf16.msra.mxu0 0
  %224 = vmatprep.subr.bf16.mxu0 0
  %225 = vmatpush1.bf16.msra.mxu0 0
  %226 = vmatprep.mubr.bf16.mxu0 0
  %227 = vmatmul.mubr.bf16.gmra.mrb[0].mxu0 %v129
  %v228 = vpop.f32.mrb[0].mxu0
  %v229 = vadd.f32 0.0, %v228
  %v230 = vpop.f32.mrb[0].mxu0
  %v231 = vpop.f32.mrb[0].mxu0
  %v232 = vadd.f32 0.0, %v231
  %v233 = vpop.f32.mrb[0].mxu0
  %234 = vdwg.mxu0
  %v235 = vadd.f32 %v127, %v229
  %v236 = vadd.f32 %v128, %v232
  %237 = vst.msk [vmem:[#allocation2] sm:$0xff] %vm64, %v235
  %238 = vst.msk [vmem:[#allocation2 + $0x8] sm:$0xff] %vm64, %v236
  // Predicated region
  $region34: #{lm_model_forward.9} parent=0 // pred_check
    %p239 = pneg %p27
  $region35: #{lm_model_forward.9} parent=0 // pred_check_branch
    %241 = sbr.rel (%p239) target = $region37
  $region36: #{lm_model_forward.9} parent=0 // pred_region
    %v242 = vld [vmem:[#allocation2] sm:$0xff]
    %v243 = vld [vmem:[#allocation2 + $0x8] sm:$0xff]
    %v244 = vld [vmem:[%s4] sm:$0x1]
    %v246 = vlaneseq
    %v247 = vshrl.u32 %v246, 7
    %v248 = vsub.s32 0, %v247
    %v249 = vrot.slane %v244, %v248
    %v251 = vadd.f32 %v242, %v249
    %v252 = vadd.f32 %v243, %v249
    %v253 = vld [vmem:[%s0] sm:$0xf]
    %v254 = vld [vmem:[%s0 + $0x4] sm:$0xf]
    %v255 = vunpack.c.l.bf16 %v253
    %v256 = vunpack.c.l.bf16 %v254
    %v257 = vadd.f32 %v255, %v251
    %v258 = vadd.f32 %v256, %v252
    %v259 = vld [vmem:[%s5] sm:$0x1]
    %v260 = vld [vmem:[%s6] sm:$0x1]
    %v261 = vsel %vm64, %v257, 0.0
    %262 = vadd.xlane.f32.xlu0 %v261
    %v263 = vpop.xlane.xlu0 %262
    %v264 = vsel %vm64, %v258, 0.0
    %265 = vadd.xlane.f32.xlu0 %v264
    %v266 = vpop.xlane.xlu0 %265
    %v267 = vrcp.pop 32.0
    %v268 = vmul.f32 %v263, %v267
    %v269 = vmul.f32 %v266, %v267
    %v270 = vsub.f32 %v257, %v268
    %v271 = vsub.f32 %v258, %v269
    %v272 = vmul.f32 %v270, %v270
    %v273 = vmul.f32 %v271, %v271
    %v274 = vsel %vm64, %v272, 0.0
    %275 = vadd.xlane.f32.xlu0 %v274
    %v276 = vpop.xlane.xlu0 %275
    %v277 = vsel %vm64, %v273, 0.0
    %278 = vadd.xlane.f32.xlu0 %v277
    %v279 = vpop.xlane.xlu0 %278
    %v280 = vmul.f32 %v276, %v267
    %v281 = vmul.f32 %v279, %v267
    %v282 = vadd.f32 %v280, 1e-05
    %v283 = vadd.f32 %v281, 1e-05
    %v284 = vrsqrt.pop %v282
    %v285 = vrsqrt.pop %v283
    %v286 = vmul.f32 %v270, %v284
    %v287 = vmul.f32 %v271, %v285
    %v289 = vlaneseq
    %v290 = vshrl.u32 %v289, 7
    %v291 = vsub.s32 0, %v290
    %v292 = vrot.slane %v259, %v291
    %v294 = vmul.f32 %v286, %v292
    %v295 = vmul.f32 %v287, %v292
    %v297 = vlaneseq
    %v298 = vshrl.u32 %v297, 7
    %v299 = vsub.s32 0, %v298
    %v300 = vrot.slane %v260, %v299
    %v302 = vadd.f32 %v294, %v300
    %v303 = vadd.f32 %v295, %v300
    %v304 = vpack.c.bf16 %v303, %v302
    %v306 = vunpack.c.l.b16 %v304
    %v307 = vunpack.c.h.b16 %v304
    %v308 = vpack.c.b16 %v306, %v306
    %v309 = vpack.c.b16 %v307, %v307
    %vm312 = vcmask 257024
    %313 = vst.msk [vmem:[%s7] sm:$0xf] %vm312, %v308
    %314 = vst.msk [vmem:[%s7 + $0x4] sm:$0xf] %vm312, %v309
  $region37: #{lm_model_forward.9} parent=0 // pred_fallthru
    _
  // Predicated region
  $region38: #{lm_model_forward.9} parent=0 // pred_check
    _
  $region39: #{lm_model_forward.9} parent=0 // pred_check_branch
    %316 = sbr.rel (0) target = $region41
  $region40: #{lm_model_forward.9} parent=0 // pred_region
    _
  $region41: #{lm_model_forward.9} parent=0 // pred_fallthru
    _
  // Predicated region
  $region42: #{lm_model_forward.9} parent=0 // pred_check
    _
  $region43: #{lm_model_forward.9} parent=0 // pred_check_branch
    %318 = sbr.rel (0) target = $region45
  $region44: #{lm_model_forward.9} parent=0 // pred_region
    _
  $region45: #{lm_model_forward.9} parent=0 // pred_fallthru
    _

// kernel: lm_model_forward.7
$region0: #{lm_model_forward.7}
  #allocation0 [shape = 'u32[]', space=smem, size = 0x4, offset = 0x4, fixed_abs, tag = 'smem constant byte address 0x4 - core index']
  #allocation1 [shape = 'u32[144,128]{1,0:T(1,128)}', space=vmem, size = 0x12000, scoped, tag = 'internal scratch']
  %s0 = inlined_call_operand.vmem [shape: bf16[16,32], index: 0, kind: input, shape index: {}]
  %s1 = inlined_call_operand.vmem [shape: bf16[32,32], index: 1, kind: input, shape index: {}]
  %s2 = inlined_call_operand.vmem [shape: bf16[32,32], index: 2, kind: input, shape index: {}]
  %s3 = inlined_call_operand.vmem [shape: bf16[32,32], index: 3, kind: input, shape index: {}]
  %s4 = inlined_call_operand.vmem [shape: f32[1,32], index: 4, kind: input, shape index: {}]
  %s5 = inlined_call_operand.vmem [shape: f32[1,32], index: 5, kind: input, shape index: {}]
  %s6 = inlined_call_operand.vmem [shape: f32[1,32], index: 6, kind: input, shape index: {}]
  %s7 = inlined_call_operand.vmem [shape: bf16[4,16,8], index: 7, kind: output, shape index: {0}]
  %s8 = inlined_call_operand.vmem [shape: bf16[4,16,8], index: 8, kind: output, shape index: {1}]
  %s9 = inlined_call_operand.vmem [shape: bf16[4,16,8], index: 9, kind: output, shape index: {2}]
  %10 = xla_tuple %s7, %s8, %s9
  %s11 = sld [smem:[#allocation0]]
  $region54: #{lm_model_forward.7} parent=0
    _
  %s13 = ssub.s32 1, %s11
  %s14 = scalar_select 0, %s13, %s11
  // Predicated region
  $region2: #{lm_model_forward.7} parent=0 // pred_check
    _
  $region3: #{lm_model_forward.7} parent=0 // pred_check_branch
    %16 = sbr.rel (0) target = $region5
  $region4: #{lm_model_forward.7} parent=0 // pred_region
    _
  $region5: #{lm_model_forward.7} parent=0 // pred_fallthru
    _
  // Predicated region
  $region6: #{lm_model_forward.7} parent=0 // pred_check
    _
  $region7: #{lm_model_forward.7} parent=0 // pred_check_branch
    %18 = sbr.rel (0) target = $region9
  $region8: #{lm_model_forward.7} parent=0 // pred_region
    _
  $region9: #{lm_model_forward.7} parent=0 // pred_fallthru
    _
  // Predicated region
  $region10: #{lm_model_forward.7} parent=0 // pred_check
    _
  $region11: #{lm_model_forward.7} parent=0 // pred_check_branch
    %20 = sbr.rel (0) target = $region13
  $region12: #{lm_model_forward.7} parent=0 // pred_region
    _
  $region13: #{lm_model_forward.7} parent=0 // pred_fallthru
    _
  // Predicated region
  $region14: #{lm_model_forward.7} parent=0 // pred_check
    _
  $region15: #{lm_model_forward.7} parent=0 // pred_check_branch
    %22 = sbr.rel (0) target = $region17
  $region16: #{lm_model_forward.7} parent=0 // pred_region
    _
  $region17: #{lm_model_forward.7} parent=0 // pred_fallthru
    _
  // Predicated region
  $region18: #{lm_model_forward.7} parent=0 // pred_check
    _
  $region19: #{lm_model_forward.7} parent=0 // pred_check_branch
    %24 = sbr.rel (0) target = $region21
  $region20: #{lm_model_forward.7} parent=0 // pred_region
    _
  $region21: #{lm_model_forward.7} parent=0 // pred_fallthru
    _
  // Predicated region
  $region22: #{lm_model_forward.7} parent=0 // pred_check
    _
  $region23: #{lm_model_forward.7} parent=0 // pred_check_branch
    %26 = sbr.rel (0) target = $region25
  $region24: #{lm_model_forward.7} parent=0 // pred_region
    _
  $region25: #{lm_model_forward.7} parent=0 // pred_fallthru
    _
  // Predicated region
  $region26: #{lm_model_forward.7} parent=0 // pred_check
    _
  $region27: #{lm_model_forward.7} parent=0 // pred_check_branch
    %28 = sbr.rel (0) target = $region29
  $region28: #{lm_model_forward.7} parent=0 // pred_region
    _
  $region29: #{lm_model_forward.7} parent=0 // pred_fallthru
    _
  %v30 = vld [vmem:[%s0] sm:$0xf]
  %v31 = vld [vmem:[%s0 + $0x4] sm:$0xf]
  %v32 = vld [vmem:[%s1] sm:$0xf]
  %v33 = vld [vmem:[%s1 + $0x4] sm:$0xf]
  %v34 = vld [vmem:[%s1 + $0x8] sm:$0xf]
  %v35 = vld [vmem:[%s1 + $0xc] sm:$0xf]
  %v36 = vld [vmem:[%s4] sm:$0x1]
  %v38 = vlaneseq
  %v39 = vshrl.u32 %v38, 7
  %v40 = vsub.s32 0, %v39
  %v41 = vrot.slane %v36, %v40
  %v45 = vunpack.c.l.b16 %v30
  %v46 = vunpack.c.l.b16 %v31
  %v47 = vpack.c.b16 %v46, %v45
  %v52 = vunpack.c.l.b16 %v32
  %v53 = vunpack.c.l.b16 %v33
  %v54 = vunpack.c.l.b16 %v34
  %v55 = vunpack.c.l.b16 %v35
  %v56 = vpack.c.b16 %v53, %v52
  %v57 = vpack.c.b16 %v55, %v54
  %vm60 = vcmask 261120
  %v62 = vsel %vm60, %v47, 0
  %64 = vmatprep.subr.bf16.mxu0 0
  %65 = vmatpush1.bf16.msra.mxu0 %v56
  %66 = vmatprep.subr.bf16.mxu0 0
  %67 = vmatpush1.bf16.msra.mxu0 %v57
  %68 = vmatprep.subr.bf16.mxu0 0
  %69 = vmatpush1.bf16.msra.mxu0 0
  %70 = vmatprep.subr.bf16.mxu0 0
  %71 = vmatpush1.bf16.msra.mxu0 0
  %72 = vmatprep.subr.bf16.mxu0 0
  %73 = vmatpush1.bf16.msra.mxu0 0
  %74 = vmatprep.subr.bf16.mxu0 0
  %75 = vmatpush1.bf16.msra.mxu0 0
  %76 = vmatprep.subr.bf16.mxu0 0
  %77 = vmatpush1.bf16.msra.mxu0 0
  %78 = vmatprep.subr.bf16.mxu0 0
  %79 = vmatpush1.bf16.msra.mxu0 0
  %80 = vmatprep.subr.bf16.mxu0 0
  %81 = vmatpush1.bf16.msra.mxu0 0
  %82 = vmatprep.subr.bf16.mxu0 0
  %83 = vmatpush1.bf16.msra.mxu0 0
  %84 = vmatprep.subr.bf16.mxu0 0
  %85 = vmatpush1.bf16.msra.mxu0 0
  %86 = vmatprep.subr.bf16.mxu0 0
  %87 = vmatpush1.bf16.msra.mxu0 0
  %88 = vmatprep.subr.bf16.mxu0 0
  %89 = vmatpush1.bf16.msra.mxu0 0
  %90 = vmatprep.subr.bf16.mxu0 0
  %91 = vmatpush1.bf16.msra.mxu0 0
  %92 = vmatprep.subr.bf16.mxu0 0
  %93 = vmatpush1.bf16.msra.mxu0 0
  %94 = vmatprep.subr.bf16.mxu0 0
  %95 = vmatpush1.bf16.msra.mxu0 0
  %96 = vmatprep.mubr.bf16.mxu0 0
  %97 = vmatmul.mubr.bf16.gmra.mrb[0].mxu0 %v62
  %v98 = vpop.f32.mrb[0].mxu0
  %v99 = vadd.f32 %v41, %v98
  %v100 = vpop.f32.mrb[0].mxu0
  %v101 = vpop.f32.mrb[0].mxu0
  %v102 = vadd.f32 %v41, %v101
  %v103 = vpop.f32.mrb[0].mxu0
  %104 = vdwg.mxu0
  %v105 = vmul.f32 %v99, 0.35355338
  %v106 = vmul.f32 %v102, 0.35355338
  %109 = vrot.lane.b32.xlu0 %v105, 120
  %v110 = vpop.permute.xlu0 %109
  %111 = vrot.lane.b32.xlu0 %v106, 120
  %v112 = vpop.permute.xlu0 %111
  %115 = vrot.lane.b32.xlu0 %v105, 112
  %v116 = vpop.permute.xlu0 %115
  %117 = vrot.lane.b32.xlu0 %v106, 112
  %v118 = vpop.permute.xlu0 %117
  %121 = vrot.lane.b32.xlu0 %v105, 104
  %v122 = vpop.permute.xlu0 %121
  %123 = vrot.lane.b32.xlu0 %v106, 104
  %v124 = vpop.permute.xlu0 %123
  %v127 = vcombine.low %v105, %v116
  %v128 = vcombine.high %v105, %v116
  %v130 = vunpack.c.l.s4 1983009808
  %v131 = vunpack.c.0.s8 %v130
  %v132 = vlaneseq
  %v133 = vshrl.u32 %v132, 7
  %v134 = vsub.s32 %v131, %v133
  %v135 = vrot.slane %v127, %v134
  %v137 = vunpack.c.l.s4 1983009808
  %v138 = vunpack.c.0.s8 %v137
  %v139 = vlaneseq
  %v140 = vshrl.u32 %v139, 7
  %v141 = vsub.s32 %v138, %v140
  %v142 = vrot.slane %v128, %v141
  %v143 = vcombine.low %v110, %v122
  %v144 = vcombine.high %v110, %v122
  %v146 = vunpack.c.l.s4 1983009808
  %v147 = vunpack.c.0.s8 %v146
  %v148 = vlaneseq
  %v149 = vshrl.u32 %v148, 7
  %v150 = vsub.s32 %v147, %v149
  %v151 = vrot.slane %v143, %v150
  %v153 = vunpack.c.l.s4 1983009808
  %v154 = vunpack.c.0.s8 %v153
  %v155 = vlaneseq
  %v156 = vshrl.u32 %v155, 7
  %v157 = vsub.s32 %v154, %v156
  %v158 = vrot.slane %v144, %v157
  %v159 = vcombine.low %v135, %v151
  %v160 = vcombine.high %v135, %v151
  %v162 = vunpack.c.l.s4 1934713408
  %v163 = vunpack.c.0.s8 %v162
  %v164 = vlaneseq
  %v165 = vshrl.u32 %v164, 7
  %v166 = vsub.s32 %v163, %v165
  %v167 = vrot.slane %v159, %v166
  %v169 = vunpack.c.l.s4 1934713408
  %v170 = vunpack.c.0.s8 %v169
  %v171 = vlaneseq
  %v172 = vshrl.u32 %v171, 7
  %v173 = vsub.s32 %v170, %v172
  %v174 = vrot.slane %v160, %v173
  %v175 = vcombine.low %v142, %v158
  %v176 = vcombine.high %v142, %v158
  %v178 = vunpack.c.l.s4 1934713408
  %v179 = vunpack.c.0.s8 %v178
  %v180 = vlaneseq
  %v181 = vshrl.u32 %v180, 7
  %v182 = vsub.s32 %v179, %v181
  %v183 = vrot.slane %v175, %v182
  %v185 = vunpack.c.l.s4 1934713408
  %v186 = vunpack.c.0.s8 %v185
  %v187 = vlaneseq
  %v188 = vshrl.u32 %v187, 7
  %v189 = vsub.s32 %v186, %v188
  %v190 = vrot.slane %v176, %v189
  %v191 = vcombine.high %v167, 0.0
  %v192 = vcombine.high %v174, 0.0
  %v193 = vcombine.high %v183, 0.0
  %v194 = vcombine.high %v190, 0.0
  %v195 = vcombine.low %v106, %v118
  %v196 = vcombine.high %v106, %v118
  %v198 = vunpack.c.l.s4 1983009808
  %v199 = vunpack.c.0.s8 %v198
  %v200 = vlaneseq
  %v201 = vshrl.u32 %v200, 7
  %v202 = vsub.s32 %v199, %v201
  %v203 = vrot.slane %v195, %v202
  %v205 = vunpack.c.l.s4 1983009808
  %v206 = vunpack.c.0.s8 %v205
  %v207 = vlaneseq
  %v208 = vshrl.u32 %v207, 7
  %v209 = vsub.s32 %v206, %v208
  %v210 = vrot.slane %v196, %v209
  %v211 = vcombine.low %v112, %v124
  %v212 = vcombine.high %v112, %v124
  %v214 = vunpack.c.l.s4 1983009808
  %v215 = vunpack.c.0.s8 %v214
  %v216 = vlaneseq
  %v217 = vshrl.u32 %v216, 7
  %v218 = vsub.s32 %v215, %v217
  %v219 = vrot.slane %v211, %v218
  %v221 = vunpack.c.l.s4 1983009808
  %v222 = vunpack.c.0.s8 %v221
  %v223 = vlaneseq
  %v224 = vshrl.u32 %v223, 7
  %v225 = vsub.s32 %v222, %v224
  %v226 = vrot.slane %v212, %v225
  %v227 = vcombine.low %v203, %v219
  %v228 = vcombine.high %v203, %v219
  %v230 = vunpack.c.l.s4 1934713408
  %v231 = vunpack.c.0.s8 %v230
  %v232 = vlaneseq
  %v233 = vshrl.u32 %v232, 7
  %v234 = vsub.s32 %v231, %v233
  %v235 = vrot.slane %v227, %v234
  %v237 = vunpack.c.l.s4 1934713408
  %v238 = vunpack.c.0.s8 %v237
  %v239 = vlaneseq
  %v240 = vshrl.u32 %v239, 7
  %v241 = vsub.s32 %v238, %v240
  %v242 = vrot.slane %v228, %v241
  %v243 = vcombine.low %v210, %v226
  %v244 = vcombine.high %v210, %v226
  %v246 = vunpack.c.l.s4 1934713408
  %v247 = vunpack.c.0.s8 %v246
  %v248 = vlaneseq
  %v249 = vshrl.u32 %v248, 7
  %v250 = vsub.s32 %v247, %v249
  %v251 = vrot.slane %v243, %v250
  %v253 = vunpack.c.l.s4 1934713408
  %v254 = vunpack.c.0.s8 %v253
  %v255 = vlaneseq
  %v256 = vshrl.u32 %v255, 7
  %v257 = vsub.s32 %v254, %v256
  %v258 = vrot.slane %v244, %v257
  %v259 = vcombine.high %v235, 0.0
  %v260 = vcombine.high %v242, 0.0
  %v261 = vcombine.high %v251, 0.0
  %v262 = vcombine.high %v258, 0.0
  %v263 = vcombine.low %v167, %v174
  %v265 = vunpack.c.l.s4 1983009808
  %v266 = vunpack.c.0.s8 %v265
  %v267 = vlaneseq
  %v268 = vshrl.u32 %v267, 7
  %v269 = vsub.s32 %v266, %v268
  %v270 = vrot.slane %v263, %v269
  %v271 = vcombine.low %v191, %v192
  %v273 = vunpack.c.l.s4 1983009808
  %v274 = vunpack.c.0.s8 %v273
  %v275 = vlaneseq
  %v276 = vshrl.u32 %v275, 7
  %v277 = vsub.s32 %v274, %v276
  %v278 = vrot.slane %v271, %v277
  %v279 = vcombine.low %v183, %v190
  %v281 = vunpack.c.l.s4 1983009808
  %v282 = vunpack.c.0.s8 %v281
  %v283 = vlaneseq
  %v284 = vshrl.u32 %v283, 7
  %v285 = vsub.s32 %v282, %v284
  %v286 = vrot.slane %v279, %v285
  %v287 = vcombine.low %v193, %v194
  %v289 = vunpack.c.l.s4 1983009808
  %v290 = vunpack.c.0.s8 %v289
  %v291 = vlaneseq
  %v292 = vshrl.u32 %v291, 7
  %v293 = vsub.s32 %v290, %v292
  %v294 = vrot.slane %v287, %v293
  %v295 = vcombine.low %v270, %v278
  %v296 = vcombine.high %v270, %v278
  %v298 = vunpack.c.l.s4 1934713408
  %v299 = vunpack.c.0.s8 %v298
  %v300 = vlaneseq
  %v301 = vshrl.u32 %v300, 7
  %v302 = vsub.s32 %v299, %v301
  %v303 = vrot.slane %v295, %v302
  %v305 = vunpack.c.l.s4 1934713408
  %v306 = vunpack.c.0.s8 %v305
  %v307 = vlaneseq
  %v308 = vshrl.u32 %v307, 7
  %v309 = vsub.s32 %v306, %v308
  %v310 = vrot.slane %v296, %v309
  %v311 = vcombine.low %v286, %v294
  %v312 = vcombine.high %v286, %v294
  %v314 = vunpack.c.l.s4 1934713408
  %v315 = vunpack.c.0.s8 %v314
  %v316 = vlaneseq
  %v317 = vshrl.u32 %v316, 7
  %v318 = vsub.s32 %v315, %v317
  %v319 = vrot.slane %v311, %v318
  %v321 = vunpack.c.l.s4 1934713408
  %v322 = vunpack.c.0.s8 %v321
  %v323 = vlaneseq
  %v324 = vshrl.u32 %v323, 7
  %v325 = vsub.s32 %v322, %v324
  %v326 = vrot.slane %v312, %v325
  %v327 = vcombine.low %v303, %v319
  %v328 = vcombine.high %v303, %v319
  %v329 = vcombine.low %v310, %v326
  %v330 = vcombine.high %v310, %v326
  %v331 = vcombine.low %v235, %v242
  %v333 = vunpack.c.l.s4 1983009808
  %v334 = vunpack.c.0.s8 %v333
  %v335 = vlaneseq
  %v336 = vshrl.u32 %v335, 7
  %v337 = vsub.s32 %v334, %v336
  %v338 = vrot.slane %v331, %v337
  %v339 = vcombine.low %v259, %v260
  %v341 = vunpack.c.l.s4 1983009808
  %v342 = vunpack.c.0.s8 %v341
  %v343 = vlaneseq
  %v344 = vshrl.u32 %v343, 7
  %v345 = vsub.s32 %v342, %v344
  %v346 = vrot.slane %v339, %v345
  %v347 = vcombine.low %v251, %v258
  %v349 = vunpack.c.l.s4 1983009808
  %v350 = vunpack.c.0.s8 %v349
  %v351 = vlaneseq
  %v352 = vshrl.u32 %v351, 7
  %v353 = vsub.s32 %v350, %v352
  %v354 = vrot.slane %v347, %v353
  %v355 = vcombine.low %v261, %v262
  %v357 = vunpack.c.l.s4 1983009808
  %v358 = vunpack.c.0.s8 %v357
  %v359 = vlaneseq
  %v360 = vshrl.u32 %v359, 7
  %v361 = vsub.s32 %v358, %v360
  %v362 = vrot.slane %v355, %v361
  %v363 = vcombine.low %v338, %v346
  %v364 = vcombine.high %v338, %v346
  %v366 = vunpack.c.l.s4 1934713408
  %v367 = vunpack.c.0.s8 %v366
  %v368 = vlaneseq
  %v369 = vshrl.u32 %v368, 7
  %v370 = vsub.s32 %v367, %v369
  %v371 = vrot.slane %v363, %v370
  %v373 = vunpack.c.l.s4 1934713408
  %v374 = vunpack.c.0.s8 %v373
  %v375 = vlaneseq
  %v376 = vshrl.u32 %v375, 7
  %v377 = vsub.s32 %v374, %v376
  %v378 = vrot.slane %v364, %v377
  %v379 = vcombine.low %v354, %v362
  %v380 = vcombine.high %v354, %v362
  %v382 = vunpack.c.l.s4 1934713408
  %v383 = vunpack.c.0.s8 %v382
  %v384 = vlaneseq
  %v385 = vshrl.u32 %v384, 7
  %v386 = vsub.s32 %v383, %v385
  %v387 = vrot.slane %v379, %v386
  %v389 = vunpack.c.l.s4 1934713408
  %v390 = vunpack.c.0.s8 %v389
  %v391 = vlaneseq
  %v392 = vshrl.u32 %v391, 7
  %v393 = vsub.s32 %v390, %v392
  %v394 = vrot.slane %v380, %v393
  %v395 = vcombine.low %v371, %v387
  %v396 = vcombine.high %v371, %v387
  %v397 = vcombine.low %v378, %v394
  %v398 = vcombine.high %v378, %v394
  %v399 = vpack.c.bf16 %v395, %v327
  %v400 = vpack.c.bf16 %v396, %v328
  %v401 = vpack.c.bf16 %v397, %v329
  %v402 = vpack.c.bf16 %v398, %v330
  %v407 = vunpack.c.l.b16 %v399
  %v408 = vunpack.c.h.b16 %v399
  %v409 = vunpack.c.l.b16 %v400
  %v410 = vunpack.c.h.b16 %v400
  %v411 = vunpack.c.l.b16 %v401
  %v412 = vunpack.c.h.b16 %v401
  %v413 = vunpack.c.l.b16 %v402
  %v414 = vunpack.c.h.b16 %v402
  %v415 = vpack.c.b16 %v407, %v407
  %v416 = vpack.c.b16 %v408, %v408
  %v417 = vpack.c.b16 %v409, %v409
  %v418 = vpack.c.b16 %v410, %v410
  %v419 = vpack.c.b16 %v411, %v411
  %v420 = vpack.c.b16 %v412, %v412
  %v421 = vpack.c.b16 %v413, %v413
  %v422 = vpack.c.b16 %v414, %v414
  %vm431 = vcmask 60416
  %432 = vst.msk [vmem:[%s7] sm:$0xf] %vm431, %v415
  %433 = vst.msk [vmem:[%s7 + $0x4] sm:$0xf] %vm431, %v416
  %434 = vst.msk [vmem:[%s7 + $0x8] sm:$0xf] %vm431, %v417
  %435 = vst.msk [vmem:[%s7 + $0xc] sm:$0xf] %vm431, %v418
  %436 = vst.msk [vmem:[%s7 + $0x10] sm:$0xf] %vm431, %v419
  %437 = vst.msk [vmem:[%s7 + $0x14] sm:$0xf] %vm431, %v420
  %438 = vst.msk [vmem:[%s7 + $0x18] sm:$0xf] %vm431, %v421
  %439 = vst.msk [vmem:[%s7 + $0x1c] sm:$0xf] %vm431, %v422
  %v440 = vld [vmem:[%s2] sm:$0xf]
  %v441 = vld [vmem:[%s2 + $0x4] sm:$0xf]
  %v442 = vld [vmem:[%s2 + $0x8] sm:$0xf]
  %v443 = vld [vmem:[%s2 + $0xc] sm:$0xf]
  %v444 = vld [vmem:[%s5] sm:$0x1]
  %v446 = vlaneseq
  %v447 = vshrl.u32 %v446, 7
  %v448 = vsub.s32 0, %v447
  %v449 = vrot.slane %v444, %v448
  %v455 = vunpack.c.l.b16 %v440
  %v456 = vunpack.c.l.b16 %v441
  %v457 = vunpack.c.l.b16 %v442
  %v458 = vunpack.c.l.b16 %v443
  %v459 = vpack.c.b16 %v456, %v455
  %v460 = vpack.c.b16 %v458, %v457
  %463 = vmatprep.subr.bf16.mxu0 0
  %464 = vmatpush1.bf16.msra.mxu0 %v459
  %465 = vmatprep.subr.bf16.mxu0 0
  %466 = vmatpush1.bf16.msra.mxu0 %v460
  %467 = vmatprep.subr.bf16.mxu0 0
  %468 = vmatpush1.bf16.msra.mxu0 0
  %469 = vmatprep.subr.bf16.mxu0 0
  %470 = vmatpush1.bf16.msra.mxu0 0
  %471 = vmatprep.subr.bf16.mxu0 0
  %472 = vmatpush1.bf16.msra.mxu0 0
  %473 = vmatprep.subr.bf16.mxu0 0
  %474 = vmatpush1.bf16.msra.mxu0 0
  %475 = vmatprep.subr.bf16.mxu0 0
  %476 = vmatpush1.bf16.msra.mxu0 0
  %477 = vmatprep.subr.bf16.mxu0 0
  %478 = vmatpush1.bf16.msra.mxu0 0
  %479 = vmatprep.subr.bf16.mxu0 0
  %480 = vmatpush1.bf16.msra.mxu0 0
  %481 = vmatprep.subr.bf16.mxu0 0
  %482 = vmatpush1.bf16.msra.mxu0 0
  %483 = vmatprep.subr.bf16.mxu0 0
  %484 = vmatpush1.bf16.msra.mxu0 0
  %485 = vmatprep.subr.bf16.mxu0 0
  %486 = vmatpush1.bf16.msra.mxu0 0
  %487 = vmatprep.subr.bf16.mxu0 0
  %488 = vmatpush1.bf16.msra.mxu0 0
  %489 = vmatprep.subr.bf16.mxu0 0
  %490 = vmatpush1.bf16.msra.mxu0 0
  %491 = vmatprep.subr.bf16.mxu0 0
  %492 = vmatpush1.bf16.msra.mxu0 0
  %493 = vmatprep.subr.bf16.mxu0 0
  %494 = vmatpush1.bf16.msra.mxu0 0
  %495 = vmatprep.mubr.bf16.mxu0 0
  %496 = vmatmul.mubr.bf16.gmra.mrb[0].mxu0 %v62
  %v497 = vpop.f32.mrb[0].mxu0
  %v498 = vadd.f32 %v449, %v497
  %v499 = vpop.f32.mrb[0].mxu0
  %v500 = vpop.f32.mrb[0].mxu0
  %v501 = vadd.f32 %v449, %v500
  %v502 = vpop.f32.mrb[0].mxu0
  %503 = vdwg.mxu0
  %506 = vrot.lane.b32.xlu0 %v498, 120
  %v507 = vpop.permute.xlu0 %506
  %508 = vrot.lane.b32.xlu0 %v501, 120
  %v509 = vpop.permute.xlu0 %508
  %512 = vrot.lane.b32.xlu0 %v498, 112
  %v513 = vpop.permute.xlu0 %512
  %514 = vrot.lane.b32.xlu0 %v501, 112
  %v515 = vpop.permute.xlu0 %514
  %518 = vrot.lane.b32.xlu0 %v498, 104
  %v519 = vpop.permute.xlu0 %518
  %520 = vrot.lane.b32.xlu0 %v501, 104
  %v521 = vpop.permute.xlu0 %520
  %v524 = vcombine.low %v498, %v513
  %v525 = vcombine.high %v498, %v513
  %v527 = vunpack.c.l.s4 1983009808
  %v528 = vunpack.c.0.s8 %v527
  %v529 = vlaneseq
  %v530 = vshrl.u32 %v529, 7
  %v531 = vsub.s32 %v528, %v530
  %v532 = vrot.slane %v524, %v531
  %v534 = vunpack.c.l.s4 1983009808
  %v535 = vunpack.c.0.s8 %v534
  %v536 = vlaneseq
  %v537 = vshrl.u32 %v536, 7
  %v538 = vsub.s32 %v535, %v537
  %v539 = vrot.slane %v525, %v538
  %v540 = vcombine.low %v507, %v519
  %v541 = vcombine.high %v507, %v519
  %v543 = vunpack.c.l.s4 1983009808
  %v544 = vunpack.c.0.s8 %v543
  %v545 = vlaneseq
  %v546 = vshrl.u32 %v545, 7
  %v547 = vsub.s32 %v544, %v546
  %v548 = vrot.slane %v540, %v547
  %v550 = vunpack.c.l.s4 1983009808
  %v551 = vunpack.c.0.s8 %v550
  %v552 = vlaneseq
  %v553 = vshrl.u32 %v552, 7
  %v554 = vsub.s32 %v551, %v553
  %v555 = vrot.slane %v541, %v554
  %v556 = vcombine.low %v532, %v548
  %v557 = vcombine.high %v532, %v548
  %v559 = vunpack.c.l.s4 1934713408
  %v560 = vunpack.c.0.s8 %v559
  %v561 = vlaneseq
  %v562 = vshrl.u32 %v561, 7
  %v563 = vsub.s32 %v560, %v562
  %v564 = vrot.slane %v556, %v563
  %v566 = vunpack.c.l.s4 1934713408
  %v567 = vunpack.c.0.s8 %v566
  %v568 = vlaneseq
  %v569 = vshrl.u32 %v568, 7
  %v570 = vsub.s32 %v567, %v569
  %v571 = vrot.slane %v557, %v570
  %v572 = vcombine.low %v539, %v555
  %v573 = vcombine.high %v539, %v555
  %v575 = vunpack.c.l.s4 1934713408
  %v576 = vunpack.c.0.s8 %v575
  %v577 = vlaneseq
  %v578 = vshrl.u32 %v577, 7
  %v579 = vsub.s32 %v576, %v578
  %v580 = vrot.slane %v572, %v579
  %v582 = vunpack.c.l.s4 1934713408
  %v583 = vunpack.c.0.s8 %v582
  %v584 = vlaneseq
  %v585 = vshrl.u32 %v584, 7
  %v586 = vsub.s32 %v583, %v585
  %v587 = vrot.slane %v573, %v586
  %v588 = vcombine.high %v564, 0.0
  %v589 = vcombine.high %v571, 0.0
  %v590 = vcombine.high %v580, 0.0
  %v591 = vcombine.high %v587, 0.0
  %v592 = vcombine.low %v501, %v515
  %v593 = vcombine.high %v501, %v515
  %v595 = vunpack.c.l.s4 1983009808
  %v596 = vunpack.c.0.s8 %v595
  %v597 = vlaneseq
  %v598 = vshrl.u32 %v597, 7
  %v599 = vsub.s32 %v596, %v598
  %v600 = vrot.slane %v592, %v599
  %v602 = vunpack.c.l.s4 1983009808
  %v603 = vunpack.c.0.s8 %v602
  %v604 = vlaneseq
  %v605 = vshrl.u32 %v604, 7
  %v606 = vsub.s32 %v603, %v605
  %v607 = vrot.slane %v593, %v606
  %v608 = vcombine.low %v509, %v521
  %v609 = vcombine.high %v509, %v521
  %v611 = vunpack.c.l.s4 1983009808
  %v612 = vunpack.c.0.s8 %v611
  %v613 = vlaneseq
  %v614 = vshrl.u32 %v613, 7
  %v615 = vsub.s32 %v612, %v614
  %v616 = vrot.slane %v608, %v615
  %v618 = vunpack.c.l.s4 1983009808
  %v619 = vunpack.c.0.s8 %v618
  %v620 = vlaneseq
  %v621 = vshrl.u32 %v620, 7
  %v622 = vsub.s32 %v619, %v621
  %v623 = vrot.slane %v609, %v622
  %v624 = vcombine.low %v600, %v616
  %v625 = vcombine.high %v600, %v616
  %v627 = vunpack.c.l.s4 1934713408
  %v628 = vunpack.c.0.s8 %v627
  %v629 = vlaneseq
  %v630 = vshrl.u32 %v629, 7
  %v631 = vsub.s32 %v628, %v630
  %v632 = vrot.slane %v624, %v631
  %v634 = vunpack.c.l.s4 1934713408
  %v635 = vunpack.c.0.s8 %v634
  %v636 = vlaneseq
  %v637 = vshrl.u32 %v636, 7
  %v638 = vsub.s32 %v635, %v637
  %v639 = vrot.slane %v625, %v638
  %v640 = vcombine.low %v607, %v623
  %v641 = vcombine.high %v607, %v623
  %v643 = vunpack.c.l.s4 1934713408
  %v644 = vunpack.c.0.s8 %v643
  %v645 = vlaneseq
  %v646 = vshrl.u32 %v645, 7
  %v647 = vsub.s32 %v644, %v646
  %v648 = vrot.slane %v640, %v647
  %v650 = vunpack.c.l.s4 1934713408
  %v651 = vunpack.c.0.s8 %v650
  %v652 = vlaneseq
  %v653 = vshrl.u32 %v652, 7
  %v654 = vsub.s32 %v651, %v653
  %v655 = vrot.slane %v641, %v654
  %v656 = vcombine.high %v632, 0.0
  %v657 = vcombine.high %v639, 0.0
  %v658 = vcombine.high %v648, 0.0
  %v659 = vcombine.high %v655, 0.0
  %v660 = vcombine.low %v564, %v571
  %v662 = vunpack.c.l.s4 1983009808
  %v663 = vunpack.c.0.s8 %v662
  %v664 = vlaneseq
  %v665 = vshrl.u32 %v664, 7
  %v666 = vsub.s32 %v663, %v665
  %v667 = vrot.slane %v660, %v666
  %v668 = vcombine.low %v588, %v589
  %v670 = vunpack.c.l.s4 1983009808
  %v671 = vunpack.c.0.s8 %v670
  %v672 = vlaneseq
  %v673 = vshrl.u32 %v672, 7
  %v674 = vsub.s32 %v671, %v673
  %v675 = vrot.slane %v668, %v674
  %v676 = vcombine.low %v580, %v587
  %v678 = vunpack.c.l.s4 1983009808
  %v679 = vunpack.c.0.s8 %v678
  %v680 = vlaneseq
  %v681 = vshrl.u32 %v680, 7
  %v682 = vsub.s32 %v679, %v681
  %v683 = vrot.slane %v676, %v682
  %v684 = vcombine.low %v590, %v591
  %v686 = vunpack.c.l.s4 1983009808
  %v687 = vunpack.c.0.s8 %v686
  %v688 = vlaneseq
  %v689 = vshrl.u32 %v688, 7
  %v690 = vsub.s32 %v687, %v689
  %v691 = vrot.slane %v684, %v690
  %v692 = vcombine.low %v667, %v675
  %v693 = vcombine.high %v667, %v675
  %v695 = vunpack.c.l.s4 1934713408
  %v696 = vunpack.c.0.s8 %v695
  %v697 = vlaneseq
  %v698 = vshrl.u32 %v697, 7
  %v699 = vsub.s32 %v696, %v698
  %v700 = vrot.slane %v692, %v699
  %v702 = vunpack.c.l.s4 1934713408
  %v703 = vunpack.c.0.s8 %v702
  %v704 = vlaneseq
  %v705 = vshrl.u32 %v704, 7
  %v706 = vsub.s32 %v703, %v705
  %v707 = vrot.slane %v693, %v706
  %v708 = vcombine.low %v683, %v691
  %v709 = vcombine.high %v683, %v691
  %v711 = vunpack.c.l.s4 1934713408
  %v712 = vunpack.c.0.s8 %v711
  %v713 = vlaneseq
  %v714 = vshrl.u32 %v713, 7
  %v715 = vsub.s32 %v712, %v714
  %v716 = vrot.slane %v708, %v715
  %v718 = vunpack.c.l.s4 1934713408
  %v719 = vunpack.c.0.s8 %v718
  %v720 = vlaneseq
  %v721 = vshrl.u32 %v720, 7
  %v722 = vsub.s32 %v719, %v721
  %v723 = vrot.slane %v709, %v722
  %v724 = vcombine.low %v700, %v716
  %v725 = vcombine.high %v700, %v716
  %v726 = vcombine.low %v707, %v723
  %v727 = vcombine.high %v707, %v723
  %v728 = vcombine.low %v632, %v639
  %v730 = vunpack.c.l.s4 1983009808
  %v731 = vunpack.c.0.s8 %v730
  %v732 = vlaneseq
  %v733 = vshrl.u32 %v732, 7
  %v734 = vsub.s32 %v731, %v733
  %v735 = vrot.slane %v728, %v734
  %v736 = vcombine.low %v656, %v657
  %v738 = vunpack.c.l.s4 1983009808
  %v739 = vunpack.c.0.s8 %v738
  %v740 = vlaneseq
  %v741 = vshrl.u32 %v740, 7
  %v742 = vsub.s32 %v739, %v741
  %v743 = vrot.slane %v736, %v742
  %v744 = vcombine.low %v648, %v655
  %v746 = vunpack.c.l.s4 1983009808
  %v747 = vunpack.c.0.s8 %v746
  %v748 = vlaneseq
  %v749 = vshrl.u32 %v748, 7
  %v750 = vsub.s32 %v747, %v749
  %v751 = vrot.slane %v744, %v750
  %v752 = vcombine.low %v658, %v659
  %v754 = vunpack.c.l.s4 1983009808
  %v755 = vunpack.c.0.s8 %v754
  %v756 = vlaneseq
  %v757 = vshrl.u32 %v756, 7
  %v758 = vsub.s32 %v755, %v757
  %v759 = vrot.slane %v752, %v758
  %v760 = vcombine.low %v735, %v743
  %v761 = vcombine.high %v735, %v743
  %v763 = vunpack.c.l.s4 1934713408
  %v764 = vunpack.c.0.s8 %v763
  %v765 = vlaneseq
  %v766 = vshrl.u32 %v765, 7
  %v767 = vsub.s32 %v764, %v766
  %v768 = vrot.slane %v760, %v767
  %v770 = vunpack.c.l.s4 1934713408
  %v771 = vunpack.c.0.s8 %v770
  %v772 = vlaneseq
  %v773 = vshrl.u32 %v772, 7
  %v774 = vsub.s32 %v771, %v773
  %v775 = vrot.slane %v761, %v774
  %v776 = vcombine.low %v751, %v759
  %v777 = vcombine.high %v751, %v759
  %v779 = vunpack.c.l.s4 1934713408
  %v780 = vunpack.c.0.s8 %v779
  %v781 = vlaneseq
  %v782 = vshrl.u32 %v781, 7
  %v783 = vsub.s32 %v780, %v782
  %v784 = vrot.slane %v776, %v783
  %v786 = vunpack.c.l.s4 1934713408
  %v787 = vunpack.c.0.s8 %v786
  %v788 = vlaneseq
  %v789 = vshrl.u32 %v788, 7
  %v790 = vsub.s32 %v787, %v789
  %v791 = vrot.slane %v777, %v790
  %v792 = vcombine.low %v768, %v784
  %v793 = vcombine.high %v768, %v784
  %v794 = vcombine.low %v775, %v791
  %v795 = vcombine.high %v775, %v791
  %v796 = vpack.c.bf16 %v792, %v724
  %v797 = vpack.c.bf16 %v793, %v725
  %v798 = vpack.c.bf16 %v794, %v726
  %v799 = vpack.c.bf16 %v795, %v727
  %v804 = vunpack.c.l.b16 %v796
  %v805 = vunpack.c.h.b16 %v796
  %v806 = vunpack.c.l.b16 %v797
  %v807 = vunpack.c.h.b16 %v797
  %v808 = vunpack.c.l.b16 %v798
  %v809 = vunpack.c.h.b16 %v798
  %v810 = vunpack.c.l.b16 %v799
  %v811 = vunpack.c.h.b16 %v799
  %v812 = vpack.c.b16 %v804, %v804
  %v813 = vpack.c.b16 %v805, %v805
  %v814 = vpack.c.b16 %v806, %v806
  %v815 = vpack.c.b16 %v807, %v807
  %v816 = vpack.c.b16 %v808, %v808
  %v817 = vpack.c.b16 %v809, %v809
  %v818 = vpack.c.b16 %v810, %v810
  %v819 = vpack.c.b16 %v811, %v811
  %828 = vst.msk [vmem:[%s8] sm:$0xf] %vm431, %v812
  %829 = vst.msk [vmem:[%s8 + $0x4] sm:$0xf] %vm431, %v813
  %830 = vst.msk [vmem:[%s8 + $0x8] sm:$0xf] %vm431, %v814
  %831 = vst.msk [vmem:[%s8 + $0xc] sm:$0xf] %vm431, %v815
  %832 = vst.msk [vmem:[%s8 + $0x10] sm:$0xf] %vm431, %v816
  %833 = vst.msk [vmem:[%s8 + $0x14] sm:$0xf] %vm431, %v817
  %834 = vst.msk [vmem:[%s8 + $0x18] sm:$0xf] %vm431, %v818
  %835 = vst.msk [vmem:[%s8 + $0x1c] sm:$0xf] %vm431, %v819
  %v836 = vld [vmem:[%s3] sm:$0xf]
  %v837 = vld [vmem:[%s3 + $0x4] sm:$0xf]
  %v838 = vld [vmem:[%s3 + $0x8] sm:$0xf]
  %v839 = vld [vmem:[%s3 + $0xc] sm:$0xf]
  %v840 = vld [vmem:[%s6] sm:$0x1]
  %v842 = vlaneseq
  %v843 = vshrl.u32 %v842, 7
  %v844 = vsub.s32 0, %v843
  %v845 = vrot.slane %v840, %v844
  %v851 = vunpack.c.l.b16 %v836
  %v852 = vunpack.c.l.b16 %v837
  %v853 = vunpack.c.l.b16 %v838
  %v854 = vunpack.c.l.b16 %v839
  %v855 = vpack.c.b16 %v852, %v851
  %v856 = vpack.c.b16 %v854, %v853
  %859 = vmatprep.subr.bf16.mxu0 0
  %860 = vmatpush1.bf16.msra.mxu0 %v855
  %861 = vmatprep.subr.bf16.mxu0 0
  %862 = vmatpush1.bf16.msra.mxu0 %v856
  %863 = vmatprep.subr.bf16.mxu0 0
  %864 = vmatpush1.bf16.msra.mxu0 0
  %865 = vmatprep.subr.bf16.mxu0 0
  %866 = vmatpush1.bf16.msra.mxu0 0
  %867 = vmatprep.subr.bf16.mxu0 0
  %868 = vmatpush1.bf16.msra.mxu0 0
  %869 = vmatprep.subr.bf16.mxu0 0
  %870 = vmatpush1.bf16.msra.mxu0 0
  %871 = vmatprep.subr.bf16.mxu0 0
  %872 = vmatpush1.bf16.msra.mxu0 0
  %873 = vmatprep.subr.bf16.mxu0 0
  %874 = vmatpush1.bf16.msra.mxu0 0
  %875 = vmatprep.subr.bf16.mxu0 0
  %876 = vmatpush1.bf16.msra.mxu0 0
  %877 = vmatprep.subr.bf16.mxu0 0
  %878 = vmatpush1.bf16.msra.mxu0 0
  %879 = vmatprep.subr.bf16.mxu0 0
  %880 = vmatpush1.bf16.msra.mxu0 0
  %881 = vmatprep.subr.bf16.mxu0 0
  %882 = vmatpush1.bf16.msra.mxu0 0
  %883 = vmatprep.subr.bf16.mxu0 0
  %884 = vmatpush1.bf16.msra.mxu0 0
  %885 = vmatprep.subr.bf16.mxu0 0
  %886 = vmatpush1.bf16.msra.mxu0 0
  %887 = vmatprep.subr.bf16.mxu0 0
  %888 = vmatpush1.bf16.msra.mxu0 0
  %889 = vmatprep.subr.bf16.mxu0 0
  %890 = vmatpush1.bf16.msra.mxu0 0
  %891 = vmatprep.mubr.bf16.mxu0 0
  %892 = vmatmul.mubr.bf16.gmra.mrb[0].mxu0 %v62
  %v893 = vpop.f32.mrb[0].mxu0
  %v894 = vadd.f32 %v845, %v893
  %v895 = vpop.f32.mrb[0].mxu0
  %v896 = vpop.f32.mrb[0].mxu0
  %v897 = vadd.f32 %v845, %v896
  %v898 = vpop.f32.mrb[0].mxu0
  %899 = vdwg.mxu0
  %902 = vrot.lane.b32.xlu0 %v894, 120
  %v903 = vpop.permute.xlu0 %902
  %904 = vrot.lane.b32.xlu0 %v897, 120
  %v905 = vpop.permute.xlu0 %904
  %908 = vrot.lane.b32.xlu0 %v894, 112
  %v909 = vpop.permute.xlu0 %908
  %910 = vrot.lane.b32.xlu0 %v897, 112
  %v911 = vpop.permute.xlu0 %910
  %914 = vrot.lane.b32.xlu0 %v894, 104
  %v915 = vpop.permute.xlu0 %914
  %916 = vrot.lane.b32.xlu0 %v897, 104
  %v917 = vpop.permute.xlu0 %916
  %v920 = vcombine.low %v894, %v909
  %v921 = vcombine.high %v894, %v909
  %v923 = vunpack.c.l.s4 1983009808
  %v924 = vunpack.c.0.s8 %v923
  %v925 = vlaneseq
  %v926 = vshrl.u32 %v925, 7
  %v927 = vsub.s32 %v924, %v926
  %v928 = vrot.slane %v920, %v927
  %v930 = vunpack.c.l.s4 1983009808
  %v931 = vunpack.c.0.s8 %v930
  %v932 = vlaneseq
  %v933 = vshrl.u32 %v932, 7
  %v934 = vsub.s32 %v931, %v933
  %v935 = vrot.slane %v921, %v934
  %v936 = vcombine.low %v903, %v915
  %v937 = vcombine.high %v903, %v915
  %v939 = vunpack.c.l.s4 1983009808
  %v940 = vunpack.c.0.s8 %v939
  %v941 = vlaneseq
  %v942 = vshrl.u32 %v941, 7
  %v943 = vsub.s32 %v940, %v942
  %v944 = vrot.slane %v936, %v943
  %v946 = vunpack.c.l.s4 1983009808
  %v947 = vunpack.c.0.s8 %v946
  %v948 = vlaneseq
  %v949 = vshrl.u32 %v948, 7
  %v950 = vsub.s32 %v947, %v949
  %v951 = vrot.slane %v937, %v950
  %v952 = vcombine.low %v928, %v944
  %v953 = vcombine.high %v928, %v944
  %v955 = vunpack.c.l.s4 1934713408
  %v956 = vunpack.c.0.s8 %v955
  %v957 = vlaneseq
  %v958 = vshrl.u32 %v957, 7
  %v959 = vsub.s32 %v956, %v958
  %v960 = vrot.slane %v952, %v959
  %v962 = vunpack.c.l.s4 1934713408
  %v963 = vunpack.c.0.s8 %v962
  %v964 = vlaneseq
  %v965 = vshrl.u32 %v964, 7
  %v966 = vsub.s32 %v963, %v965
  %v967 = vrot.slane %v953, %v966
  %v968 = vcombine.low %v935, %v951
  %v969 = vcombine.high %v935, %v951
  %v971 = vunpack.c.l.s4 1934713408
  %v972 = vunpack.c.0.s8 %v971
  %v973 = vlaneseq
  %v974 = vshrl.u32 %v973, 7
  %v975 = vsub.s32 %v972, %v974
  %v976 = vrot.slane %v968, %v975
  %v978 = vunpack.c.l.s4 1934713408
  %v979 = vunpack.c.0.s8 %v978
  %v980 = vlaneseq
  %v981 = vshrl.u32 %v980, 7
  %v982 = vsub.s32 %v979, %v981
  %v983 = vrot.slane %v969, %v982
  %v984 = vcombine.high %v960, 0.0
  %v985 = vcombine.high %v967, 0.0
  %v986 = vcombine.high %v976, 0.0
  %v987 = vcombine.high %v983, 0.0
  %v988 = vcombine.low %v897, %v911
  %v989 = vcombine.high %v897, %v911
  %v991 = vunpack.c.l.s4 1983009808
  %v992 = vunpack.c.0.s8 %v991
  %v993 = vlaneseq
  %v994 = vshrl.u32 %v993, 7
  %v995 = vsub.s32 %v992, %v994
  %v996 = vrot.slane %v988, %v995
  %v998 = vunpack.c.l.s4 1983009808
  %v999 = vunpack.c.0.s8 %v998
  %v1000 = vlaneseq
  %v1001 = vshrl.u32 %v1000, 7
  %v1002 = vsub.s32 %v999, %v1001
  %v1003 = vrot.slane %v989, %v1002
  %v1004 = vcombine.low %v905, %v917
  %v1005 = vcombine.high %v905, %v917
  %v1007 = vunpack.c.l.s4 1983009808
  %v1008 = vunpack.c.0.s8 %v1007
  %v1009 = vlaneseq
  %v1010 = vshrl.u32 %v1009, 7
  %v1011 = vsub.s32 %v1008, %v1010
  %v1012 = vrot.slane %v1004, %v1011
  %v1014 = vunpack.c.l.s4 1983009808
  %v1015 = vunpack.c.0.s8 %v1014
  %v1016 = vlaneseq
  %v1017 = vshrl.u32 %v1016, 7
  %v1018 = vsub.s32 %v1015, %v1017
  %v1019 = vrot.slane %v1005, %v1018
  %v1020 = vcombine.low %v996, %v1012
  %v1021 = vcombine.high %v996, %v1012
  %v1023 = vunpack.c.l.s4 1934713408
  %v1024 = vunpack.c.0.s8 %v1023
  %v1025 = vlaneseq
  %v1026 = vshrl.u32 %v1025, 7
  %v1027 = vsub.s32 %v1024, %v1026
  %v1028 = vrot.slane %v1020, %v1027
  %v1030 = vunpack.c.l.s4 1934713408
  %v1031 = vunpack.c.0.s8 %v1030
  %v1032 = vlaneseq
  %v1033 = vshrl.u32 %v1032, 7
  %v1034 = vsub.s32 %v1031, %v1033
  %v1035 = vrot.slane %v1021, %v1034
  %v1036 = vcombine.low %v1003, %v1019
  %v1037 = vcombine.high %v1003, %v1019
  %v1039 = vunpack.c.l.s4 1934713408
  %v1040 = vunpack.c.0.s8 %v1039
  %v1041 = vlaneseq
  %v1042 = vshrl.u32 %v1041, 7
  %v1043 = vsub.s32 %v1040, %v1042
  %v1044 = vrot.slane %v1036, %v1043
  %v1046 = vunpack.c.l.s4 1934713408
  %v1047 = vunpack.c.0.s8 %v1046
  %v1048 = vlaneseq
  %v1049 = vshrl.u32 %v1048, 7
  %v1050 = vsub.s32 %v1047, %v1049
  %v1051 = vrot.slane %v1037, %v1050
  %v1052 = vcombine.high %v1028, 0.0
  %v1053 = vcombine.high %v1035, 0.0
  %v1054 = vcombine.high %v1044, 0.0
  %v1055 = vcombine.high %v1051, 0.0
  %v1056 = vcombine.low %v960, %v967
  %v1058 = vunpack.c.l.s4 1983009808
  %v1059 = vunpack.c.0.s8 %v1058
  %v1060 = vlaneseq
  %v1061 = vshrl.u32 %v1060, 7
  %v1062 = vsub.s32 %v1059, %v1061
  %v1063 = vrot.slane %v1056, %v1062
  %v1064 = vcombine.low %v984, %v985
  %v1066 = vunpack.c.l.s4 1983009808
  %v1067 = vunpack.c.0.s8 %v1066
  %v1068 = vlaneseq
  %v1069 = vshrl.u32 %v1068, 7
  %v1070 = vsub.s32 %v1067, %v1069
  %v1071 = vrot.slane %v1064, %v1070
  %v1072 = vcombine.low %v976, %v983
  %v1074 = vunpack.c.l.s4 1983009808
  %v1075 = vunpack.c.0.s8 %v1074
  %v1076 = vlaneseq
  %v1077 = vshrl.u32 %v1076, 7
  %v1078 = vsub.s32 %v1075, %v1077
  %v1079 = vrot.slane %v1072, %v1078
  %v1080 = vcombine.low %v986, %v987
  %v1082 = vunpack.c.l.s4 1983009808
  %v1083 = vunpack.c.0.s8 %v1082
  %v1084 = vlaneseq
  %v1085 = vshrl.u32 %v1084, 7
  %v1086 = vsub.s32 %v1083, %v1085
  %v1087 = vrot.slane %v1080, %v1086
  %v1088 = vcombine.low %v1063, %v1071
  %v1089 = vcombine.high %v1063, %v1071
  %v1091 = vunpack.c.l.s4 1934713408
  %v1092 = vunpack.c.0.s8 %v1091
  %v1093 = vlaneseq
  %v1094 = vshrl.u32 %v1093, 7
  %v1095 = vsub.s32 %v1092, %v1094
  %v1096 = vrot.slane %v1088, %v1095
  %v1098 = vunpack.c.l.s4 1934713408
  %v1099 = vunpack.c.0.s8 %v1098
  %v1100 = vlaneseq
  %v1101 = vshrl.u32 %v1100, 7
  %v1102 = vsub.s32 %v1099, %v1101
  %v1103 = vrot.slane %v1089, %v1102
  %v1104 = vcombine.low %v1079, %v1087
  %v1105 = vcombine.high %v1079, %v1087
  %v1107 = vunpack.c.l.s4 1934713408
  %v1108 = vunpack.c.0.s8 %v1107
  %v1109 = vlaneseq
  %v1110 = vshrl.u32 %v1109, 7
  %v1111 = vsub.s32 %v1108, %v1110
  %v1112 = vrot.slane %v1104, %v1111
  %v1114 = vunpack.c.l.s4 1934713408
  %v1115 = vunpack.c.0.s8 %v1114
  %v1116 = vlaneseq
  %v1117 = vshrl.u32 %v1116, 7
  %v1118 = vsub.s32 %v1115, %v1117
  %v1119 = vrot.slane %v1105, %v1118
  %v1120 = vcombine.low %v1096, %v1112
  %v1121 = vcombine.high %v1096, %v1112
  %v1122 = vcombine.low %v1103, %v1119
  %v1123 = vcombine.high %v1103, %v1119
  %v1124 = vcombine.low %v1028, %v1035
  %v1126 = vunpack.c.l.s4 1983009808
  %v1127 = vunpack.c.0.s8 %v1126
  %v1128 = vlaneseq
  %v1129 = vshrl.u32 %v1128, 7
  %v1130 = vsub.s32 %v1127, %v1129
  %v1131 = vrot.slane %v1124, %v1130
  %v1132 = vcombine.low %v1052, %v1053
  %v1134 = vunpack.c.l.s4 1983009808
  %v1135 = vunpack.c.0.s8 %v1134
  %v1136 = vlaneseq
  %v1137 = vshrl.u32 %v1136, 7
  %v1138 = vsub.s32 %v1135, %v1137
  %v1139 = vrot.slane %v1132, %v1138
  %v1140 = vcombine.low %v1044, %v1051
  %v1142 = vunpack.c.l.s4 1983009808
  %v1143 = vunpack.c.0.s8 %v1142
  %v1144 = vlaneseq
  %v1145 = vshrl.u32 %v1144, 7
  %v1146 = vsub.s32 %v1143, %v1145
  %v1147 = vrot.slane %v1140, %v1146
  %v1148 = vcombine.low %v1054, %v1055
  %v1150 = vunpack.c.l.s4 1983009808
  %v1151 = vunpack.c.0.s8 %v1150
  %v1152 = vlaneseq
  %v1153 = vshrl.u32 %v1152, 7
  %v1154 = vsub.s32 %v1151, %v1153
  %v1155 = vrot.slane %v1148, %v1154
  %v1156 = vcombine.low %v1131, %v1139
  %v1157 = vcombine.high %v1131, %v1139
  %v1159 = vunpack.c.l.s4 1934713408
  %v1160 = vunpack.c.0.s8 %v1159
  %v1161 = vlaneseq
  %v1162 = vshrl.u32 %v1161, 7
  %v1163 = vsub.s32 %v1160, %v1162
  %v1164 = vrot.slane %v1156, %v1163
  %v1166 = vunpack.c.l.s4 1934713408
  %v1167 = vunpack.c.0.s8 %v1166
  %v1168 = vlaneseq
  %v1169 = vshrl.u32 %v1168, 7
  %v1170 = vsub.s32 %v1167, %v1169
  %v1171 = vrot.slane %v1157, %v1170
  %v1172 = vcombine.low %v1147, %v1155
  %v1173 = vcombine.high %v1147, %v1155
  %v1175 = vunpack.c.l.s4 1934713408
  %v1176 = vunpack.c.0.s8 %v1175
  %v1177 = vlaneseq
  %v1178 = vshrl.u32 %v1177, 7
  %v1179 = vsub.s32 %v1176, %v1178
  %v1180 = vrot.slane %v1172, %v1179
  %v1182 = vunpack.c.l.s4 1934713408
  %v1183 = vunpack.c.0.s8 %v1182
  %v1184 = vlaneseq
  %v1185 = vshrl.u32 %v1184, 7
  %v1186 = vsub.s32 %v1183, %v1185
  %v1187 = vrot.slane %v1173, %v1186
  %v1188 = vcombine.low %v1164, %v1180
  %v1189 = vcombine.high %v1164, %v1180
  %v1190 = vcombine.low %v1171, %v1187
  %v1191 = vcombine.high %v1171, %v1187
  %v1192 = vpack.c.bf16 %v1188, %v1120
  %v1193 = vpack.c.bf16 %v1189, %v1121
  %v1194 = vpack.c.bf16 %v1190, %v1122
  %v1195 = vpack.c.bf16 %v1191, %v1123
  %v1200 = vunpack.c.l.b16 %v1192
  %v1201 = vunpack.c.h.b16 %v1192
  %v1202 = vunpack.c.l.b16 %v1193
  %v1203 = vunpack.c.h.b16 %v1193
  %v1204 = vunpack.c.l.b16 %v1194
  %v1205 = vunpack.c.h.b16 %v1194
  %v1206 = vunpack.c.l.b16 %v1195
  %v1207 = vunpack.c.h.b16 %v1195
  %v1208 = vpack.c.b16 %v1200, %v1200
  %v1209 = vpack.c.b16 %v1201, %v1201
  %v1210 = vpack.c.b16 %v1202, %v1202
  %v1211 = vpack.c.b16 %v1203, %v1203
  %v1212 = vpack.c.b16 %v1204, %v1204
  %v1213 = vpack.c.b16 %v1205, %v1205
  %v1214 = vpack.c.b16 %v1206, %v1206
  %v1215 = vpack.c.b16 %v1207, %v1207
  %1224 = vst.msk [vmem:[%s9] sm:$0xf] %vm431, %v1208
  %1225 = vst.msk [vmem:[%s9 + $0x4] sm:$0xf] %vm431, %v1209
  %1226 = vst.msk [vmem:[%s9 + $0x8] sm:$0xf] %vm431, %v1210
  %1227 = vst.msk [vmem:[%s9 + $0xc] sm:$0xf] %vm431, %v1211
  %1228 = vst.msk [vmem:[%s9 + $0x10] sm:$0xf] %vm431, %v1212
  %1229 = vst.msk [vmem:[%s9 + $0x14] sm:$0xf] %vm431, %v1213
  %1230 = vst.msk [vmem:[%s9 + $0x18] sm:$0xf] %vm431, %v1214
  %1231 = vst.msk [vmem:[%s9 + $0x1c] sm:$0xf] %vm431, %v1215
  // Predicated region
  $region30: #{lm_model_forward.7} parent=0 // pred_check
    _
  $region31: #{lm_model_forward.7} parent=0 // pred_check_branch
    %1233 = sbr.rel (0) target = $region33
  $region32: #{lm_model_forward.7} parent=0 // pred_region
    _
  $region33: #{lm_model_forward.7} parent=0 // pred_fallthru
    _
  // Predicated region
  $region34: #{lm_model_forward.7} parent=0 // pred_check
    _
  $region35: #{lm_model_forward.7} parent=0 // pred_check_branch
    %1235 = sbr.rel (0) target = $region37
  $region36: #{lm_model_forward.7} parent=0 // pred_region
    _
  $region37: #{lm_model_forward.7} parent=0 // pred_fallthru
    _
  // Predicated region
  $region38: #{lm_model_forward.7} parent=0 // pred_check
    _
  $region39: #{lm_model_forward.7} parent=0 // pred_check_branch
    %1237 = sbr.rel (0) target = $region41
  $region40: #{lm_model_forward.7} parent=0 // pred_region
    _
  $region41: #{lm_model_forward.7} parent=0 // pred_fallthru
    _
  // Predicated region
  $region42: #{lm_model_forward.7} parent=0 // pred_check
    _
  $region43: #{lm_model_forward.7} parent=0 // pred_check_branch
    %1239 = sbr.rel (0) target = $region45
  $region44: #{lm_model_forward.7} parent=0 // pred_region
    _
  $region45: #{lm_model_forward.7} parent=0 // pred_fallthru
    _
  // Predicated region
  $region46: #{lm_model_forward.7} parent=0 // pred_check
    _
  $region47: #{lm_model_forward.7} parent=0 // pred_check_branch
    %1241 = sbr.rel (0) target = $region49
  $region48: #{lm_model_forward.7} parent=0 // pred_region
    _
  $region49: #{lm_model_forward.7} parent=0 // pred_fallthru
    _
  // Predicated region
  $region50: #{lm_model_forward.7} parent=0 // pred_check
    _
  $region51: #{lm_model_forward.7} parent=0 // pred_check_branch
    %1243 = sbr.rel (0) target = $region53
  $region52: #{lm_model_forward.7} parent=0 // pred_region
    _
  $region53: #{lm_model_forward.7} parent=0 // pred_fallthru
    _

// kernel: lm_model_forward.8
$region0: #{lm_model_forward.8}
  #allocation0 [shape = 'u32[]', space=smem, size = 0x4, offset = 0x4, fixed_abs, tag = 'smem constant byte address 0x4 - core index']
  #allocation1 [shape = 'u32[144,128]{1,0:T(1,128)}', space=vmem, size = 0x12000, scoped, tag = 'internal scratch']
  #allocation2 [shape = 'f32[4,8,1]{2,1,0:T(8,128)}', space=vmem, size = 0x4000, scoped, tag = 'scratch operand']
  #allocation3 [shape = 'f32[4,8,1]{2,1,0:T(8,128)}', space=vmem, size = 0x4000, scoped, tag = 'scratch operand']
  #allocation4 [shape = 'f32[4,8,8]{2,1,0:T(8,128)}', space=vmem, size = 0x4000, scoped, tag = 'scratch operand']
  %s0 = inlined_call_operand.vmem [shape: bf16[4,2,8,8], index: 0, kind: input, shape index: {}]
  %s1 = inlined_call_operand.vmem [shape: bf16[4,2,8,8], index: 1, kind: input, shape index: {}]
  %s2 = inlined_call_operand.vmem [shape: bf16[4,2,8,8], index: 2, kind: input, shape index: {}]
  %s3 = inlined_call_operand.vmem [shape: f32[2,1,8], index: 3, kind: input, shape index: {}]
  %s4 = inlined_call_operand.vmem [shape: bf16[2,8,32], index: 4, kind: input, shape index: {}]
  %s5 = inlined_call_operand.vmem [shape: bf16[32,32], index: 5, kind: input, shape index: {}]
  %s6 = inlined_call_operand.vmem [shape: f32[1,32], index: 6, kind: input, shape index: {}]
  %s7 = inlined_call_operand.vmem [shape: f32[1,32], index: 7, kind: input, shape index: {}]
  %s8 = inlined_call_operand.vmem [shape: f32[1,32], index: 8, kind: input, shape index: {}]
  %s9 = inlined_call_operand.vmem [shape: bf16[2,8,32], index: 9, kind: output, shape index: {}]
  %s10 = sld [smem:[#allocation0]]
  $region200: #{lm_model_forward.8} parent=0
    _
  %s12 = ssub.s32 1, %s10
  %s13 = scalar_select 0, %s12, %s10
  $region1: #{lm_model_forward.8} parent=0
    #allocation5 [shape = 'u8[16384]{0}', space=vmem, size = 0x4000, scoped, tag = 'input window, operand 0']
    #allocation6 [shape = 'u8[16384]{0}', space=vmem, size = 0x4000, scoped, tag = 'input window, operand 1']
    #allocation7 [shape = 'u8[16384]{0}', space=vmem, size = 0x4000, scoped, tag = 'input window, operand 2']
    loop: start=0, step=1, limit=4
    $region2: #{lm_model_forward.8} parent=1 // loop_pre_header
      _
    $region3: #{lm_model_forward.8} parent=1 // loop_header
      %s15 = sphi 0, %s19
      %p16 = scmp.ge.s32.totalorder %s15, 4
      %s22 = sphi 0, %s34
      %s23 = sphi 0, %s30
      %s24 = sphi 0, %s22
      %s25 = sphi 0, %s23
      %s26 = sphi 0, %s24
      %s27 = sphi 0, %s25
      %s37 = sphi 0, %s39
      %s40 = sphi 0, %s37
      %s41 = sphi 0, %s40
      %s57 = sphi 0, %s41
      %s65 = sphi 0, %s67
      %s68 = sphi 0, %s65
      %s69 = sphi 0, %s68
      %s85 = sphi 0, %s69
      %s93 = sphi 0, %s95
      %s96 = sphi 0, %s93
      %s97 = sphi 0, %s96
      %s113 = sphi 0, %s97
      %s121 = sphi 0, %s123
      %s124 = sphi 0, %s121
      %s125 = sphi 0, %s124
      %s141 = sphi 0, %s125
      %s147 = sphi 0, %s149
      %s150 = sphi 0, %s147
      %s151 = sphi 0, %s150
      %s167 = sphi 0, %s151
      %s171 = sphi 0, %s171
      %s173 = sphi 0, %s171
      %s174 = sphi 0, %s173
      %s188 = sphi 0, %s174
      %s192 = sphi 0, %s192
      %s194 = sphi 0, %s192
      %s195 = sphi 0, %s194
      %s209 = sphi 0, %s195
      %s213 = sphi 0, %s213
      %s215 = sphi 0, %s213
      %s216 = sphi 0, %s215
      %s230 = sphi 0, %s216
      %s234 = sphi 0, %s234
      %s236 = sphi 0, %s234
      %s237 = sphi 0, %s236
      %s251 = sphi 0, %s237
      %s257 = sphi 0, %s259
      %s260 = sphi 0, %s257
      %s261 = sphi 0, %s260
      %s277 = sphi 0, %s261
    $region4: #{lm_model_forward.8} parent=1 // loop_header_branch
      %18 = sbr.rel (%p16) target = $region8
    $region5: #{lm_model_forward.8} parent=1 // loop_body
      %s20 = ssub.s32 %s15, 1
      %s21 = ssub.s32 %s15, 2
      %s28 = sadd.s32 1, %s23
      %p29 = scmp.ge.s32.totalorder %s28, 1
      %s30 = scalar_select %p29, 0, %s28
      %s31 = sadd.s32 1, %s22
      %s32 = scalar_select %p29, %s31, %s22
      %p33 = scmp.ge.s32.totalorder %s32, 2
      %s34 = scalar_select %p33, 0, %s32
      %s35 = ssub.s32 %s22, %s34
      %p36 = scmp.eq.s32.totalorder %s35, 0
      %s38 = sadd.s32 %s37, 1
      %s39 = scalar_select %p36, %s37, %s38
      %p42 = pneg %p36
      %p43 = scmp.eq.s32.totalorder %s15, 1
      %p44 = por %p42, %p43
      %p45 = scmp.ne.s32.totalorder %s37, %s40
      %p46 = scmp.eq.s32.totalorder %s15, 0
      %p47 = por %p45, %p46
      %p48 = scmp.ne.s32.totalorder %s37, %s40
      %p49 = scmp.eq.s32.totalorder %s20, 1
      %p50 = por %p48, %p49
      %p51 = scmp.ne.s32.totalorder %s40, %s41
      %p52 = scmp.eq.s32.totalorder %s20, 0
      %p53 = por %p51, %p52
      %p54 = scmp.ne.s32.totalorder %s40, %s41
      %p55 = scmp.eq.s32.totalorder %s21, 1
      %p56 = por %p54, %p55
      %p58 = scmp.ne.s32.totalorder %s41, %s57
      %p59 = scmp.eq.s32.totalorder %s21, 0
      %p60 = por %p58, %p59
      %s61 = ssub.s32 %s22, %s34
      %s62 = ssub.s32 %s23, %s30
      %s63 = sor.u32 %s61, %s62
      %p64 = scmp.eq.s32.totalorder %s63, 0
      %s66 = sadd.s32 %s65, 1
      %s67 = scalar_select %p64, %s65, %s66
      %p70 = pneg %p64
      %p71 = scmp.eq.s32.totalorder %s15, 1
      %p72 = por %p70, %p71
      %p73 = scmp.ne.s32.totalorder %s65, %s68
      %p74 = scmp.eq.s32.totalorder %s15, 0
      %p75 = por %p73, %p74
      %p76 = scmp.ne.s32.totalorder %s65, %s68
      %p77 = scmp.eq.s32.totalorder %s20, 1
      %p78 = por %p76, %p77
      %p79 = scmp.ne.s32.totalorder %s68, %s69
      %p80 = scmp.eq.s32.totalorder %s20, 0
      %p81 = por %p79, %p80
      %p82 = scmp.ne.s32.totalorder %s68, %s69
      %p83 = scmp.eq.s32.totalorder %s21, 1
      %p84 = por %p82, %p83
      %p86 = scmp.ne.s32.totalorder %s69, %s85
      %p87 = scmp.eq.s32.totalorder %s21, 0
      %p88 = por %p86, %p87
      %s89 = ssub.s32 %s22, %s34
      %s90 = ssub.s32 %s23, %s30
      %s91 = sor.u32 %s89, %s90
      %p92 = scmp.eq.s32.totalorder %s91, 0
      %s94 = sadd.s32 %s93, 1
      %s95 = scalar_select %p92, %s93, %s94
      %p98 = pneg %p92
      %p99 = scmp.eq.s32.totalorder %s15, 1
      %p100 = por %p98, %p99
      %p101 = scmp.ne.s32.totalorder %s93, %s96
      %p102 = scmp.eq.s32.totalorder %s15, 0
      %p103 = por %p101, %p102
      %p104 = scmp.ne.s32.totalorder %s93, %s96
      %p105 = scmp.eq.s32.totalorder %s20, 1
      %p106 = por %p104, %p105
      %p107 = scmp.ne.s32.totalorder %s96, %s97
      %p108 = scmp.eq.s32.totalorder %s20, 0
      %p109 = por %p107, %p108
      %p110 = scmp.ne.s32.totalorder %s96, %s97
      %p111 = scmp.eq.s32.totalorder %s21, 1
      %p112 = por %p110, %p111
      %p114 = scmp.ne.s32.totalorder %s97, %s113
      %p115 = scmp.eq.s32.totalorder %s21, 0
      %p116 = por %p114, %p115
      %s117 = ssub.s32 %s22, %s34
      %s118 = ssub.s32 %s23, %s30
      %s119 = sor.u32 %s117, %s118
      %p120 = scmp.eq.s32.totalorder %s119, 0
      %s122 = sadd.s32 %s121, 1
      %s123 = scalar_select %p120, %s121, %s122
      %p126 = pneg %p120
      %p127 = scmp.eq.s32.totalorder %s15, 1
      %p128 = por %p126, %p127
      %p129 = scmp.ne.s32.totalorder %s121, %s124
      %p130 = scmp.eq.s32.totalorder %s15, 0
      %p131 = por %p129, %p130
      %p132 = scmp.ne.s32.totalorder %s121, %s124
      %p133 = scmp.eq.s32.totalorder %s20, 1
      %p134 = por %p132, %p133
      %p135 = scmp.ne.s32.totalorder %s124, %s125
      %p136 = scmp.eq.s32.totalorder %s20, 0
      %p137 = por %p135, %p136
      %p138 = scmp.ne.s32.totalorder %s124, %s125
      %p139 = scmp.eq.s32.totalorder %s21, 1
      %p140 = por %p138, %p139
      %p142 = scmp.ne.s32.totalorder %s125, %s141
      %p143 = scmp.eq.s32.totalorder %s21, 0
      %p144 = por %p142, %p143
      %s145 = ssub.s32 %s22, %s34
      %p146 = scmp.eq.s32.totalorder %s145, 0
      %s148 = sadd.s32 %s147, 1
      %s149 = scalar_select %p146, %s147, %s148
      %p152 = pneg %p146
      %p153 = scmp.eq.s32.totalorder %s15, 1
      %p154 = por %p152, %p153
      %p155 = scmp.ne.s32.totalorder %s147, %s150
      %p156 = scmp.eq.s32.totalorder %s15, 0
      %p157 = por %p155, %p156
      %p158 = scmp.ne.s32.totalorder %s147, %s150
      %p159 = scmp.eq.s32.totalorder %s20, 1
      %p160 = por %p158, %p159
      %p161 = scmp.ne.s32.totalorder %s150, %s151
      %p162 = scmp.eq.s32.totalorder %s20, 0
      %p163 = por %p161, %p162
      %p164 = scmp.ne.s32.totalorder %s150, %s151
      %p165 = scmp.eq.s32.totalorder %s21, 1
      %p166 = por %p164, %p165
      %p168 = scmp.ne.s32.totalorder %s151, %s167
      %p169 = scmp.eq.s32.totalorder %s21, 0
      %p170 = por %p168, %p169
      %s172 = sadd.s32 %s171, 1
      %p175 = scmp.eq.s32.totalorder %s15, 1
      %p176 = scmp.ne.s32.totalorder %s171, %s173
      %p177 = scmp.eq.s32.totalorder %s15, 0
      %p178 = por %p176, %p177
      %p179 = scmp.ne.s32.totalorder %s171, %s173
      %p180 = scmp.eq.s32.totalorder %s20, 1
      %p181 = por %p179, %p180
      %p182 = scmp.ne.s32.totalorder %s173, %s174
      %p183 = scmp.eq.s32.totalorder %s20, 0
      %p184 = por %p182, %p183
      %p185 = scmp.ne.s32.totalorder %s173, %s174
      %p186 = scmp.eq.s32.totalorder %s21, 1
      %p187 = por %p185, %p186
      %p189 = scmp.ne.s32.totalorder %s174, %s188
      %p190 = scmp.eq.s32.totalorder %s21, 0
      %p191 = por %p189, %p190
      %s193 = sadd.s32 %s192, 1
      %p196 = scmp.eq.s32.totalorder %s15, 1
      %p197 = scmp.ne.s32.totalorder %s192, %s194
      %p198 = scmp.eq.s32.totalorder %s15, 0
      %p199 = por %p197, %p198
      %p200 = scmp.ne.s32.totalorder %s192, %s194
      %p201 = scmp.eq.s32.totalorder %s20, 1
      %p202 = por %p200, %p201
      %p203 = scmp.ne.s32.totalorder %s194, %s195
      %p204 = scmp.eq.s32.totalorder %s20, 0
      %p205 = por %p203, %p204
      %p206 = scmp.ne.s32.totalorder %s194, %s195
      %p207 = scmp.eq.s32.totalorder %s21, 1
      %p208 = por %p206, %p207
      %p210 = scmp.ne.s32.totalorder %s195, %s209
      %p211 = scmp.eq.s32.totalorder %s21, 0
      %p212 = por %p210, %p211
      %s214 = sadd.s32 %s213, 1
      %p217 = scmp.eq.s32.totalorder %s15, 1
      %p218 = scmp.ne.s32.totalorder %s213, %s215
      %p219 = scmp.eq.s32.totalorder %s15, 0
      %p220 = por %p218, %p219
      %p221 = scmp.ne.s32.totalorder %s213, %s215
      %p222 = scmp.eq.s32.totalorder %s20, 1
      %p223 = por %p221, %p222
      %p224 = scmp.ne.s32.totalorder %s215, %s216
      %p225 = scmp.eq.s32.totalorder %s20, 0
      %p226 = por %p224, %p225
      %p227 = scmp.ne.s32.totalorder %s215, %s216
      %p228 = scmp.eq.s32.totalorder %s21, 1
      %p229 = por %p227, %p228
      %p231 = scmp.ne.s32.totalorder %s216, %s230
      %p232 = scmp.eq.s32.totalorder %s21, 0
      %p233 = por %p231, %p232
      %s235 = sadd.s32 %s234, 1
      %p238 = scmp.eq.s32.totalorder %s15, 1
      %p239 = scmp.ne.s32.totalorder %s234, %s236
      %p240 = scmp.eq.s32.totalorder %s15, 0
      %p241 = por %p239, %p240
      %p242 = scmp.ne.s32.totalorder %s234, %s236
      %p243 = scmp.eq.s32.totalorder %s20, 1
      %p244 = por %p242, %p243
      %p245 = scmp.ne.s32.totalorder %s236, %s237
      %p246 = scmp.eq.s32.totalorder %s20, 0
      %p247 = por %p245, %p246
      %p248 = scmp.ne.s32.totalorder %s236, %s237
      %p249 = scmp.eq.s32.totalorder %s21, 1
      %p250 = por %p248, %p249
      %p252 = scmp.ne.s32.totalorder %s237, %s251
      %p253 = scmp.eq.s32.totalorder %s21, 0
      %p254 = por %p252, %p253
      %s255 = ssub.s32 %s22, %s34
      %p256 = scmp.eq.s32.totalorder %s255, 0
      %s258 = sadd.s32 %s257, 1
      %s259 = scalar_select %p256, %s257, %s258
      %p262 = pneg %p256
      %p263 = scmp.eq.s32.totalorder %s15, 1
      %p264 = por %p262, %p263
      %p265 = scmp.ne.s32.totalorder %s257, %s260
      %p266 = scmp.eq.s32.totalorder %s15, 0
      %p267 = por %p265, %p266
      %p268 = scmp.ne.s32.totalorder %s257, %s260
      %p269 = scmp.eq.s32.totalorder %s20, 1
      %p270 = por %p268, %p269
      %p271 = scmp.ne.s32.totalorder %s260, %s261
      %p272 = scmp.eq.s32.totalorder %s20, 0
      %p273 = por %p271, %p272
      %p274 = scmp.ne.s32.totalorder %s260, %s261
      %p275 = scmp.eq.s32.totalorder %s21, 1
      %p276 = por %p274, %p275
      %p278 = scmp.ne.s32.totalorder %s261, %s277
      %p279 = scmp.eq.s32.totalorder %s21, 0
      %p280 = por %p278, %p279
      %p281 = scmp.le.s32.totalorder 1, %s15
      %p282 = scmp.lt.s32.totalorder %s15, 3
      %p283 = pnand %p281, %p282
      %p284 = pneg %p283
      // Predicated region
      $region9: #{lm_model_forward.8} parent=5 // pred_check
        _
      $region10: #{lm_model_forward.8} parent=5 // pred_check_branch
        %286 = sbr.rel (%p283) target = $region12
      $region11: #{lm_model_forward.8} parent=5 // pred_region
        %s287 = ssub.s32 %s15, 1
        // Predicated region
        $region13: #{lm_model_forward.8} parent=11 // pred_check
          %p288 = pneg %p184
        $region14: #{lm_model_forward.8} parent=11 // pred_check_branch
          %290 = sbr.rel (%p288) target = $region16
        $region15: #{lm_model_forward.8} parent=11 // pred_region
          _
        $region16: #{lm_model_forward.8} parent=11 // pred_fallthru
          _
        // Predicated region
        $region17: #{lm_model_forward.8} parent=11 // pred_check
          %p291 = pneg %p205
        $region18: #{lm_model_forward.8} parent=11 // pred_check_branch
          %293 = sbr.rel (%p291) target = $region20
        $region19: #{lm_model_forward.8} parent=11 // pred_region
          _
        $region20: #{lm_model_forward.8} parent=11 // pred_fallthru
          _
        // Predicated region
        $region21: #{lm_model_forward.8} parent=11 // pred_check
          %p294 = pneg %p226
        $region22: #{lm_model_forward.8} parent=11 // pred_check_branch
          %296 = sbr.rel (%p294) target = $region24
        $region23: #{lm_model_forward.8} parent=11 // pred_region
          _
        $region24: #{lm_model_forward.8} parent=11 // pred_fallthru
          _
        // Predicated region
        $region25: #{lm_model_forward.8} parent=11 // pred_check
          %p297 = pneg %p247
        $region26: #{lm_model_forward.8} parent=11 // pred_check_branch
          %299 = sbr.rel (%p297) target = $region28
        $region27: #{lm_model_forward.8} parent=11 // pred_region
          _
        $region28: #{lm_model_forward.8} parent=11 // pred_fallthru
          _
      $region12: #{lm_model_forward.8} parent=5 // pred_fallthru
        _
      %p300 = scmp.lt.s32.totalorder %s15, 2
      // Predicated region
      $region29: #{lm_model_forward.8} parent=5 // pred_check
        %p301 = pneg %p300
      $region30: #{lm_model_forward.8} parent=5 // pred_check_branch
        %303 = sbr.rel (%p301) target = $region32
      $region31: #{lm_model_forward.8} parent=5 // pred_region
        // Predicated region
        $region33: #{lm_model_forward.8} parent=31 // pred_check
          %p304 = pneg %p47
        $region34: #{lm_model_forward.8} parent=31 // pred_check_branch
          %306 = sbr.rel (%p304) target = $region36
        $region35: #{lm_model_forward.8} parent=31 // pred_region
          %s307 = sand.u32 %s37, 1
          %s308 = sand.u32 %s37, 1
          %s309 = smul.addr %s308, 16
          %s310 = scalar_lea.vmem [#allocation5], %s309
          %s311 = smul.addr %s22, 4
          %s312 = scalar_lea.vmem %s0, %s311
          // Predicated region
          $region37: #{lm_model_forward.8} parent=35 // pred_check
            _
          $region38: #{lm_model_forward.8} parent=35 // pred_check_branch
            %314 = sbr.rel (0) target = $region40
          $region39: #{lm_model_forward.8} parent=35 // pred_region
            // Predicated region
            $region41: #{lm_model_forward.8} parent=39 // pred_check
              _
            $region42: #{lm_model_forward.8} parent=39 // pred_check_branch
              %316 = sbr.rel target = $region44
            $region43: #{lm_model_forward.8} parent=39 // pred_region
              // Predicated region
              $region56: #{lm_model_forward.8} parent=43 // pred_check
                _
              $region57: #{lm_model_forward.8} parent=43 // pred_check_branch
                %337 = sbr.rel (0) target = $region59
              $region58: #{lm_model_forward.8} parent=43 // pred_region
                loop: start=0, step=1, limit=1
                $region60: #{lm_model_forward.8} parent=58 // loop_pre_header
                  _
                $region61: #{lm_model_forward.8} parent=58 // loop_header
                  %s339 = sphi 0, %s343
                  %p340 = scmp.ge.s32.totalorder %s339, 1
                  %s344 = sphi %s312, %s312
                  %s345 = sphi %s310, %s310
                $region62: #{lm_model_forward.8} parent=58 // loop_header_branch
                  %342 = sbr.rel (%p340) target = $region66
                $region63: #{lm_model_forward.8} parent=58 // loop_body
                  _
                $region64: #{lm_model_forward.8} parent=58 // loop_footer
                  %s343 = sadd.s32 1, %s339
                $region65: #{lm_model_forward.8} parent=58 // loop_footer_branch
                  %338 = sbr.rel target = $region61
                $region66: #{lm_model_forward.8} parent=58 // loop_exit
                  _
                loop: start=0, step=1, limit=1
                $region67: #{lm_model_forward.8} parent=58 // loop_pre_header
                  _
                $region68: #{lm_model_forward.8} parent=58 // loop_header
                  %s348 = sphi 0, %s352
                  %p349 = scmp.ge.s32.totalorder %s348, 1
                  %s353 = sphi %s312, %s312
                  %s354 = sphi %s310, %s310
                $region69: #{lm_model_forward.8} parent=58 // loop_header_branch
                  %351 = sbr.rel (%p349) target = $region73
                $region70: #{lm_model_forward.8} parent=58 // loop_body
                  %v355 = vld [vmem:[%s353] sm:$0xf]
                  %356 = vst [vmem:[%s354] sm:$0xf] %v355
                  %v357 = vld [vmem:[%s353 + $0x8] sm:$0xf]
                  %358 = vst [vmem:[%s354 + $0x4] sm:$0xf] %v357
                  %v359 = vld [vmem:[%s353 + $0x10] sm:$0xf]
                  %360 = vst [vmem:[%s354 + $0x8] sm:$0xf] %v359
                  %v361 = vld [vmem:[%s353 + $0x18] sm:$0xf]
                  %362 = vst [vmem:[%s354 + $0xc] sm:$0xf] %v361
                $region71: #{lm_model_forward.8} parent=58 // loop_footer
                  %s352 = sadd.s32 1, %s348
                $region72: #{lm_model_forward.8} parent=58 // loop_footer_branch
                  %347 = sbr.rel target = $region68
                $region73: #{lm_model_forward.8} parent=58 // loop_exit
                  _
              $region59: #{lm_model_forward.8} parent=43 // pred_fallthru
                _
            $region44: #{lm_model_forward.8} parent=39 // pred_fallthru
              _
            // Predicated region
            $region45: #{lm_model_forward.8} parent=39 // pred_check
              _
            $region46: #{lm_model_forward.8} parent=39 // pred_check_branch
              %318 = sbr.rel (0) target = $region48
            $region47: #{lm_model_forward.8} parent=39 // pred_region
              loop: start=0, step=1, limit=1
              $region49: #{lm_model_forward.8} parent=47 // loop_pre_header
                _
              $region50: #{lm_model_forward.8} parent=47 // loop_header
                %s321 = sphi 0, %s325
                %p322 = scmp.ge.s32.totalorder %s321, 1
                %s326 = sphi %s312, %s312
                %s327 = sphi %s310, %s310
              $region51: #{lm_model_forward.8} parent=47 // loop_header_branch
                %324 = sbr.rel (%p322) target = $region55
              $region52: #{lm_model_forward.8} parent=47 // loop_body
                %v328 = vld [vmem:[%s326] sm:$0xf]
                %329 = vst [vmem:[%s327] sm:$0xf] %v328
                %v330 = vld [vmem:[%s326 + $0x8] sm:$0xf]
                %331 = vst [vmem:[%s327 + $0x4] sm:$0xf] %v330
                %v332 = vld [vmem:[%s326 + $0x10] sm:$0xf]
                %333 = vst [vmem:[%s327 + $0x8] sm:$0xf] %v332
                %v334 = vld [vmem:[%s326 + $0x18] sm:$0xf]
                %335 = vst [vmem:[%s327 + $0xc] sm:$0xf] %v334
              $region53: #{lm_model_forward.8} parent=47 // loop_footer
                %s325 = sadd.s32 1, %s321
              $region54: #{lm_model_forward.8} parent=47 // loop_footer_branch
                %320 = sbr.rel target = $region50
              $region55: #{lm_model_forward.8} parent=47 // loop_exit
                _
            $region48: #{lm_model_forward.8} parent=39 // pred_fallthru
              _
          $region40: #{lm_model_forward.8} parent=35 // pred_fallthru
            _
          %363 = vnop
        $region36: #{lm_model_forward.8} parent=31 // pred_fallthru
          _
        // Predicated region
        $region74: #{lm_model_forward.8} parent=31 // pred_check
          %p364 = pneg %p75
        $region75: #{lm_model_forward.8} parent=31 // pred_check_branch
          %366 = sbr.rel (%p364) target = $region77
        $region76: #{lm_model_forward.8} parent=31 // pred_region
          %s367 = sand.u32 %s65, 1
          %s368 = sand.u32 %s65, 1
          %s369 = smul.addr %s368, 16
          %s370 = scalar_lea.vmem [#allocation6], %s369
          %s371 = sadd.s32 %s23, %s22
          %s372 = smul.addr %s371, 4
          %s373 = scalar_lea.vmem %s1, %s372
          // Predicated region
          $region78: #{lm_model_forward.8} parent=76 // pred_check
            _
          $region79: #{lm_model_forward.8} parent=76 // pred_check_branch
            %375 = sbr.rel (0) target = $region81
          $region80: #{lm_model_forward.8} parent=76 // pred_region
            // Predicated region
            $region82: #{lm_model_forward.8} parent=80 // pred_check
              _
            $region83: #{lm_model_forward.8} parent=80 // pred_check_branch
              %377 = sbr.rel target = $region85
            $region84: #{lm_model_forward.8} parent=80 // pred_region
              // Predicated region
              $region97: #{lm_model_forward.8} parent=84 // pred_check
                _
              $region98: #{lm_model_forward.8} parent=84 // pred_check_branch
                %398 = sbr.rel (0) target = $region100
              $region99: #{lm_model_forward.8} parent=84 // pred_region
                loop: start=0, step=1, limit=1
                $region101: #{lm_model_forward.8} parent=99 // loop_pre_header
                  _
                $region102: #{lm_model_forward.8} parent=99 // loop_header
                  %s400 = sphi 0, %s404
                  %p401 = scmp.ge.s32.totalorder %s400, 1
                  %s405 = sphi %s373, %s373
                  %s406 = sphi %s370, %s370
                $region103: #{lm_model_forward.8} parent=99 // loop_header_branch
                  %403 = sbr.rel (%p401) target = $region107
                $region104: #{lm_model_forward.8} parent=99 // loop_body
                  _
                $region105: #{lm_model_forward.8} parent=99 // loop_footer
                  %s404 = sadd.s32 1, %s400
                $region106: #{lm_model_forward.8} parent=99 // loop_footer_branch
                  %399 = sbr.rel target = $region102
                $region107: #{lm_model_forward.8} parent=99 // loop_exit
                  _
                loop: start=0, step=1, limit=1
                $region108: #{lm_model_forward.8} parent=99 // loop_pre_header
                  _
                $region109: #{lm_model_forward.8} parent=99 // loop_header
                  %s409 = sphi 0, %s413
                  %p410 = scmp.ge.s32.totalorder %s409, 1
                  %s414 = sphi %s373, %s373
                  %s415 = sphi %s370, %s370
                $region110: #{lm_model_forward.8} parent=99 // loop_header_branch
                  %412 = sbr.rel (%p410) target = $region114
                $region111: #{lm_model_forward.8} parent=99 // loop_body
                  %v416 = vld [vmem:[%s414] sm:$0xf]
                  %417 = vst [vmem:[%s415] sm:$0xf] %v416
                  %v418 = vld [vmem:[%s414 + $0x8] sm:$0xf]
                  %419 = vst [vmem:[%s415 + $0x4] sm:$0xf] %v418
                  %v420 = vld [vmem:[%s414 + $0x10] sm:$0xf]
                  %421 = vst [vmem:[%s415 + $0x8] sm:$0xf] %v420
                  %v422 = vld [vmem:[%s414 + $0x18] sm:$0xf]
                  %423 = vst [vmem:[%s415 + $0xc] sm:$0xf] %v422
                $region112: #{lm_model_forward.8} parent=99 // loop_footer
                  %s413 = sadd.s32 1, %s409
                $region113: #{lm_model_forward.8} parent=99 // loop_footer_branch
                  %408 = sbr.rel target = $region109
                $region114: #{lm_model_forward.8} parent=99 // loop_exit
                  _
              $region100: #{lm_model_forward.8} parent=84 // pred_fallthru
                _
            $region85: #{lm_model_forward.8} parent=80 // pred_fallthru
              _
            // Predicated region
            $region86: #{lm_model_forward.8} parent=80 // pred_check
              _
            $region87: #{lm_model_forward.8} parent=80 // pred_check_branch
              %379 = sbr.rel (0) target = $region89
            $region88: #{lm_model_forward.8} parent=80 // pred_region
              loop: start=0, step=1, limit=1
              $region90: #{lm_model_forward.8} parent=88 // loop_pre_header
                _
              $region91: #{lm_model_forward.8} parent=88 // loop_header
                %s382 = sphi 0, %s386
                %p383 = scmp.ge.s32.totalorder %s382, 1
                %s387 = sphi %s373, %s373
                %s388 = sphi %s370, %s370
              $region92: #{lm_model_forward.8} parent=88 // loop_header_branch
                %385 = sbr.rel (%p383) target = $region96
              $region93: #{lm_model_forward.8} parent=88 // loop_body
                %v389 = vld [vmem:[%s387] sm:$0xf]
                %390 = vst [vmem:[%s388] sm:$0xf] %v389
                %v391 = vld [vmem:[%s387 + $0x8] sm:$0xf]
                %392 = vst [vmem:[%s388 + $0x4] sm:$0xf] %v391
                %v393 = vld [vmem:[%s387 + $0x10] sm:$0xf]
                %394 = vst [vmem:[%s388 + $0x8] sm:$0xf] %v393
                %v395 = vld [vmem:[%s387 + $0x18] sm:$0xf]
                %396 = vst [vmem:[%s388 + $0xc] sm:$0xf] %v395
              $region94: #{lm_model_forward.8} parent=88 // loop_footer
                %s386 = sadd.s32 1, %s382
              $region95: #{lm_model_forward.8} parent=88 // loop_footer_branch
                %381 = sbr.rel target = $region91
              $region96: #{lm_model_forward.8} parent=88 // loop_exit
                _
            $region89: #{lm_model_forward.8} parent=80 // pred_fallthru
              _
          $region81: #{lm_model_forward.8} parent=76 // pred_fallthru
            _
          %424 = vnop
        $region77: #{lm_model_forward.8} parent=31 // pred_fallthru
          _
        // Predicated region
        $region115: #{lm_model_forward.8} parent=31 // pred_check
          %p425 = pneg %p103
        $region116: #{lm_model_forward.8} parent=31 // pred_check_branch
          %427 = sbr.rel (%p425) target = $region118
        $region117: #{lm_model_forward.8} parent=31 // pred_region
          %s428 = sand.u32 %s93, 1
          %s429 = sand.u32 %s93, 1
          %s430 = smul.addr %s429, 16
          %s431 = scalar_lea.vmem [#allocation7], %s430
          %s432 = sadd.s32 %s23, %s22
          %s433 = smul.addr %s432, 4
          %s434 = scalar_lea.vmem %s2, %s433
          // Predicated region
          $region119: #{lm_model_forward.8} parent=117 // pred_check
            _
          $region120: #{lm_model_forward.8} parent=117 // pred_check_branch
            %436 = sbr.rel (0) target = $region122
          $region121: #{lm_model_forward.8} parent=117 // pred_region
            // Predicated region
            $region123: #{lm_model_forward.8} parent=121 // pred_check
              _
            $region124: #{lm_model_forward.8} parent=121 // pred_check_branch
              %438 = sbr.rel target = $region126
            $region125: #{lm_model_forward.8} parent=121 // pred_region
              // Predicated region
              $region138: #{lm_model_forward.8} parent=125 // pred_check
                _
              $region139: #{lm_model_forward.8} parent=125 // pred_check_branch
                %459 = sbr.rel (0) target = $region141
              $region140: #{lm_model_forward.8} parent=125 // pred_region
                loop: start=0, step=1, limit=1
                $region142: #{lm_model_forward.8} parent=140 // loop_pre_header
                  _
                $region143: #{lm_model_forward.8} parent=140 // loop_header
                  %s461 = sphi 0, %s465
                  %p462 = scmp.ge.s32.totalorder %s461, 1
                  %s466 = sphi %s434, %s434
                  %s467 = sphi %s431, %s431
                $region144: #{lm_model_forward.8} parent=140 // loop_header_branch
                  %464 = sbr.rel (%p462) target = $region148
                $region145: #{lm_model_forward.8} parent=140 // loop_body
                  _
                $region146: #{lm_model_forward.8} parent=140 // loop_footer
                  %s465 = sadd.s32 1, %s461
                $region147: #{lm_model_forward.8} parent=140 // loop_footer_branch
                  %460 = sbr.rel target = $region143
                $region148: #{lm_model_forward.8} parent=140 // loop_exit
                  _
                loop: start=0, step=1, limit=1
                $region149: #{lm_model_forward.8} parent=140 // loop_pre_header
                  _
                $region150: #{lm_model_forward.8} parent=140 // loop_header
                  %s470 = sphi 0, %s474
                  %p471 = scmp.ge.s32.totalorder %s470, 1
                  %s475 = sphi %s434, %s434
                  %s476 = sphi %s431, %s431
                $region151: #{lm_model_forward.8} parent=140 // loop_header_branch
                  %473 = sbr.rel (%p471) target = $region155
                $region152: #{lm_model_forward.8} parent=140 // loop_body
                  %v477 = vld [vmem:[%s475] sm:$0xf]
                  %478 = vst [vmem:[%s476] sm:$0xf] %v477
                  %v479 = vld [vmem:[%s475 + $0x8] sm:$0xf]
                  %480 = vst [vmem:[%s476 + $0x4] sm:$0xf] %v479
                  %v481 = vld [vmem:[%s475 + $0x10] sm:$0xf]
                  %482 = vst [vmem:[%s476 + $0x8] sm:$0xf] %v481
                  %v483 = vld [vmem:[%s475 + $0x18] sm:$0xf]
                  %484 = vst [vmem:[%s476 + $0xc] sm:$0xf] %v483
                $region153: #{lm_model_forward.8} parent=140 // loop_footer
                  %s474 = sadd.s32 1, %s470
                $region154: #{lm_model_forward.8} parent=140 // loop_footer_branch
                  %469 = sbr.rel target = $region150
                $region155: #{lm_model_forward.8} parent=140 // loop_exit
                  _
              $region141: #{lm_model_forward.8} parent=125 // pred_fallthru
                _
            $region126: #{lm_model_forward.8} parent=121 // pred_fallthru
              _
            // Predicated region
            $region127: #{lm_model_forward.8} parent=121 // pred_check
              _
            $region128: #{lm_model_forward.8} parent=121 // pred_check_branch
              %440 = sbr.rel (0) target = $region130
            $region129: #{lm_model_forward.8} parent=121 // pred_region
              loop: start=0, step=1, limit=1
              $region131: #{lm_model_forward.8} parent=129 // loop_pre_header
                _
              $region132: #{lm_model_forward.8} parent=129 // loop_header
                %s443 = sphi 0, %s447
                %p444 = scmp.ge.s32.totalorder %s443, 1
                %s448 = sphi %s434, %s434
                %s449 = sphi %s431, %s431
              $region133: #{lm_model_forward.8} parent=129 // loop_header_branch
                %446 = sbr.rel (%p444) target = $region137
              $region134: #{lm_model_forward.8} parent=129 // loop_body
                %v450 = vld [vmem:[%s448] sm:$0xf]
                %451 = vst [vmem:[%s449] sm:$0xf] %v450
                %v452 = vld [vmem:[%s448 + $0x8] sm:$0xf]
                %453 = vst [vmem:[%s449 + $0x4] sm:$0xf] %v452
                %v454 = vld [vmem:[%s448 + $0x10] sm:$0xf]
                %455 = vst [vmem:[%s449 + $0x8] sm:$0xf] %v454
                %v456 = vld [vmem:[%s448 + $0x18] sm:$0xf]
                %457 = vst [vmem:[%s449 + $0xc] sm:$0xf] %v456
              $region135: #{lm_model_forward.8} parent=129 // loop_footer
                %s447 = sadd.s32 1, %s443
              $region136: #{lm_model_forward.8} parent=129 // loop_footer_branch
                %442 = sbr.rel target = $region132
              $region137: #{lm_model_forward.8} parent=129 // loop_exit
                _
            $region130: #{lm_model_forward.8} parent=121 // pred_fallthru
              _
          $region122: #{lm_model_forward.8} parent=117 // pred_fallthru
            _
          %485 = vnop
        $region118: #{lm_model_forward.8} parent=31 // pred_fallthru
          _
        // Predicated region
        $region156: #{lm_model_forward.8} parent=31 // pred_check
          %p486 = pneg %p131
        $region157: #{lm_model_forward.8} parent=31 // pred_check_branch
          %488 = sbr.rel (%p486) target = $region159
        $region158: #{lm_model_forward.8} parent=31 // pred_region
          %p489 = scmp.lt.s32.totalorder %s22, 1
          %s490 = scalar_select %p489, %s22, 1
          %p491 = scmp.lt.s32.totalorder %s23, 0
          %s492 = scalar_select %p491, %s23, 0
          %s493 = sadd.s32 %s492, %s490
          %s494 = scalar_lea.vmem %s3, %s493
        $region159: #{lm_model_forward.8} parent=31 // pred_fallthru
          _
        // Predicated region
        $region160: #{lm_model_forward.8} parent=31 // pred_check
          %p495 = pneg %p157
        $region161: #{lm_model_forward.8} parent=31 // pred_check_branch
          %497 = sbr.rel (%p495) target = $region163
        $region162: #{lm_model_forward.8} parent=31 // pred_region
          %p498 = scmp.lt.s32.totalorder %s22, 1
          %s499 = scalar_select %p498, %s22, 1
          %s500 = smul.addr %s499, 4
          %s501 = scalar_lea.vmem %s4, %s500
        $region163: #{lm_model_forward.8} parent=31 // pred_fallthru
          _
      $region32: #{lm_model_forward.8} parent=5 // pred_fallthru
        _
      %p502 = scmp.le.s32.totalorder 1, %s15
      %p503 = scmp.lt.s32.totalorder %s15, 3
      %p504 = pnand %p502, %p503
      %p505 = pneg %p504
      // Predicated region
      $region164: #{lm_model_forward.8} parent=5 // pred_check
        _
      $region165: #{lm_model_forward.8} parent=5 // pred_check_branch
        %507 = sbr.rel (%p504) target = $region167
      $region166: #{lm_model_forward.8} parent=5 // pred_region
        %s508 = ssub.s32 %s15, 1
        %s509 = sand.u32 %s40, 1
        %s510 = sand.u32 %s40, 1
        %s511 = smul.addr %s510, 16
        %s512 = scalar_lea.vmem [#allocation5], %s511
        // Predicated region
        $region168: #{lm_model_forward.8} parent=166 // pred_check
          %p513 = pneg %p53
        $region169: #{lm_model_forward.8} parent=166 // pred_check_branch
          %515 = sbr.rel (%p513) target = $region171
        $region170: #{lm_model_forward.8} parent=166 // pred_region
          _
        $region171: #{lm_model_forward.8} parent=166 // pred_fallthru
          _
        %s516 = sand.u32 %s68, 1
        %s517 = sand.u32 %s68, 1
        %s518 = smul.addr %s517, 16
        %s519 = scalar_lea.vmem [#allocation6], %s518
        // Predicated region
        $region172: #{lm_model_forward.8} parent=166 // pred_check
          %p520 = pneg %p81
        $region173: #{lm_model_forward.8} parent=166 // pred_check_branch
          %522 = sbr.rel (%p520) target = $region175
        $region174: #{lm_model_forward.8} parent=166 // pred_region
          _
        $region175: #{lm_model_forward.8} parent=166 // pred_fallthru
          _
        %s523 = sand.u32 %s96, 1
        %s524 = sand.u32 %s96, 1
        %s525 = smul.addr %s524, 16
        %s526 = scalar_lea.vmem [#allocation7], %s525
        // Predicated region
        $region176: #{lm_model_forward.8} parent=166 // pred_check
          %p527 = pneg %p109
        $region177: #{lm_model_forward.8} parent=166 // pred_check_branch
          %529 = sbr.rel (%p527) target = $region179
        $region178: #{lm_model_forward.8} parent=166 // pred_region
          _
        $region179: #{lm_model_forward.8} parent=166 // pred_fallthru
          _
        %s530 = sand.u32 %s40, 1
        %s531 = sand.u32 %s40, 1
        %s532 = smul.addr %s531, 16
        %s533 = scalar_lea.vmem [#allocation5], %s532
        %p534 = pneg %p53
        %p535 = pneg %p50
        %s536 = sand.u32 %s68, 1
        %s537 = sand.u32 %s68, 1
        %s538 = smul.addr %s537, 16
        %s539 = scalar_lea.vmem [#allocation6], %s538
        %p540 = pneg %p81
        %p541 = pneg %p78
        %s542 = sand.u32 %s96, 1
        %s543 = sand.u32 %s96, 1
        %s544 = smul.addr %s543, 16
        %s545 = scalar_lea.vmem [#allocation7], %s544
        %p546 = pneg %p109
        %p547 = pneg %p106
        %p548 = scmp.lt.s32.totalorder %s24, 1
        %s549 = scalar_select %p548, %s24, 1
        %p550 = scmp.lt.s32.totalorder %s25, 0
        %s551 = scalar_select %p550, %s25, 0
        %s552 = sadd.s32 %s551, %s549
        %s553 = scalar_lea.vmem %s3, %s552
        %p554 = pneg %p137
        %p555 = pneg %p134
        %p556 = scmp.lt.s32.totalorder %s24, 1
        %s557 = scalar_select %p556, %s24, 1
        %s558 = smul.addr %s557, 4
        %s559 = scalar_lea.vmem %s4, %s558
        %p560 = pneg %p163
        %p561 = pneg %p160
        %p562 = pneg %p184
        %p563 = pneg %p181
        %p564 = pneg %p205
        %p565 = pneg %p202
        %p566 = pneg %p226
        %p567 = pneg %p223
        %p568 = pneg %p247
        %p569 = pneg %p244
        %p570 = pneg %p273
        %p571 = pneg %p270
        %p572 = scmp.lt.s32.totalorder %s24, 1
        %s573 = scalar_select %p572, %s24, 1
        %s574 = smul.addr %s573, 4
        %s575 = scalar_lea.vmem %s9, %s574
        %p576 = scmp.lt.s32.totalorder %s24, 1
        %s577 = scalar_select %p576, %s24, 1
        %p578 = scmp.lt.s32.totalorder %s25, 0
        %s579 = scalar_select %p578, %s25, 0
        %s580 = sadd.s32 %s579, %s577
        %s581 = scalar_lea.vmem %s3, %s580
        %p582 = scmp.lt.s32.totalorder %s24, 1
        %s583 = scalar_select %p582, %s24, 1
        %s584 = smul.addr %s583, 4
        %s585 = scalar_lea.vmem %s4, %s584
        %p586 = scmp.lt.s32.totalorder %s24, 1
        %s587 = scalar_select %p586, %s24, 1
        %s588 = smul.addr %s587, 4
        %s589 = scalar_lea.vmem %s9, %s588
        %p591 = scmp.eq.s32.totalorder %s25, 0
        // Predicated region
        $region180: #{lm_model_forward.8} parent=166 // pred_check
          %p592 = pneg %p591
        $region181: #{lm_model_forward.8} parent=166 // pred_check_branch
          %594 = sbr.rel (%p592) target = $region183
        $region182: #{lm_model_forward.8} parent=166 // pred_region
          %vm595 = vcmask 7168
          %596 = vst.msk [vmem:[#allocation2] sm:$0xff] %vm595, -1e+30
          %597 = vst.msk [vmem:[#allocation2 + $0x8] sm:$0xff] %vm595, -1e+30
          %598 = vst.msk [vmem:[#allocation2 + $0x10] sm:$0xff] %vm595, -1e+30
          %599 = vst.msk [vmem:[#allocation2 + $0x18] sm:$0xff] %vm595, -1e+30
          %600 = vst.msk [vmem:[#allocation3] sm:$0xff] %vm595, 0.0
          %601 = vst.msk [vmem:[#allocation3 + $0x8] sm:$0xff] %vm595, 0.0
          %602 = vst.msk [vmem:[#allocation3 + $0x10] sm:$0xff] %vm595, 0.0
          %603 = vst.msk [vmem:[#allocation3 + $0x18] sm:$0xff] %vm595, 0.0
          %vm604 = vcmask 64512
          %605 = vst.msk [vmem:[#allocation4] sm:$0xff] %vm604, 0.0
          %606 = vst.msk [vmem:[#allocation4 + $0x8] sm:$0xff] %vm604, 0.0
          %607 = vst.msk [vmem:[#allocation4 + $0x10] sm:$0xff] %vm604, 0.0
          %608 = vst.msk [vmem:[#allocation4 + $0x18] sm:$0xff] %vm604, 0.0
        $region183: #{lm_model_forward.8} parent=166 // pred_fallthru
          _
        %v609 = vld [vmem:[%s512] sm:$0xf]
        %v610 = vld [vmem:[%s512 + $0x4] sm:$0xf]
        %v611 = vld [vmem:[%s512 + $0x8] sm:$0xf]
        %v612 = vld [vmem:[%s512 + $0xc] sm:$0xf]
        %v613 = vld [vmem:[%s519] sm:$0xf]
        %v614 = vld [vmem:[%s519 + $0x4] sm:$0xf]
        %v615 = vld [vmem:[%s519 + $0x8] sm:$0xf]
        %v616 = vld [vmem:[%s519 + $0xc] sm:$0xf]
        %v617 = vld [vmem:[%s526] sm:$0xf]
        %v618 = vld [vmem:[%s526 + $0x4] sm:$0xf]
        %v619 = vld [vmem:[%s526 + $0x8] sm:$0xf]
        %v620 = vld [vmem:[%s526 + $0xc] sm:$0xf]
        %vm621 = vcmask 64512
        %v623 = vsel %vm621, %v609, 0
        %v626 = vsel %vm621, %v613, 0
        %628 = vmatprep.subr.bf16.mxu0 0
        %629 = vmatpush1.bf16.xpose.msra.mxu0 %v626
        %630 = vmatprep.subr.bf16.mxu0 0
        %631 = vmatpush1.bf16.xpose.msra.mxu0 0
        %632 = vmatprep.subr.bf16.mxu0 0
        %633 = vmatpush1.bf16.xpose.msra.mxu0 0
        %634 = vmatprep.subr.bf16.mxu0 0
        %635 = vmatpush1.bf16.xpose.msra.mxu0 0
        %636 = vmatprep.subr.bf16.mxu0 0
        %637 = vmatpush1.bf16.xpose.msra.mxu0 0
        %638 = vmatprep.subr.bf16.mxu0 0
        %639 = vmatpush1.bf16.xpose.msra.mxu0 0
        %640 = vmatprep.subr.bf16.mxu0 0
        %641 = vmatpush1.bf16.xpose.msra.mxu0 0
        %642 = vmatprep.subr.bf16.mxu0 0
        %643 = vmatpush1.bf16.xpose.msra.mxu0 0
        %644 = vmatprep.subr.bf16.mxu0 0
        %645 = vmatpush1.bf16.xpose.msra.mxu0 0
        %646 = vmatprep.subr.bf16.mxu0 0
        %647 = vmatpush1.bf16.xpose.msra.mxu0 0
        %648 = vmatprep.subr.bf16.mxu0 0
        %649 = vmatpush1.bf16.xpose.msra.mxu0 0
        %650 = vmatprep.subr.bf16.mxu0 0
        %651 = vmatpush1.bf16.xpose.msra.mxu0 0
        %652 = vmatprep.subr.bf16.mxu0 0
        %653 = vmatpush1.bf16.xpose.msra.mxu0 0
        %654 = vmatprep.subr.bf16.mxu0 0
        %655 = vmatpush1.bf16.xpose.msra.mxu0 0
        %656 = vmatprep.subr.bf16.mxu0 0
        %657 = vmatpush1.bf16.xpose.msra.mxu0 0
        %658 = vmatprep.subr.bf16.mxu0 0
        %659 = vmatpush1.bf16.xpose.msra.mxu0 0
        %660 = vmatprep.mubr.bf16.mxu0 0
        %661 = vmatmul.mubr.bf16.gmra.mrb[0].mxu0 %v623
        %v662 = vpop.f32.mrb[0].mxu0
        %v663 = vadd.f32 0.0, %v662
        %v664 = vpop.f32.mrb[0].mxu0
        %v665 = vpop.f32.mrb[0].mxu0
        %v666 = vpop.f32.mrb[0].mxu0
        %667 = vdwg.mxu0
        %v669 = vsel %vm621, %v610, 0
        %v672 = vsel %vm621, %v614, 0
        %674 = vmatprep.subr.bf16.mxu0 0
        %675 = vmatpush1.bf16.xpose.msra.mxu0 %v672
        %676 = vmatprep.subr.bf16.mxu0 0
        %677 = vmatpush1.bf16.xpose.msra.mxu0 0
        %678 = vmatprep.subr.bf16.mxu0 0
        %679 = vmatpush1.bf16.xpose.msra.mxu0 0
        %680 = vmatprep.subr.bf16.mxu0 0
        %681 = vmatpush1.bf16.xpose.msra.mxu0 0
        %682 = vmatprep.subr.bf16.mxu0 0
        %683 = vmatpush1.bf16.xpose.msra.mxu0 0
        %684 = vmatprep.subr.bf16.mxu0 0
        %685 = vmatpush1.bf16.xpose.msra.mxu0 0
        %686 = vmatprep.subr.bf16.mxu0 0
        %687 = vmatpush1.bf16.xpose.msra.mxu0 0
        %688 = vmatprep.subr.bf16.mxu0 0
        %689 = vmatpush1.bf16.xpose.msra.mxu0 0
        %690 = vmatprep.subr.bf16.mxu0 0
        %691 = vmatpush1.bf16.xpose.msra.mxu0 0
        %692 = vmatprep.subr.bf16.mxu0 0
        %693 = vmatpush1.bf16.xpose.msra.mxu0 0
        %694 = vmatprep.subr.bf16.mxu0 0
        %695 = vmatpush1.bf16.xpose.msra.mxu0 0
        %696 = vmatprep.subr.bf16.mxu0 0
        %697 = vmatpush1.bf16.xpose.msra.mxu0 0
        %698 = vmatprep.subr.bf16.mxu0 0
        %699 = vmatpush1.bf16.xpose.msra.mxu0 0
        %700 = vmatprep.subr.bf16.mxu0 0
        %701 = vmatpush1.bf16.xpose.msra.mxu0 0
        %702 = vmatprep.subr.bf16.mxu0 0
        %703 = vmatpush1.bf16.xpose.msra.mxu0 0
        %704 = vmatprep.subr.bf16.mxu0 0
        %705 = vmatpush1.bf16.xpose.msra.mxu0 0
        %706 = vmatprep.mubr.bf16.mxu0 0
        %707 = vmatmul.mubr.bf16.gmra.mrb[0].mxu0 %v669
        %v708 = vpop.f32.mrb[0].mxu0
        %v709 = vadd.f32 0.0, %v708
        %v710 = vpop.f32.mrb[0].mxu0
        %v711 = vpop.f32.mrb[0].mxu0
        %v712 = vpop.f32.mrb[0].mxu0
        %713 = vdwg.mxu0
        %v715 = vsel %vm621, %v611, 0
        %v718 = vsel %vm621, %v615, 0
        %720 = vmatprep.subr.bf16.mxu0 0
        %721 = vmatpush1.bf16.xpose.msra.mxu0 %v718
        %722 = vmatprep.subr.bf16.mxu0 0
        %723 = vmatpush1.bf16.xpose.msra.mxu0 0
        %724 = vmatprep.subr.bf16.mxu0 0
        %725 = vmatpush1.bf16.xpose.msra.mxu0 0
        %726 = vmatprep.subr.bf16.mxu0 0
        %727 = vmatpush1.bf16.xpose.msra.mxu0 0
        %728 = vmatprep.subr.bf16.mxu0 0
        %729 = vmatpush1.bf16.xpose.msra.mxu0 0
        %730 = vmatprep.subr.bf16.mxu0 0
        %731 = vmatpush1.bf16.xpose.msra.mxu0 0
        %732 = vmatprep.subr.bf16.mxu0 0
        %733 = vmatpush1.bf16.xpose.msra.mxu0 0
        %734 = vmatprep.subr.bf16.mxu0 0
        %735 = vmatpush1.bf16.xpose.msra.mxu0 0
        %736 = vmatprep.subr.bf16.mxu0 0
        %737 = vmatpush1.bf16.xpose.msra.mxu0 0
        %738 = vmatprep.subr.bf16.mxu0 0
        %739 = vmatpush1.bf16.xpose.msra.mxu0 0
        %740 = vmatprep.subr.bf16.mxu0 0
        %741 = vmatpush1.bf16.xpose.msra.mxu0 0
        %742 = vmatprep.subr.bf16.mxu0 0
        %743 = vmatpush1.bf16.xpose.msra.mxu0 0
        %744 = vmatprep.subr.bf16.mxu0 0
        %745 = vmatpush1.bf16.xpose.msra.mxu0 0
        %746 = vmatprep.subr.bf16.mxu0 0
        %747 = vmatpush1.bf16.xpose.msra.mxu0 0
        %748 = vmatprep.subr.bf16.mxu0 0
        %749 = vmatpush1.bf16.xpose.msra.mxu0 0
        %750 = vmatprep.subr.bf16.mxu0 0
        %751 = vmatpush1.bf16.xpose.msra.mxu0 0
        %752 = vmatprep.mubr.bf16.mxu0 0
        %753 = vmatmul.mubr.bf16.gmra.mrb[0].mxu0 %v715
        %v754 = vpop.f32.mrb[0].mxu0
        %v755 = vadd.f32 0.0, %v754
        %v756 = vpop.f32.mrb[0].mxu0
        %v757 = vpop.f32.mrb[0].mxu0
        %v758 = vpop.f32.mrb[0].mxu0
        %759 = vdwg.mxu0
        %v761 = vsel %vm621, %v612, 0
        %v764 = vsel %vm621, %v616, 0
        %766 = vmatprep.subr.bf16.mxu0 0
        %767 = vmatpush1.bf16.xpose.msra.mxu0 %v764
        %768 = vmatprep.subr.bf16.mxu0 0
        %769 = vmatpush1.bf16.xpose.msra.mxu0 0
        %770 = vmatprep.subr.bf16.mxu0 0
        %771 = vmatpush1.bf16.xpose.msra.mxu0 0
        %772 = vmatprep.subr.bf16.mxu0 0
        %773 = vmatpush1.bf16.xpose.msra.mxu0 0
        %774 = vmatprep.subr.bf16.mxu0 0
        %775 = vmatpush1.bf16.xpose.msra.mxu0 0
        %776 = vmatprep.subr.bf16.mxu0 0
        %777 = vmatpush1.bf16.xpose.msra.mxu0 0
        %778 = vmatprep.subr.bf16.mxu0 0
        %779 = vmatpush1.bf16.xpose.msra.mxu0 0
        %780 = vmatprep.subr.bf16.mxu0 0
        %781 = vmatpush1.bf16.xpose.msra.mxu0 0
        %782 = vmatprep.subr.bf16.mxu0 0
        %783 = vmatpush1.bf16.xpose.msra.mxu0 0
        %784 = vmatprep.subr.bf16.mxu0 0
        %785 = vmatpush1.bf16.xpose.msra.mxu0 0
        %786 = vmatprep.subr.bf16.mxu0 0
        %787 = vmatpush1.bf16.xpose.msra.mxu0 0
        %788 = vmatprep.subr.bf16.mxu0 0
        %789 = vmatpush1.bf16.xpose.msra.mxu0 0
        %790 = vmatprep.subr.bf16.mxu0 0
        %791 = vmatpush1.bf16.xpose.msra.mxu0 0
        %792 = vmatprep.subr.bf16.mxu0 0
        %793 = vmatpush1.bf16.xpose.msra.mxu0 0
        %794 = vmatprep.subr.bf16.mxu0 0
        %795 = vmatpush1.bf16.xpose.msra.mxu0 0
        %796 = vmatprep.subr.bf16.mxu0 0
        %797 = vmatpush1.bf16.xpose.msra.mxu0 0
        %798 = vmatprep.mubr.bf16.mxu0 0
        %799 = vmatmul.mubr.bf16.gmra.mrb[0].mxu0 %v761
        %v800 = vpop.f32.mrb[0].mxu0
        %v801 = vadd.f32 0.0, %v800
        %v802 = vpop.f32.mrb[0].mxu0
        %v803 = vpop.f32.mrb[0].mxu0
        %v804 = vpop.f32.mrb[0].mxu0
        %805 = vdwg.mxu0
        %v806 = vlaneseq
        %v807 = vshrl.u32 %v806, 7
        %v808 = vlaneseq
        %v809 = vand.u32 %v808, 127
        %s810 = smul.u32 %s25, 8
        %v811 = vstv %s810
        %v812 = vadd.s32 %v809, %v811
        %vm813 = vcmp.le.s32.totalorder %v812, %v807
        %v814 = vld [vmem:[%s581] sm:$0x1]
        %vm815 = vcmp.gt.f32.partialorder %v814, 0.5
        %v816 = vsel %vm815, 1, 0
        %v817 = vlaneseq
        %v818 = vshrl.u32 %v817, 7
        %v819 = vsub.s32 0, %v818
        %v820 = vrot.slane %v816, %v819
        %vm821 = vcmp.eq.s32.totalorder %v820, 1
        %vm822 = vmand %vm813, %vm821
        %v823 = vsel %vm822, 1, 0
        %vm824 = vcmp.eq.s32.totalorder %v823, 1
        %v825 = vsel %vm824, %v663, -1e+09
        %v826 = vsel %vm824, %v709, -1e+09
        %v827 = vsel %vm824, %v755, -1e+09
        %v828 = vsel %vm824, %v801, -1e+09
        %v829 = vld [vmem:[#allocation2] sm:$0xff]
        %v830 = vld [vmem:[#allocation2 + $0x8] sm:$0xff]
        %v831 = vld [vmem:[#allocation2 + $0x10] sm:$0xff]
        %v832 = vld [vmem:[#allocation2 + $0x18] sm:$0xff]
        %v833 = vsel %vm621, %v825, -inf
        %834 = vmax.xlane.f32.xlu0 %v833
        %v835 = vpop.xlane.xlu0 %834
        %v836 = vsel %vm621, %v826, -inf
        %837 = vmax.xlane.f32.xlu0 %v836
        %v838 = vpop.xlane.xlu0 %837
        %v839 = vsel %vm621, %v827, -inf
        %840 = vmax.xlane.f32.xlu0 %v839
        %v841 = vpop.xlane.xlu0 %840
        %v842 = vsel %vm621, %v828, -inf
        %843 = vmax.xlane.f32.xlu0 %v842
        %v844 = vpop.xlane.xlu0 %843
        %v845 = vmax.f32 %v829, %v835
        %v846 = vmax.f32 %v830, %v838
        %v847 = vmax.f32 %v831, %v841
        %v848 = vmax.f32 %v832, %v844
        %v849 = vsub.f32 %v829, %v845
        %v850 = vsub.f32 %v830, %v846
        %v851 = vsub.f32 %v831, %v847
        %v852 = vsub.f32 %v832, %v848
        %v853 = vmul.f32 %v849, 1.442695
        %v854 = vpow.pop %v853
        %v855 = vmul.f32 %v850, 1.442695
        %v856 = vpow.pop %v855
        %v857 = vmul.f32 %v851, 1.442695
        %v858 = vpow.pop %v857
        %v859 = vmul.f32 %v852, 1.442695
        %v860 = vpow.pop %v859
        %862 = vset.pattern.permute.xlu0 0
        %863 = vperm.xlu0 %862, %v845
        %v864 = vpop.permute.xlu0 %863
        %867 = vset.pattern.permute.xlu0 0
        %868 = vperm.xlu0 %867, %v846
        %v869 = vpop.permute.xlu0 %868
        %872 = vset.pattern.permute.xlu0 0
        %873 = vperm.xlu0 %872, %v847
        %v874 = vpop.permute.xlu0 %873
        %877 = vset.pattern.permute.xlu0 0
        %878 = vperm.xlu0 %877, %v848
        %v879 = vpop.permute.xlu0 %878
        %v881 = vsub.f32 %v825, %v864
        %v882 = vsub.f32 %v826, %v869
        %v883 = vsub.f32 %v827, %v874
        %v884 = vsub.f32 %v828, %v879
        %v885 = vmul.f32 %v881, 1.442695
        %v886 = vpow.pop %v885
        %v887 = vmul.f32 %v882, 1.442695
        %v888 = vpow.pop %v887
        %v889 = vmul.f32 %v883, 1.442695
        %v890 = vpow.pop %v889
        %v891 = vmul.f32 %v884, 1.442695
        %v892 = vpow.pop %v891
        %v893 = vld [vmem:[#allocation3] sm:$0xff]
        %v894 = vld [vmem:[#allocation3 + $0x8] sm:$0xff]
        %v895 = vld [vmem:[#allocation3 + $0x10] sm:$0xff]
        %v896 = vld [vmem:[#allocation3 + $0x18] sm:$0xff]
        %v897 = vmul.f32 %v854, %v893
        %v898 = vmul.f32 %v856, %v894
        %v899 = vmul.f32 %v858, %v895
        %v900 = vmul.f32 %v860, %v896
        %v901 = vsel %vm621, %v886, 0.0
        %902 = vadd.xlane.f32.xlu0 %v901
        %v903 = vpop.xlane.xlu0 %902
        %v904 = vsel %vm621, %v888, 0.0
        %905 = vadd.xlane.f32.xlu0 %v904
        %v906 = vpop.xlane.xlu0 %905
        %v907 = vsel %vm621, %v890, 0.0
        %908 = vadd.xlane.f32.xlu0 %v907
        %v909 = vpop.xlane.xlu0 %908
        %v910 = vsel %vm621, %v892, 0.0
        %911 = vadd.xlane.f32.xlu0 %v910
        %v912 = vpop.xlane.xlu0 %911
        %v913 = vadd.f32 %v897, %v903
        %v914 = vadd.f32 %v898, %v906
        %v915 = vadd.f32 %v899, %v909
        %v916 = vadd.f32 %v900, %v912
        %vm917 = vcmask 7168
        %918 = vst.msk [vmem:[#allocation3] sm:$0xff] %vm917, %v913
        %919 = vst.msk [vmem:[#allocation3 + $0x8] sm:$0xff] %vm917, %v914
        %920 = vst.msk [vmem:[#allocation3 + $0x10] sm:$0xff] %vm917, %v915
        %921 = vst.msk [vmem:[#allocation3 + $0x18] sm:$0xff] %vm917, %v916
        %v922 = vld [vmem:[#allocation4] sm:$0xff]
        %v923 = vld [vmem:[#allocation4 + $0x8] sm:$0xff]
        %v924 = vld [vmem:[#allocation4 + $0x10] sm:$0xff]
        %v925 = vld [vmem:[#allocation4 + $0x18] sm:$0xff]
        %927 = vset.pattern.permute.xlu0 0
        %928 = vperm.xlu0 %927, %v854
        %v929 = vpop.permute.xlu0 %928
        %932 = vset.pattern.permute.xlu0 0
        %933 = vperm.xlu0 %932, %v856
        %v934 = vpop.permute.xlu0 %933
        %937 = vset.pattern.permute.xlu0 0
        %938 = vperm.xlu0 %937, %v858
        %v939 = vpop.permute.xlu0 %938
        %942 = vset.pattern.permute.xlu0 0
        %943 = vperm.xlu0 %942, %v860
        %v944 = vpop.permute.xlu0 %943
        %v946 = vmul.f32 %v929, %v922
        %v947 = vmul.f32 %v934, %v923
        %v948 = vmul.f32 %v939, %v924
        %v949 = vmul.f32 %v944, %v925
        %v950 = vpack.c.bf16 %v886, %v886
        %v951 = vpack.c.bf16 %v888, %v888
        %v952 = vpack.c.bf16 %v890, %v890
        %v953 = vpack.c.bf16 %v892, %v892
        %v955 = vsel %vm621, %v950, 0
        %vm957 = vcmask 1043456
        %v959 = vsel %vm957, %v617, 0
        %961 = vmatprep.subr.bf16.mxu0 0
        %962 = vmatpush1.bf16.msra.mxu0 %v959
        %963 = vmatprep.subr.bf16.mxu0 0
        %964 = vmatpush1.bf16.msra.mxu0 0
        %965 = vmatprep.subr.bf16.mxu0 0
        %966 = vmatpush1.bf16.msra.mxu0 0
        %967 = vmatprep.subr.bf16.mxu0 0
        %968 = vmatpush1.bf16.msra.mxu0 0
        %969 = vmatprep.subr.bf16.mxu0 0
        %970 = vmatpush1.bf16.msra.mxu0 0
        %971 = vmatprep.subr.bf16.mxu0 0
        %972 = vmatpush1.bf16.msra.mxu0 0
        %973 = vmatprep.subr.bf16.mxu0 0
        %974 = vmatpush1.bf16.msra.mxu0 0
        %975 = vmatprep.subr.bf16.mxu0 0
        %976 = vmatpush1.bf16.msra.mxu0 0
        %977 = vmatprep.subr.bf16.mxu0 0
        %978 = vmatpush1.bf16.msra.mxu0 0
        %979 = vmatprep.subr.bf16.mxu0 0
        %980 = vmatpush1.bf16.msra.mxu0 0
        %981 = vmatprep.subr.bf16.mxu0 0
        %982 = vmatpush1.bf16.msra.mxu0 0
        %983 = vmatprep.subr.bf16.mxu0 0
        %984 = vmatpush1.bf16.msra.mxu0 0
        %985 = vmatprep.subr.bf16.mxu0 0
        %986 = vmatpush1.bf16.msra.mxu0 0
        %987 = vmatprep.subr.bf16.mxu0 0
        %988 = vmatpush1.bf16.msra.mxu0 0
        %989 = vmatprep.subr.bf16.mxu0 0
        %990 = vmatpush1.bf16.msra.mxu0 0
        %991 = vmatprep.subr.bf16.mxu0 0
        %992 = vmatpush1.bf16.msra.mxu0 0
        %993 = vmatprep.mubr.bf16.mxu0 0
        %994 = vmatmul.mubr.bf16.gmra.mrb[0].mxu0 %v955
        %v995 = vpop.f32.mrb[0].mxu0
        %v996 = vadd.f32 0.0, %v995
        %v997 = vpop.f32.mrb[0].mxu0
        %v998 = vpop.f32.mrb[0].mxu0
        %v999 = vpop.f32.mrb[0].mxu0
        %1000 = vdwg.mxu0
        %v1002 = vsel %vm621, %v951, 0
        %v1005 = vsel %vm957, %v618, 0
        %1007 = vmatprep.subr.bf16.mxu0 0
        %1008 = vmatpush1.bf16.msra.mxu0 %v1005
        %1009 = vmatprep.subr.bf16.mxu0 0
        %1010 = vmatpush1.bf16.msra.mxu0 0
        %1011 = vmatprep.subr.bf16.mxu0 0
        %1012 = vmatpush1.bf16.msra.mxu0 0
        %1013 = vmatprep.subr.bf16.mxu0 0
        %1014 = vmatpush1.bf16.msra.mxu0 0
        %1015 = vmatprep.subr.bf16.mxu0 0
        %1016 = vmatpush1.bf16.msra.mxu0 0
        %1017 = vmatprep.subr.bf16.mxu0 0
        %1018 = vmatpush1.bf16.msra.mxu0 0
        %1019 = vmatprep.subr.bf16.mxu0 0
        %1020 = vmatpush1.bf16.msra.mxu0 0
        %1021 = vmatprep.subr.bf16.mxu0 0
        %1022 = vmatpush1.bf16.msra.mxu0 0
        %1023 = vmatprep.subr.bf16.mxu0 0
        %1024 = vmatpush1.bf16.msra.mxu0 0
        %1025 = vmatprep.subr.bf16.mxu0 0
        %1026 = vmatpush1.bf16.msra.mxu0 0
        %1027 = vmatprep.subr.bf16.mxu0 0
        %1028 = vmatpush1.bf16.msra.mxu0 0
        %1029 = vmatprep.subr.bf16.mxu0 0
        %1030 = vmatpush1.bf16.msra.mxu0 0
        %1031 = vmatprep.subr.bf16.mxu0 0
        %1032 = vmatpush1.bf16.msra.mxu0 0
        %1033 = vmatprep.subr.bf16.mxu0 0
        %1034 = vmatpush1.bf16.msra.mxu0 0
        %1035 = vmatprep.subr.bf16.mxu0 0
        %1036 = vmatpush1.bf16.msra.mxu0 0
        %1037 = vmatprep.subr.bf16.mxu0 0
        %1038 = vmatpush1.bf16.msra.mxu0 0
        %1039 = vmatprep.mubr.bf16.mxu0 0
        %1040 = vmatmul.mubr.bf16.gmra.mrb[0].mxu0 %v1002
        %v1041 = vpop.f32.mrb[0].mxu0
        %v1042 = vadd.f32 0.0, %v1041
        %v1043 = vpop.f32.mrb[0].mxu0
        %v1044 = vpop.f32.mrb[0].mxu0
        %v1045 = vpop.f32.mrb[0].mxu0
        %1046 = vdwg.mxu0
        %v1048 = vsel %vm621, %v952, 0
        %v1051 = vsel %vm957, %v619, 0
        %1053 = vmatprep.subr.bf16.mxu0 0
        %1054 = vmatpush1.bf16.msra.mxu0 %v1051
        %1055 = vmatprep.subr.bf16.mxu0 0
        %1056 = vmatpush1.bf16.msra.mxu0 0
        %1057 = vmatprep.subr.bf16.mxu0 0
        %1058 = vmatpush1.bf16.msra.mxu0 0
        %1059 = vmatprep.subr.bf16.mxu0 0
        %1060 = vmatpush1.bf16.msra.mxu0 0
        %1061 = vmatprep.subr.bf16.mxu0 0
        %1062 = vmatpush1.bf16.msra.mxu0 0
        %1063 = vmatprep.subr.bf16.mxu0 0
        %1064 = vmatpush1.bf16.msra.mxu0 0
        %1065 = vmatprep.subr.bf16.mxu0 0
        %1066 = vmatpush1.bf16.msra.mxu0 0
        %1067 = vmatprep.subr.bf16.mxu0 0
        %1068 = vmatpush1.bf16.msra.mxu0 0
        %1069 = vmatprep.subr.bf16.mxu0 0
        %1070 = vmatpush1.bf16.msra.mxu0 0
        %1071 = vmatprep.subr.bf16.mxu0 0
        %1072 = vmatpush1.bf16.msra.mxu0 0
        %1073 = vmatprep.subr.bf16.mxu0 0
        %1074 = vmatpush1.bf16.msra.mxu0 0
        %1075 = vmatprep.subr.bf16.mxu0 0
        %1076 = vmatpush1.bf16.msra.mxu0 0
        %1077 = vmatprep.subr.bf16.mxu0 0
        %1078 = vmatpush1.bf16.msra.mxu0 0
        %1079 = vmatprep.subr.bf16.mxu0 0
        %1080 = vmatpush1.bf16.msra.mxu0 0
        %1081 = vmatprep.subr.bf16.mxu0 0
        %1082 = vmatpush1.bf16.msra.mxu0 0
        %1083 = vmatprep.subr.bf16.mxu0 0
        %1084 = vmatpush1.bf16.msra.mxu0 0
        %1085 = vmatprep.mubr.bf16.mxu0 0
        %1086 = vmatmul.mubr.bf16.gmra.mrb[0].mxu0 %v1048
        %v1087 = vpop.f32.mrb[0].mxu0
        %v1088 = vadd.f32 0.0, %v1087
        %v1089 = vpop.f32.mrb[0].mxu0
        %v1090 = vpop.f32.mrb[0].mxu0
        %v1091 = vpop.f32.mrb[0].mxu0
        %1092 = vdwg.mxu0
        %v1094 = vsel %vm621, %v953, 0
        %v1097 = vsel %vm957, %v620, 0
        %1099 = vmatprep.subr.bf16.mxu0 0
        %1100 = vmatpush1.bf16.msra.mxu0 %v1097
        %1101 = vmatprep.subr.bf16.mxu0 0
        %1102 = vmatpush1.bf16.msra.mxu0 0
        %1103 = vmatprep.subr.bf16.mxu0 0
        %1104 = vmatpush1.bf16.msra.mxu0 0
        %1105 = vmatprep.subr.bf16.mxu0 0
        %1106 = vmatpush1.bf16.msra.mxu0 0
        %1107 = vmatprep.subr.bf16.mxu0 0
        %1108 = vmatpush1.bf16.msra.mxu0 0
        %1109 = vmatprep.subr.bf16.mxu0 0
        %1110 = vmatpush1.bf16.msra.mxu0 0
        %1111 = vmatprep.subr.bf16.mxu0 0
        %1112 = vmatpush1.bf16.msra.mxu0 0
        %1113 = vmatprep.subr.bf16.mxu0 0
        %1114 = vmatpush1.bf16.msra.mxu0 0
        %1115 = vmatprep.subr.bf16.mxu0 0
        %1116 = vmatpush1.bf16.msra.mxu0 0
        %1117 = vmatprep.subr.bf16.mxu0 0
        %1118 = vmatpush1.bf16.msra.mxu0 0
        %1119 = vmatprep.subr.bf16.mxu0 0
        %1120 = vmatpush1.bf16.msra.mxu0 0
        %1121 = vmatprep.subr.bf16.mxu0 0
        %1122 = vmatpush1.bf16.msra.mxu0 0
        %1123 = vmatprep.subr.bf16.mxu0 0
        %1124 = vmatpush1.bf16.msra.mxu0 0
        %1125 = vmatprep.subr.bf16.mxu0 0
        %1126 = vmatpush1.bf16.msra.mxu0 0
        %1127 = vmatprep.subr.bf16.mxu0 0
        %1128 = vmatpush1.bf16.msra.mxu0 0
        %1129 = vmatprep.subr.bf16.mxu0 0
        %1130 = vmatpush1.bf16.msra.mxu0 0
        %1131 = vmatprep.mubr.bf16.mxu0 0
        %1132 = vmatmul.mubr.bf16.gmra.mrb[0].mxu0 %v1094
        %v1133 = vpop.f32.mrb[0].mxu0
        %v1134 = vadd.f32 0.0, %v1133
        %v1135 = vpop.f32.mrb[0].mxu0
        %v1136 = vpop.f32.mrb[0].mxu0
        %v1137 = vpop.f32.mrb[0].mxu0
        %1138 = vdwg.mxu0
        %v1139 = vadd.f32 %v946, %v996
        %v1140 = vadd.f32 %v947, %v1042
        %v1141 = vadd.f32 %v948, %v1088
        %v1142 = vadd.f32 %v949, %v1134
        %1143 = vst.msk [vmem:[#allocation4] sm:$0xff] %vm621, %v1139
        %1144 = vst.msk [vmem:[#allocation4 + $0x8] sm:$0xff] %vm621, %v1140
        %1145 = vst.msk [vmem:[#allocation4 + $0x10] sm:$0xff] %vm621, %v1141
        %1146 = vst.msk [vmem:[#allocation4 + $0x18] sm:$0xff] %vm621, %v1142
        %1147 = vst.msk [vmem:[#allocation2] sm:$0xff] %vm917, %v845
        %1148 = vst.msk [vmem:[#allocation2 + $0x8] sm:$0xff] %vm917, %v846
        %1149 = vst.msk [vmem:[#allocation2 + $0x10] sm:$0xff] %vm917, %v847
        %1150 = vst.msk [vmem:[#allocation2 + $0x18] sm:$0xff] %vm917, %v848
        // Predicated region
        $region184: #{lm_model_forward.8} parent=166 // pred_check
          %p1151 = pneg %p591
        $region185: #{lm_model_forward.8} parent=166 // pred_check_branch
          %1153 = sbr.rel (%p1151) target = $region187
        $region186: #{lm_model_forward.8} parent=166 // pred_region
          %v1154 = vld [vmem:[#allocation4] sm:$0xff]
          %v1155 = vld [vmem:[#allocation4 + $0x8] sm:$0xff]
          %v1156 = vld [vmem:[#allocation4 + $0x10] sm:$0xff]
          %v1157 = vld [vmem:[#allocation4 + $0x18] sm:$0xff]
          %v1158 = vld [vmem:[#allocation3] sm:$0xff]
          %v1159 = vld [vmem:[#allocation3 + $0x8] sm:$0xff]
          %v1160 = vld [vmem:[#allocation3 + $0x10] sm:$0xff]
          %v1161 = vld [vmem:[#allocation3 + $0x18] sm:$0xff]
          %v1162 = vrcp.pop %v1158
          %v1163 = vrcp.pop %v1159
          %v1164 = vrcp.pop %v1160
          %v1165 = vrcp.pop %v1161
          %1167 = vset.pattern.permute.xlu0 0
          %1168 = vperm.xlu0 %1167, %v1162
          %v1169 = vpop.permute.xlu0 %1168
          %1172 = vset.pattern.permute.xlu0 0
          %1173 = vperm.xlu0 %1172, %v1163
          %v1174 = vpop.permute.xlu0 %1173
          %1177 = vset.pattern.permute.xlu0 0
          %1178 = vperm.xlu0 %1177, %v1164
          %v1179 = vpop.permute.xlu0 %1178
          %1182 = vset.pattern.permute.xlu0 0
          %1183 = vperm.xlu0 %1182, %v1165
          %v1184 = vpop.permute.xlu0 %1183
          %v1186 = vmul.f32 %v1154, %v1169
          %v1187 = vmul.f32 %v1155, %v1174
          %v1188 = vmul.f32 %v1156, %v1179
          %v1189 = vmul.f32 %v1157, %v1184
          %v1190 = vcombine.low %v1186, %v1188
          %v1191 = vcombine.high %v1186, %v1188
          %v1193 = vunpack.c.l.s4 1983009808
          %v1194 = vunpack.c.0.s8 %v1193
          %v1195 = vlaneseq
          %v1196 = vshrl.u32 %v1195, 7
          %v1197 = vsub.s32 %v1194, %v1196
          %v1198 = vrot.slane %v1190, %v1197
          %v1200 = vunpack.c.l.s4 1983009808
          %v1201 = vunpack.c.0.s8 %v1200
          %v1202 = vlaneseq
          %v1203 = vshrl.u32 %v1202, 7
          %v1204 = vsub.s32 %v1201, %v1203
          %v1205 = vrot.slane %v1191, %v1204
          %v1206 = vcombine.low %v1187, %v1189
          %v1207 = vcombine.high %v1187, %v1189
          %v1209 = vunpack.c.l.s4 1983009808
          %v1210 = vunpack.c.0.s8 %v1209
          %v1211 = vlaneseq
          %v1212 = vshrl.u32 %v1211, 7
          %v1213 = vsub.s32 %v1210, %v1212
          %v1214 = vrot.slane %v1206, %v1213
          %v1216 = vunpack.c.l.s4 1983009808
          %v1217 = vunpack.c.0.s8 %v1216
          %v1218 = vlaneseq
          %v1219 = vshrl.u32 %v1218, 7
          %v1220 = vsub.s32 %v1217, %v1219
          %v1221 = vrot.slane %v1207, %v1220
          %v1222 = vcombine.low %v1198, %v1214
          %v1223 = vcombine.high %v1198, %v1214
          %v1225 = vunpack.c.l.s4 1934713408
          %v1226 = vunpack.c.0.s8 %v1225
          %v1227 = vlaneseq
          %v1228 = vshrl.u32 %v1227, 7
          %v1229 = vsub.s32 %v1226, %v1228
          %v1230 = vrot.slane %v1222, %v1229
          %v1232 = vunpack.c.l.s4 1934713408
          %v1233 = vunpack.c.0.s8 %v1232
          %v1234 = vlaneseq
          %v1235 = vshrl.u32 %v1234, 7
          %v1236 = vsub.s32 %v1233, %v1235
          %v1237 = vrot.slane %v1223, %v1236
          %v1238 = vcombine.low %v1205, %v1221
          %v1239 = vcombine.high %v1205, %v1221
          %v1241 = vunpack.c.l.s4 1934713408
          %v1242 = vunpack.c.0.s8 %v1241
          %v1243 = vlaneseq
          %v1244 = vshrl.u32 %v1243, 7
          %v1245 = vsub.s32 %v1242, %v1244
          %v1246 = vrot.slane %v1238, %v1245
          %v1248 = vunpack.c.l.s4 1934713408
          %v1249 = vunpack.c.0.s8 %v1248
          %v1250 = vlaneseq
          %v1251 = vshrl.u32 %v1250, 7
          %v1252 = vsub.s32 %v1249, %v1251
          %v1253 = vrot.slane %v1239, %v1252
          %v1254 = vcombine.high %v1230, 0.0
          %v1255 = vcombine.high %v1237, 0.0
          %v1256 = vcombine.high %v1246, 0.0
          %v1257 = vcombine.high %v1253, 0.0
          %v1258 = vcombine.low %v1230, %v1237
          %v1260 = vunpack.c.l.s4 1983009808
          %v1261 = vunpack.c.0.s8 %v1260
          %v1262 = vlaneseq
          %v1263 = vshrl.u32 %v1262, 7
          %v1264 = vsub.s32 %v1261, %v1263
          %v1265 = vrot.slane %v1258, %v1264
          %v1266 = vcombine.low %v1254, %v1255
          %v1268 = vunpack.c.l.s4 1983009808
          %v1269 = vunpack.c.0.s8 %v1268
          %v1270 = vlaneseq
          %v1271 = vshrl.u32 %v1270, 7
          %v1272 = vsub.s32 %v1269, %v1271
          %v1273 = vrot.slane %v1266, %v1272
          %v1274 = vcombine.low %v1246, %v1253
          %v1276 = vunpack.c.l.s4 1983009808
          %v1277 = vunpack.c.0.s8 %v1276
          %v1278 = vlaneseq
          %v1279 = vshrl.u32 %v1278, 7
          %v1280 = vsub.s32 %v1277, %v1279
          %v1281 = vrot.slane %v1274, %v1280
          %v1282 = vcombine.low %v1256, %v1257
          %v1284 = vunpack.c.l.s4 1983009808
          %v1285 = vunpack.c.0.s8 %v1284
          %v1286 = vlaneseq
          %v1287 = vshrl.u32 %v1286, 7
          %v1288 = vsub.s32 %v1285, %v1287
          %v1289 = vrot.slane %v1282, %v1288
          %v1290 = vcombine.low %v1265, %v1273
          %v1291 = vcombine.high %v1265, %v1273
          %v1293 = vunpack.c.l.s4 1934713408
          %v1294 = vunpack.c.0.s8 %v1293
          %v1295 = vlaneseq
          %v1296 = vshrl.u32 %v1295, 7
          %v1297 = vsub.s32 %v1294, %v1296
          %v1298 = vrot.slane %v1290, %v1297
          %v1300 = vunpack.c.l.s4 1934713408
          %v1301 = vunpack.c.0.s8 %v1300
          %v1302 = vlaneseq
          %v1303 = vshrl.u32 %v1302, 7
          %v1304 = vsub.s32 %v1301, %v1303
          %v1305 = vrot.slane %v1291, %v1304
          %v1306 = vcombine.low %v1281, %v1289
          %v1307 = vcombine.high %v1281, %v1289
          %v1309 = vunpack.c.l.s4 1934713408
          %v1310 = vunpack.c.0.s8 %v1309
          %v1311 = vlaneseq
          %v1312 = vshrl.u32 %v1311, 7
          %v1313 = vsub.s32 %v1310, %v1312
          %v1314 = vrot.slane %v1306, %v1313
          %v1316 = vunpack.c.l.s4 1934713408
          %v1317 = vunpack.c.0.s8 %v1316
          %v1318 = vlaneseq
          %v1319 = vshrl.u32 %v1318, 7
          %v1320 = vsub.s32 %v1317, %v1319
          %v1321 = vrot.slane %v1307, %v1320
          %v1322 = vcombine.low %v1298, %v1314
          %v1323 = vcombine.high %v1298, %v1314
          %v1324 = vcombine.low %v1305, %v1321
          %v1325 = vcombine.high %v1305, %v1321
          %1327 = vrot.lane.b32.xlu0 %v1323, 8
          %v1328 = vpop.permute.xlu0 %1327
          %1331 = vrot.lane.b32.xlu0 %v1324, 16
          %v1332 = vpop.permute.xlu0 %1331
          %1335 = vrot.lane.b32.xlu0 %v1325, 24
          %v1336 = vpop.permute.xlu0 %1335
          %v1338 = vsel %vm621, %v1322, %v1328
          %vm1339 = vcmask 130048
          %v1340 = vsel %vm1339, %v1338, %v1332
          %vm1341 = vcmask 195584
          %v1342 = vsel %vm1341, %v1340, %v1336
          %v1343 = vpack.c.bf16 %v1342, %v1342
          %v1344 = vld [vmem:[%s5] sm:$0xf]
          %v1345 = vld [vmem:[%s5 + $0x4] sm:$0xf]
          %v1346 = vld [vmem:[%s5 + $0x8] sm:$0xf]
          %v1347 = vld [vmem:[%s5 + $0xc] sm:$0xf]
          %v1348 = vld [vmem:[%s6] sm:$0x1]
          %v1350 = vlaneseq
          %v1351 = vshrl.u32 %v1350, 7
          %v1352 = vsub.s32 0, %v1351
          %v1353 = vrot.slane %v1348, %v1352
          %v1359 = vunpack.c.l.b16 %v1344
          %v1360 = vunpack.c.l.b16 %v1345
          %v1361 = vunpack.c.l.b16 %v1346
          %v1362 = vunpack.c.l.b16 %v1347
          %v1363 = vpack.c.b16 %v1360, %v1359
          %v1364 = vpack.c.b16 %v1362, %v1361
          %vm1367 = vcmask 261120
          %v1369 = vsel %vm1367, %v1343, 0
          %1371 = vmatprep.subr.bf16.mxu0 0
          %1372 = vmatpush1.bf16.msra.mxu0 %v1363
          %1373 = vmatprep.subr.bf16.mxu0 0
          %1374 = vmatpush1.bf16.msra.mxu0 %v1364
          %1375 = vmatprep.subr.bf16.mxu0 0
          %1376 = vmatpush1.bf16.msra.mxu0 0
          %1377 = vmatprep.subr.bf16.mxu0 0
          %1378 = vmatpush1.bf16.msra.mxu0 0
          %1379 = vmatprep.subr.bf16.mxu0 0
          %1380 = vmatpush1.bf16.msra.mxu0 0
          %1381 = vmatprep.subr.bf16.mxu0 0
          %1382 = vmatpush1.bf16.msra.mxu0 0
          %1383 = vmatprep.subr.bf16.mxu0 0
          %1384 = vmatpush1.bf16.msra.mxu0 0
          %1385 = vmatprep.subr.bf16.mxu0 0
          %1386 = vmatpush1.bf16.msra.mxu0 0
          %1387 = vmatprep.subr.bf16.mxu0 0
          %1388 = vmatpush1.bf16.msra.mxu0 0
          %1389 = vmatprep.subr.bf16.mxu0 0
          %1390 = vmatpush1.bf16.msra.mxu0 0
          %1391 = vmatprep.subr.bf16.mxu0 0
          %1392 = vmatpush1.bf16.msra.mxu0 0
          %1393 = vmatprep.subr.bf16.mxu0 0
          %1394 = vmatpush1.bf16.msra.mxu0 0
          %1395 = vmatprep.subr.bf16.mxu0 0
          %1396 = vmatpush1.bf16.msra.mxu0 0
          %1397 = vmatprep.subr.bf16.mxu0 0
          %1398 = vmatpush1.bf16.msra.mxu0 0
          %1399 = vmatprep.subr.bf16.mxu0 0
          %1400 = vmatpush1.bf16.msra.mxu0 0
          %1401 = vmatprep.subr.bf16.mxu0 0
          %1402 = vmatpush1.bf16.msra.mxu0 0
          %1403 = vmatprep.mubr.bf16.mxu0 0
          %1404 = vmatmul.mubr.bf16.gmra.mrb[0].mxu0 %v1369
          %v1405 = vpop.f32.mrb[0].mxu0
          %v1406 = vadd.f32 %v1353, %v1405
          %v1407 = vpop.f32.mrb[0].mxu0
          %v1408 = vpop.f32.mrb[0].mxu0
          %v1409 = vpop.f32.mrb[0].mxu0
          %1410 = vdwg.mxu0
          %v1411 = vld [vmem:[%s585] sm:$0xf]
          %v1412 = vunpack.c.l.bf16 %v1411
          %v1413 = vadd.f32 %v1412, %v1406
          %v1414 = vld [vmem:[%s7] sm:$0x1]
          %v1415 = vld [vmem:[%s8] sm:$0x1]
          %v1416 = vsel %vm1367, %v1413, 0.0
          %1417 = vadd.xlane.f32.xlu0 %v1416
          %v1418 = vpop.xlane.xlu0 %1417
          %v1419 = vrcp.pop 32.0
          %v1420 = vmul.f32 %v1418, %v1419
          %v1421 = vsub.f32 %v1413, %v1420
          %v1422 = vmul.f32 %v1421, %v1421
          %v1423 = vsel %vm1367, %v1422, 0.0
          %1424 = vadd.xlane.f32.xlu0 %v1423
          %v1425 = vpop.xlane.xlu0 %1424
          %v1426 = vmul.f32 %v1425, %v1419
          %v1427 = vadd.f32 %v1426, 1e-05
          %v1428 = vrsqrt.pop %v1427
          %v1429 = vmul.f32 %v1421, %v1428
          %v1431 = vlaneseq
          %v1432 = vshrl.u32 %v1431, 7
          %v1433 = vsub.s32 0, %v1432
          %v1434 = vrot.slane %v1414, %v1433
          %v1436 = vmul.f32 %v1429, %v1434
          %v1438 = vlaneseq
          %v1439 = vshrl.u32 %v1438, 7
          %v1440 = vsub.s32 0, %v1439
          %v1441 = vrot.slane %v1415, %v1440
          %v1443 = vadd.f32 %v1436, %v1441
          %v1444 = vpack.c.bf16 %v1443, %v1443
          %vm1445 = vcmask 257024
          %1446 = vst.msk [vmem:[%s589] sm:$0xf] %vm1445, %v1444
        $region187: #{lm_model_forward.8} parent=166 // pred_fallthru
          _
        %p1447 = scmp.lt.s32.totalorder %s24, 1
        %s1448 = scalar_select %p1447, %s24, 1
        %s1449 = smul.addr %s1448, 4
        %s1450 = scalar_lea.vmem %s9, %s1449
        // Predicated region
        $region188: #{lm_model_forward.8} parent=166 // pred_check
          %p1451 = pneg %p270
        $region189: #{lm_model_forward.8} parent=166 // pred_check_branch
          %1453 = sbr.rel (%p1451) target = $region191
        $region190: #{lm_model_forward.8} parent=166 // pred_region
          _
        $region191: #{lm_model_forward.8} parent=166 // pred_fallthru
          _
      $region167: #{lm_model_forward.8} parent=5 // pred_fallthru
        _
      %p1454 = scmp.le.s32.totalorder 2, %s15
      // Predicated region
      $region192: #{lm_model_forward.8} parent=5 // pred_check
        %p1455 = pneg %p1454
      $region193: #{lm_model_forward.8} parent=5 // pred_check_branch
        %1457 = sbr.rel (%p1455) target = $region195
      $region194: #{lm_model_forward.8} parent=5 // pred_region
        %s1458 = ssub.s32 %s15, 2
        // Predicated region
        $region196: #{lm_model_forward.8} parent=194 // pred_check
          %p1459 = pneg %p276
        $region197: #{lm_model_forward.8} parent=194 // pred_check_branch
          %1461 = sbr.rel (%p1459) target = $region199
        $region198: #{lm_model_forward.8} parent=194 // pred_region
          %p1462 = scmp.lt.s32.totalorder %s26, 1
          %s1463 = scalar_select %p1462, %s26, 1
          %s1464 = smul.addr %s1463, 4
          %s1465 = scalar_lea.vmem %s9, %s1464
        $region199: #{lm_model_forward.8} parent=194 // pred_fallthru
          _
      $region195: #{lm_model_forward.8} parent=5 // pred_fallthru
        _
    $region6: #{lm_model_forward.8} parent=1 // loop_footer
      %s19 = sadd.s32 1, %s15
    $region7: #{lm_model_forward.8} parent=1 // loop_footer_branch
      %14 = sbr.rel target = $region3
    $region8: #{lm_model_forward.8} parent=1 // loop_exit
      _

</llo_original>
